<compile_context>
chip_gen: v6e
topology: v6e:2x2x1
jax: 0.10.0
libtpu: 0.0.40
codegen_flags: <defaults>
</compile_context>

<pallas_src>
import functools

import jax
import jax.numpy as jnp
from jax.experimental import pallas as pl
from jax.experimental.pallas import tpu as pltpu

CP = 128  # lane-dense channel padding (multiple of 128 lanes)

_VMEM = pl.BlockSpec(memory_space=pltpu.MemorySpace.VMEM)
_CPARAMS = pltpu.CompilerParams(vmem_limit_bytes=32 * 1024 * 1024)


# ----------------------------- Pallas kernels ------------------------------

def _conv_bn_kernel(x_ref, w_ref, g_ref, b_ref, *rest,
                    taps, n, ho, wo, eps, relu, has_residual, flat_taps):
    """Fused conv (in-kernel im2col) + BatchNorm (+ReLU) (+ residual add + ReLU).

    x_ref:
      flat_taps=False: (P*n, Hq, Wq, CP) padded (or parity-split) input planes;
                       tap t reads plane taps[t][0] at spatial offset (oh, ow).
      flat_taps=True : (T*M, CP) pre-stacked tap slabs; tap t reads rows [t*M,(t+1)*M).
    w_ref: (T, CP, CP) bf16 — one (Cin, Cout) matrix per tap.
    g_ref, b_ref: (1, CP) BatchNorm affine params.
    rest: optional residual (M, CP) f32, then the (M, CP) output ref.
    """
    if has_residual:
        res_ref, o_ref = rest
    else:
        (o_ref,) = rest

    m = n * ho * wo
    acc = None
    for t in range(len(taps)):
        if flat_taps:
            slab = x_ref[t * m:(t + 1) * m, :]
        else:
            p, oh, ow = taps[t]
            slab = x_ref[p * n:(p + 1) * n, oh:oh + ho, ow:ow + wo, :]
            slab = slab.reshape(m, CP)
        d = jnp.dot(slab.astype(jnp.bfloat16), w_ref[t],
                    preferred_element_type=jnp.float32)
        acc = d if acc is None else acc + d

    # BatchNorm (training mode): per-channel batch mean / biased variance, computed
    # in ONE pass (sum and sum-of-squares) to halve the reduction work.
    inv_m = 1.0 / m
    mean = jnp.sum(acc, axis=0, keepdims=True) * inv_m
    ex2 = jnp.sum(acc * acc, axis=0, keepdims=True) * inv_m
    var = jnp.maximum(ex2 - mean * mean, 0.0)
    scale = jax.lax.rsqrt(var + eps) * g_ref[...]
    y = (acc - mean) * scale + b_ref[...]

    if has_residual:          # standard_block tail:  relu(bn2(conv2(.)) + residual)
        y = jnp.maximum(y + res_ref[...], 0.0)
    elif relu:                # batch_norm_relu_layer
        y = jnp.maximum(y, 0.0)
    o_ref[...] = y.astype(o_ref.dtype)


def _pool_fc_kernel(x_ref, w_ref, b_ref, o_ref, *, inv_hw):
    # x: (N, H*W, CP) -> global average pool -> (N, CP) @ (CP, CP) + bias (classes
    # padded to 128 lanes; padded logits are sliced off outside the kernel).
    x = x_ref[...].astype(jnp.float32)
    pooled = (jnp.sum(x, axis=1) * inv_hw).astype(jnp.bfloat16)
    o_ref[...] = (jnp.dot(pooled, w_ref[...], preferred_element_type=jnp.float32)
                  + b_ref[...]).astype(o_ref.dtype)


# ------------------------------ layer wrappers ------------------------------

def conv_bn(x, w_taps, gamma, beta, *, ksize, stride, relu, residual=None, eps=1e-5):
    """Conv2d(ksize, stride, padding=(ksize-1)//2, bias dropped — cancels under BN)
    + training-mode BatchNorm2d + optional ReLU, and (if `residual` is given) the
    standard-block tail `relu(bn(conv(x)) + residual)`, all in ONE pallas_call.

    x: (N, H, W, CP) f32.  w_taps: (ksize*ksize, CP, CP) bf16.  Returns (N, Ho, Wo, CP).
    """
    N, H, W, _ = x.shape
    Ho, Wo = H // stride, W // stride
    M = N * Ho * Wo
    T = ksize * ksize

    # Tiny-spatial fallback (final 4x4 stack): pre-stack tap slabs in the wrapper so
    # the kernel never reshapes with a sub-8 second-minor dim.  Negligible data here.
    flat_taps = (Wo % 8) != 0

    if ksize == 1:
        xs = x if stride == 1 else x[:, ::stride, ::stride, :]
        if flat_taps:
            planes = xs.reshape(M, CP)
            taps = (0,)
        else:
            planes = xs
            taps = ((0, 0, 0),)
    else:  # 3x3, padding=1
        xp = jnp.pad(x, ((0, 0), (1, 1), (1, 1), (0, 0)))
        if stride == 1:
            if flat_taps:
                planes = jnp.concatenate(
                    [xp[:, kh:kh + Ho, kw:kw + Wo, :].reshape(M, CP)
                     for kh in range(3) for kw in range(3)], axis=0)
                taps = tuple(range(T))
            else:
                # in-kernel im2col straight from the padded plane (1x HBM read)
                planes = xp
                taps = tuple((0, kh, kw) for kh in range(3) for kw in range(3))
        else:  # stride 2
            if flat_taps:
                planes = jnp.concatenate(
                    [xp[:, kh:kh + 2 * Ho:2, kw:kw + 2 * Wo:2, :].reshape(M, CP)
                     for kh in range(3) for kw in range(3)], axis=0)
                taps = tuple(range(T))
            else:
                # 2x2 parity (space-to-batch) split: 1x rearrangement; stride-2 taps
                # become contiguous offsets into the parity planes (only needed
                # outputs are ever computed).
                planes = jnp.concatenate(
                    [xp[:, ph::2, pw::2, :] for ph in range(2) for pw in range(2)],
                    axis=0)
                taps = tuple(((kh % 2) * 2 + (kw % 2), kh // 2, kw // 2)
                             for kh in range(3) for kw in range(3))

    args = [planes, w_taps, gamma, beta]
    if residual is not None:
        args.append(residual.reshape(M, CP))

    kern = functools.partial(
        _conv_bn_kernel, taps=taps, n=N, ho=Ho, wo=Wo, eps=eps, relu=relu,
        has_residual=residual is not None, flat_taps=flat_taps)

    out = pl.pallas_call(
        kern,
        out_shape=jax.ShapeDtypeStruct((M, CP), jnp.float32),
        in_specs=[_VMEM] * len(args),
        out_specs=_VMEM,
        compiler_params=_CPARAMS,
    )(*args)
    return out.reshape(N, Ho, Wo, CP)


def pool_fc(x, fc_w, fc_b):
    N, H, W, _ = x.shape
    return pl.pallas_call(
        functools.partial(_pool_fc_kernel, inv_hw=1.0 / (H * W)),
        out_shape=jax.ShapeDtypeStruct((N, CP), jnp.float32),
        in_specs=[_VMEM] * 3,
        out_specs=_VMEM,
        compiler_params=_CPARAMS,
    )(x.reshape(N, H * W, CP), fc_w, fc_b)


# ------------------------------ parameter init ------------------------------

def init_params(key, *, resnet_size, num_classes, first_num_filters):
    keys = iter(jax.random.split(key, 256))

    def nk():
        return next(keys)

    def conv_w(kh, kw, cin, cout):
        # Logical HWIO weight, zero-padded to CP on both channel dims, reshaped to one
        # (Cin, Cout) matrix per tap, stored bf16 for the MXU.  Conv biases are omitted
        # on purpose: bias followed by training-mode BN cancels exactly.
        w = 0.1 * jax.random.normal(nk(), (kh, kw, cin, cout), jnp.float32)
        w = jnp.pad(w, ((0, 0), (0, 0), (0, CP - cin), (0, CP - cout)))
        return w.reshape(kh * kw, CP, CP).astype(jnp.bfloat16)

    def bn_init():
        # PyTorch BatchNorm2d default affine init: weight=1, bias=0.  Padded channels
        # stay exactly zero through BN because their input and beta are zero.
        return jnp.ones((1, CP), jnp.float32), jnp.zeros((1, CP), jnp.float32)

    p = {}
    # start_layer: Conv2d(6, first_num_filters, 3, stride=1, padding=1)
    p['start_w'] = conv_w(3, 3, 6, first_num_filters)
    p['start_g'], p['start_be'] = bn_init()

    stacks = []
    for i in range(3):
        filters = first_num_filters * 2 ** i
        strides = 1 if i == 0 else 2
        blocks = []
        for j in range(resnet_size):
            s = strides if j == 0 else 1
            blk = {'stride': s}
            # conv1: Conv2d(filters // s, filters, 3, stride=s, padding=1)
            blk['conv1_w'] = conv_w(3, 3, filters // s, filters)
            blk['bn1_g'], blk['bn1_b'] = bn_init()
            # conv2: Conv2d(filters, filters, 3, stride=1, padding=1)
            blk['conv2_w'] = conv_w(3, 3, filters, filters)
            blk['bn2_g'], blk['bn2_b'] = bn_init()
            if j == 0 and first_num_filters != filters:
                # projection shortcut: Conv2d(filters//2, filters, 1, stride=s) + BN
                blk['proj_w'] = conv_w(1, 1, filters // 2, filters)
                blk['proj_g'], blk['proj_be'] = bn_init()
            blocks.append(blk)
        stacks.append(blocks)
    p['stacks'] = stacks

    # output_layer(filters*4, version=1, num_classes): fc in_features = filters*4 // 4
    c_final = first_num_filters * 4
    fc_w = 0.1 * jax.random.normal(nk(), (c_final, num_classes), jnp.float32)
    p['fc_w'] = jnp.pad(fc_w, ((0, CP - c_final), (0, CP - num_classes))).astype(jnp.bfloat16)
    fc_b = 0.1 * jax.random.normal(nk(), (num_classes,), jnp.float32)
    p['fc_b'] = jnp.pad(fc_b, (0, CP - num_classes)).reshape(1, CP)
    return p


# -------------------------------- forward pass -------------------------------

def resnet_forward(params, x_nchw, *, num_classes):
    """x_nchw: (N, 6, H, W) float32 (same convention as the PyTorch module)."""
    x = jnp.transpose(x_nchw, (0, 2, 3, 1))                          # NCHW -> NHWC
    x = jnp.pad(x, ((0, 0), (0, 0), (0, 0), (0, CP - x.shape[-1])))  # lane-pad channels

    # start layer + BN + ReLU (one fused kernel)
    x = conv_bn(x, params['start_w'], params['start_g'], params['start_be'],
                ksize=3, stride=1, relu=True)

    # three stacks of standard residual blocks
    for stack in params['stacks']:
        for blk in stack:
            s = blk['stride']
            out = conv_bn(x, blk['conv1_w'], blk['bn1_g'], blk['bn1_b'],
                          ksize=3, stride=s, relu=True)
            if 'proj_w' in blk:
                residual = conv_bn(x, blk['proj_w'], blk['proj_g'], blk['proj_be'],
                                   ksize=1, stride=s, relu=False)
            else:
                residual = x
            # conv2 + BN + residual add + ReLU fused into one kernel
            x = conv_bn(out, blk['conv2_w'], blk['bn2_g'], blk['bn2_b'],
                        ksize=3, stride=1, relu=False, residual=residual)

    # output layer: adaptive avg pool (1,1) + flatten + Linear (classes lane-padded)
    logits = pool_fc(x, params['fc_w'], params['fc_b'])
    return logits[:, :num_classes]


# ----------------------------------- main ------------------------------------

if __name__ == "__main__":
    key = jax.random.PRNGKey(0)
    k_in, k_param = jax.random.split(key)

    N, C_IN, H, W = 2, 6, 16, 16          # start_layer expects 6 input channels
    FIRST_NUM_FILTERS = 16
    RESNET_SIZE = 1                        # blocks per stack
    NUM_CLASSES = 10

    x = jax.random.normal(k_in, (N, C_IN, H, W), jnp.float32)
    params = init_params(k_param,
                         resnet_size=RESNET_SIZE,
                         num_classes=NUM_CLASSES,
                         first_num_filters=FIRST_NUM_FILTERS)

    logits = resnet_forward(params, x, num_classes=NUM_CLASSES)
    logits = jax.block_until_ready(logits)
    assert logits.shape == (N, NUM_CLASSES), logits.shape
    assert bool(jnp.all(jnp.isfinite(logits)))
    print("KERNEL_OK")
</pallas_src>

<mosaic_0001>
module attributes {stable_mosaic.version = 11 : i64} {
  func.func @_conv_bn_kernel(%arg0: memref<2x18x18x128xf32, #tpu.memory_space<vmem>>, %arg1: memref<9x128x128xbf16, #tpu.memory_space<vmem>>, %arg2: memref<1x128xf32, #tpu.memory_space<vmem>>, %arg3: memref<1x128xf32, #tpu.memory_space<vmem>>, %arg4: memref<512x128xf32, #tpu.memory_space<vmem>>) attributes {dimension_semantics = [], scalar_prefetch = 0 : i64, scratch_operands = 0 : i64, tpu.core_type = #tpu.core_type<tc>} {
    %c0 = arith.constant 0 : index
    %c0_0 = arith.constant 0 : index
    %c0_1 = arith.constant 0 : index
    %c0_2 = arith.constant 0 : index
    %0 = vector.load %arg0[%c0, %c0_0, %c0_1, %c0_2] : memref<2x18x18x128xf32, #tpu.memory_space<vmem>>, vector<2x16x16x128xf32>
    %1 = vector.shape_cast %0 : vector<2x16x16x128xf32> to vector<512x128xf32>
    %2 = arith.truncf %1 : vector<512x128xf32> to vector<512x128xbf16>
    %c0_3 = arith.constant 0 : index
    %c0_4 = arith.constant 0 : index
    %c0_5 = arith.constant 0 : index
    %3 = vector.load %arg1[%c0_3, %c0_4, %c0_5] : memref<9x128x128xbf16, #tpu.memory_space<vmem>>, vector<1x128x128xbf16>
    %4 = vector.shape_cast %3 : vector<1x128x128xbf16> to vector<128x128xbf16>
    %cst = arith.constant dense<0.000000e+00> : vector<512x128xf32>
    %5 = tpu.matmul %2, %4, %cst {dimension_numbers = #tpu.dot_dimension_numbers<[1], [0], [0], [1], [0, 0, 1, 1], [], []>} : vector<512x128xbf16>, vector<128x128xbf16>, vector<512x128xf32> -> vector<512x128xf32>
    %c0_6 = arith.constant 0 : index
    %c0_7 = arith.constant 0 : index
    %c1 = arith.constant 1 : index
    %c0_8 = arith.constant 0 : index
    %6 = vector.load %arg0[%c0_6, %c0_7, %c1, %c0_8] : memref<2x18x18x128xf32, #tpu.memory_space<vmem>>, vector<2x16x16x128xf32>
    %7 = vector.shape_cast %6 : vector<2x16x16x128xf32> to vector<512x128xf32>
    %8 = arith.truncf %7 : vector<512x128xf32> to vector<512x128xbf16>
    %c1_9 = arith.constant 1 : index
    %c0_10 = arith.constant 0 : index
    %c0_11 = arith.constant 0 : index
    %9 = vector.load %arg1[%c1_9, %c0_10, %c0_11] : memref<9x128x128xbf16, #tpu.memory_space<vmem>>, vector<1x128x128xbf16>
    %10 = vector.shape_cast %9 : vector<1x128x128xbf16> to vector<128x128xbf16>
    %cst_12 = arith.constant dense<0.000000e+00> : vector<512x128xf32>
    %11 = tpu.matmul %8, %10, %cst_12 {dimension_numbers = #tpu.dot_dimension_numbers<[1], [0], [0], [1], [0, 0, 1, 1], [], []>} : vector<512x128xbf16>, vector<128x128xbf16>, vector<512x128xf32> -> vector<512x128xf32>
    %12 = arith.addf %5, %11 : vector<512x128xf32>
    %c0_13 = arith.constant 0 : index
    %c0_14 = arith.constant 0 : index
    %c2 = arith.constant 2 : index
    %c0_15 = arith.constant 0 : index
    %13 = vector.load %arg0[%c0_13, %c0_14, %c2, %c0_15] : memref<2x18x18x128xf32, #tpu.memory_space<vmem>>, vector<2x16x16x128xf32>
    %14 = vector.shape_cast %13 : vector<2x16x16x128xf32> to vector<512x128xf32>
    %15 = arith.truncf %14 : vector<512x128xf32> to vector<512x128xbf16>
    %c2_16 = arith.constant 2 : index
    %c0_17 = arith.constant 0 : index
    %c0_18 = arith.constant 0 : index
    %16 = vector.load %arg1[%c2_16, %c0_17, %c0_18] : memref<9x128x128xbf16, #tpu.memory_space<vmem>>, vector<1x128x128xbf16>
    %17 = vector.shape_cast %16 : vector<1x128x128xbf16> to vector<128x128xbf16>
    %cst_19 = arith.constant dense<0.000000e+00> : vector<512x128xf32>
    %18 = tpu.matmul %15, %17, %cst_19 {dimension_numbers = #tpu.dot_dimension_numbers<[1], [0], [0], [1], [0, 0, 1, 1], [], []>} : vector<512x128xbf16>, vector<128x128xbf16>, vector<512x128xf32> -> vector<512x128xf32>
    %19 = arith.addf %12, %18 : vector<512x128xf32>
    %c0_20 = arith.constant 0 : index
    %c1_21 = arith.constant 1 : index
    %c0_22 = arith.constant 0 : index
    %c0_23 = arith.constant 0 : index
    %20 = vector.load %arg0[%c0_20, %c1_21, %c0_22, %c0_23] : memref<2x18x18x128xf32, #tpu.memory_space<vmem>>, vector<2x16x16x128xf32>
    %21 = vector.shape_cast %20 : vector<2x16x16x128xf32> to vector<512x128xf32>
    %22 = arith.truncf %21 : vector<512x128xf32> to vector<512x128xbf16>
    %c3 = arith.constant 3 : index
    %c0_24 = arith.constant 0 : index
    %c0_25 = arith.constant 0 : index
    %23 = vector.load %arg1[%c3, %c0_24, %c0_25] : memref<9x128x128xbf16, #tpu.memory_space<vmem>>, vector<1x128x128xbf16>
    %24 = vector.shape_cast %23 : vector<1x128x128xbf16> to vector<128x128xbf16>
    %cst_26 = arith.constant dense<0.000000e+00> : vector<512x128xf32>
    %25 = tpu.matmul %22, %24, %cst_26 {dimension_numbers = #tpu.dot_dimension_numbers<[1], [0], [0], [1], [0, 0, 1, 1], [], []>} : vector<512x128xbf16>, vector<128x128xbf16>, vector<512x128xf32> -> vector<512x128xf32>
    %26 = arith.addf %19, %25 : vector<512x128xf32>
    %c0_27 = arith.constant 0 : index
    %c1_28 = arith.constant 1 : index
    %c1_29 = arith.constant 1 : index
    %c0_30 = arith.constant 0 : index
    %27 = vector.load %arg0[%c0_27, %c1_28, %c1_29, %c0_30] : memref<2x18x18x128xf32, #tpu.memory_space<vmem>>, vector<2x16x16x128xf32>
    %28 = vector.shape_cast %27 : vector<2x16x16x128xf32> to vector<512x128xf32>
    %29 = arith.truncf %28 : vector<512x128xf32> to vector<512x128xbf16>
    %c4 = arith.constant 4 : index
    %c0_31 = arith.constant 0 : index
    %c0_32 = arith.constant 0 : index
    %30 = vector.load %arg1[%c4, %c0_31, %c0_32] : memref<9x128x128xbf16, #tpu.memory_space<vmem>>, vector<1x128x128xbf16>
    %31 = vector.shape_cast %30 : vector<1x128x128xbf16> to vector<128x128xbf16>
    %cst_33 = arith.constant dense<0.000000e+00> : vector<512x128xf32>
    %32 = tpu.matmul %29, %31, %cst_33 {dimension_numbers = #tpu.dot_dimension_numbers<[1], [0], [0], [1], [0, 0, 1, 1], [], []>} : vector<512x128xbf16>, vector<128x128xbf16>, vector<512x128xf32> -> vector<512x128xf32>
    %33 = arith.addf %26, %32 : vector<512x128xf32>
    %c0_34 = arith.constant 0 : index
    %c1_35 = arith.constant 1 : index
    %c2_36 = arith.constant 2 : index
    %c0_37 = arith.constant 0 : index
    %34 = vector.load %arg0[%c0_34, %c1_35, %c2_36, %c0_37] : memref<2x18x18x128xf32, #tpu.memory_space<vmem>>, vector<2x16x16x128xf32>
    %35 = vector.shape_cast %34 : vector<2x16x16x128xf32> to vector<512x128xf32>
    %36 = arith.truncf %35 : vector<512x128xf32> to vector<512x128xbf16>
    %c5 = arith.constant 5 : index
    %c0_38 = arith.constant 0 : index
    %c0_39 = arith.constant 0 : index
    %37 = vector.load %arg1[%c5, %c0_38, %c0_39] : memref<9x128x128xbf16, #tpu.memory_space<vmem>>, vector<1x128x128xbf16>
    %38 = vector.shape_cast %37 : vector<1x128x128xbf16> to vector<128x128xbf16>
    %cst_40 = arith.constant dense<0.000000e+00> : vector<512x128xf32>
    %39 = tpu.matmul %36, %38, %cst_40 {dimension_numbers = #tpu.dot_dimension_numbers<[1], [0], [0], [1], [0, 0, 1, 1], [], []>} : vector<512x128xbf16>, vector<128x128xbf16>, vector<512x128xf32> -> vector<512x128xf32>
    %40 = arith.addf %33, %39 : vector<512x128xf32>
    %c0_41 = arith.constant 0 : index
    %c2_42 = arith.constant 2 : index
    %c0_43 = arith.constant 0 : index
    %c0_44 = arith.constant 0 : index
    %41 = vector.load %arg0[%c0_41, %c2_42, %c0_43, %c0_44] : memref<2x18x18x128xf32, #tpu.memory_space<vmem>>, vector<2x16x16x128xf32>
    %42 = vector.shape_cast %41 : vector<2x16x16x128xf32> to vector<512x128xf32>
    %43 = arith.truncf %42 : vector<512x128xf32> to vector<512x128xbf16>
    %c6 = arith.constant 6 : index
    %c0_45 = arith.constant 0 : index
    %c0_46 = arith.constant 0 : index
    %44 = vector.load %arg1[%c6, %c0_45, %c0_46] : memref<9x128x128xbf16, #tpu.memory_space<vmem>>, vector<1x128x128xbf16>
    %45 = vector.shape_cast %44 : vector<1x128x128xbf16> to vector<128x128xbf16>
    %cst_47 = arith.constant dense<0.000000e+00> : vector<512x128xf32>
    %46 = tpu.matmul %43, %45, %cst_47 {dimension_numbers = #tpu.dot_dimension_numbers<[1], [0], [0], [1], [0, 0, 1, 1], [], []>} : vector<512x128xbf16>, vector<128x128xbf16>, vector<512x128xf32> -> vector<512x128xf32>
    %47 = arith.addf %40, %46 : vector<512x128xf32>
    %c0_48 = arith.constant 0 : index
    %c2_49 = arith.constant 2 : index
    %c1_50 = arith.constant 1 : index
    %c0_51 = arith.constant 0 : index
    %48 = vector.load %arg0[%c0_48, %c2_49, %c1_50, %c0_51] : memref<2x18x18x128xf32, #tpu.memory_space<vmem>>, vector<2x16x16x128xf32>
    %49 = vector.shape_cast %48 : vector<2x16x16x128xf32> to vector<512x128xf32>
    %50 = arith.truncf %49 : vector<512x128xf32> to vector<512x128xbf16>
    %c7 = arith.constant 7 : index
    %c0_52 = arith.constant 0 : index
    %c0_53 = arith.constant 0 : index
    %51 = vector.load %arg1[%c7, %c0_52, %c0_53] : memref<9x128x128xbf16, #tpu.memory_space<vmem>>, vector<1x128x128xbf16>
    %52 = vector.shape_cast %51 : vector<1x128x128xbf16> to vector<128x128xbf16>
    %cst_54 = arith.constant dense<0.000000e+00> : vector<512x128xf32>
    %53 = tpu.matmul %50, %52, %cst_54 {dimension_numbers = #tpu.dot_dimension_numbers<[1], [0], [0], [1], [0, 0, 1, 1], [], []>} : vector<512x128xbf16>, vector<128x128xbf16>, vector<512x128xf32> -> vector<512x128xf32>
    %54 = arith.addf %47, %53 : vector<512x128xf32>
    %c0_55 = arith.constant 0 : index
    %c2_56 = arith.constant 2 : index
    %c2_57 = arith.constant 2 : index
    %c0_58 = arith.constant 0 : index
    %55 = vector.load %arg0[%c0_55, %c2_56, %c2_57, %c0_58] : memref<2x18x18x128xf32, #tpu.memory_space<vmem>>, vector<2x16x16x128xf32>
    %56 = vector.shape_cast %55 : vector<2x16x16x128xf32> to vector<512x128xf32>
    %57 = arith.truncf %56 : vector<512x128xf32> to vector<512x128xbf16>
    %c8 = arith.constant 8 : index
    %c0_59 = arith.constant 0 : index
    %c0_60 = arith.constant 0 : index
    %58 = vector.load %arg1[%c8, %c0_59, %c0_60] : memref<9x128x128xbf16, #tpu.memory_space<vmem>>, vector<1x128x128xbf16>
    %59 = vector.shape_cast %58 : vector<1x128x128xbf16> to vector<128x128xbf16>
    %cst_61 = arith.constant dense<0.000000e+00> : vector<512x128xf32>
    %60 = tpu.matmul %57, %59, %cst_61 {dimension_numbers = #tpu.dot_dimension_numbers<[1], [0], [0], [1], [0, 0, 1, 1], [], []>} : vector<512x128xbf16>, vector<128x128xbf16>, vector<512x128xf32> -> vector<512x128xf32>
    %61 = arith.addf %54, %60 : vector<512x128xf32>
    %cst_62 = arith.constant dense<0.000000e+00> : vector<128xf32>
    %62 = vector.multi_reduction <add>, %61, %cst_62 [0] : vector<512x128xf32> to vector<128xf32>
    %63 = vector.shape_cast %62 : vector<128xf32> to vector<1x128xf32>
    %cst_63 = arith.constant 0.001953125 : f32
    %64 = vector.broadcast %cst_63 : f32 to vector<1x128xf32>
    %65 = arith.mulf %63, %64 : vector<1x128xf32>
    %66 = arith.mulf %61, %61 : vector<512x128xf32>
    %cst_64 = arith.constant dense<0.000000e+00> : vector<128xf32>
    %67 = vector.multi_reduction <add>, %66, %cst_64 [0] : vector<512x128xf32> to vector<128xf32>
    %68 = vector.shape_cast %67 : vector<128xf32> to vector<1x128xf32>
    %cst_65 = arith.constant 0.001953125 : f32
    %69 = vector.broadcast %cst_65 : f32 to vector<1x128xf32>
    %70 = arith.mulf %68, %69 : vector<1x128xf32>
    %71 = arith.mulf %65, %65 : vector<1x128xf32>
    %72 = arith.subf %70, %71 : vector<1x128xf32>
    %cst_66 = arith.constant 0.000000e+00 : f32
    %73 = vector.broadcast %cst_66 : f32 to vector<1x128xf32>
    %74 = arith.maximumf %72, %73 : vector<1x128xf32>
    %cst_67 = arith.constant 9.99999974E-6 : f32
    %75 = vector.broadcast %cst_67 : f32 to vector<1x128xf32>
    %76 = arith.addf %74, %75 : vector<1x128xf32>
    %77 = math.rsqrt %76 : vector<1x128xf32>
    %c0_68 = arith.constant 0 : index
    %c0_69 = arith.constant 0 : index
    %78 = vector.load %arg2[%c0_68, %c0_69] : memref<1x128xf32, #tpu.memory_space<vmem>>, vector<1x128xf32>
    %79 = arith.mulf %77, %78 : vector<1x128xf32>
    %80 = vector.broadcast %65 : vector<1x128xf32> to vector<512x128xf32>
    %81 = arith.subf %61, %80 : vector<512x128xf32>
    %82 = vector.broadcast %79 : vector<1x128xf32> to vector<512x128xf32>
    %83 = arith.mulf %81, %82 : vector<512x128xf32>
    %c0_70 = arith.constant 0 : index
    %c0_71 = arith.constant 0 : index
    %84 = vector.load %arg3[%c0_70, %c0_71] : memref<1x128xf32, #tpu.memory_space<vmem>>, vector<1x128xf32>
    %85 = vector.broadcast %84 : vector<1x128xf32> to vector<512x128xf32>
    %86 = arith.addf %83, %85 : vector<512x128xf32>
    %cst_72 = arith.constant 0.000000e+00 : f32
    %87 = vector.broadcast %cst_72 : f32 to vector<512x128xf32>
    %88 = arith.maximumf %86, %87 : vector<512x128xf32>
    %c0_73 = arith.constant 0 : index
    %c0_74 = arith.constant 0 : index
    %89 = vector.load %arg4[%c0_73, %c0_74] : memref<512x128xf32, #tpu.memory_space<vmem>>, vector<512x128xf32>
    tpu.vector_store %arg4[%c0_73, %c0_74], %88 {strides = array<i32>} : memref<512x128xf32, #tpu.memory_space<vmem>>, vector<512x128xf32>,
    return
  }
}

</mosaic_0001>

<llo_original>
// kernel: tpu_custom_call.1
$region0: #{tpu_custom_call.1}
  #allocation0 [shape = 'u32[]', space=smem, size = 0x4, offset = 0x4, fixed_abs, tag = 'smem constant byte address 0x4 - core index']
  #allocation1 [shape = 'u32[144,128]{1,0:T(1,128)}', space=vmem, size = 0x12000, scoped, tag = 'internal scratch']
  %s0 = inlined_call_operand.vmem [shape: f32[2,18,18,128], index: 0, kind: input, shape index: {}]
  %s1 = inlined_call_operand.vmem [shape: bf16[9,128,128], index: 1, kind: input, shape index: {}]
  %s2 = inlined_call_operand.vmem [shape: f32[1,128], index: 2, kind: input, shape index: {}]
  %s3 = inlined_call_operand.vmem [shape: f32[1,128], index: 3, kind: input, shape index: {}]
  %s4 = inlined_call_operand.hbm [shape: f32[512,128], index: 4, kind: output, shape index: {}]
  %s5 = sld [smem:[#allocation0]]
  $region26: #{tpu_custom_call.1} parent=0
    _
  %s7 = ssub.s32 1, %s5
  %s8 = scalar_select 0, %s7, %s5
  $region1: #{tpu_custom_call.1} parent=0
    #allocation2 [shape = 'u8[262144]{0}', space=vmem, size = 0x40000, scoped, tag = 'output window, operand 0, single buffered']
    #allocation3 [shape = 's32[1]{0}', space=sflag, size = 0x4, scoped, tag = 'scoped memory for tpu_custom_call.1']
    %9 = vsyncpa [#allocation3], 0
    // Predicated region
    $region2: #{tpu_custom_call.1} parent=1 // pred_check
      _
    $region3: #{tpu_custom_call.1} parent=1 // pred_check_branch
      %11 = sbr.rel (0) target = $region5
    $region4: #{tpu_custom_call.1} parent=1 // pred_region
      _
    $region5: #{tpu_custom_call.1} parent=1 // pred_fallthru
      _
    // Predicated region
    $region6: #{tpu_custom_call.1} parent=1 // pred_check
      _
    $region7: #{tpu_custom_call.1} parent=1 // pred_check_branch
      %13 = sbr.rel (0) target = $region9
    $region8: #{tpu_custom_call.1} parent=1 // pred_region
      _
    $region9: #{tpu_custom_call.1} parent=1 // pred_fallthru
      _
    // Predicated region
    $region10: #{tpu_custom_call.1} parent=1 // pred_check
      _
    $region11: #{tpu_custom_call.1} parent=1 // pred_check_branch
      %15 = sbr.rel (0) target = $region13
    $region12: #{tpu_custom_call.1} parent=1 // pred_region
      _
    $region13: #{tpu_custom_call.1} parent=1 // pred_fallthru
      _
    // Predicated region
    $region14: #{tpu_custom_call.1} parent=1 // pred_check
      _
    $region15: #{tpu_custom_call.1} parent=1 // pred_check_branch
      %17 = sbr.rel (0) target = $region17
    $region16: #{tpu_custom_call.1} parent=1 // pred_region
      _
    $region17: #{tpu_custom_call.1} parent=1 // pred_fallthru
      _
    %v19 = vld [vmem:[%s0] sm:$0xff]
    %v20 = vld [vmem:[%s0 + $0x8] sm:$0xff]
    %v21 = vld [vmem:[%s0 + $0x18] sm:$0xff]
    %v22 = vld [vmem:[%s0 + $0x20] sm:$0xff]
    %v23 = vld [vmem:[%s0 + $0x30] sm:$0xff]
    %v24 = vld [vmem:[%s0 + $0x38] sm:$0xff]
    %v25 = vld [vmem:[%s0 + $0x48] sm:$0xff]
    %v26 = vld [vmem:[%s0 + $0x50] sm:$0xff]
    %v27 = vld [vmem:[%s0 + $0x60] sm:$0xff]
    %v28 = vld [vmem:[%s0 + $0x68] sm:$0xff]
    %v29 = vld [vmem:[%s0 + $0x78] sm:$0xff]
    %v30 = vld [vmem:[%s0 + $0x80] sm:$0xff]
    %v31 = vld [vmem:[%s0 + $0x90] sm:$0xff]
    %v32 = vld [vmem:[%s0 + $0x98] sm:$0xff]
    %v33 = vld [vmem:[%s0 + $0xa8] sm:$0xff]
    %v34 = vld [vmem:[%s0 + $0xb0] sm:$0xff]
    %v35 = vld [vmem:[%s0 + $0xc0] sm:$0xff]
    %v36 = vld [vmem:[%s0 + $0xc8] sm:$0xff]
    %v37 = vld [vmem:[%s0 + $0xd8] sm:$0xff]
    %v38 = vld [vmem:[%s0 + $0xe0] sm:$0xff]
    %v39 = vld [vmem:[%s0 + $0xf0] sm:$0xff]
    %v40 = vld [vmem:[%s0 + $0xf8] sm:$0xff]
    %v41 = vld [vmem:[%s0 + $0x108] sm:$0xff]
    %v42 = vld [vmem:[%s0 + $0x110] sm:$0xff]
    %v43 = vld [vmem:[%s0 + $0x120] sm:$0xff]
    %v44 = vld [vmem:[%s0 + $0x128] sm:$0xff]
    %v45 = vld [vmem:[%s0 + $0x138] sm:$0xff]
    %v46 = vld [vmem:[%s0 + $0x140] sm:$0xff]
    %v47 = vld [vmem:[%s0 + $0x150] sm:$0xff]
    %v48 = vld [vmem:[%s0 + $0x158] sm:$0xff]
    %v49 = vld [vmem:[%s0 + $0x168] sm:$0xff]
    %v50 = vld [vmem:[%s0 + $0x170] sm:$0xff]
    %v51 = vld [vmem:[%s0 + $0x1b0] sm:$0xff]
    %v52 = vld [vmem:[%s0 + $0x1b8] sm:$0xff]
    %v53 = vld [vmem:[%s0 + $0x1c8] sm:$0xff]
    %v54 = vld [vmem:[%s0 + $0x1d0] sm:$0xff]
    %v55 = vld [vmem:[%s0 + $0x1e0] sm:$0xff]
    %v56 = vld [vmem:[%s0 + $0x1e8] sm:$0xff]
    %v57 = vld [vmem:[%s0 + $0x1f8] sm:$0xff]
    %v58 = vld [vmem:[%s0 + $0x200] sm:$0xff]
    %v59 = vld [vmem:[%s0 + $0x210] sm:$0xff]
    %v60 = vld [vmem:[%s0 + $0x218] sm:$0xff]
    %v61 = vld [vmem:[%s0 + $0x228] sm:$0xff]
    %v62 = vld [vmem:[%s0 + $0x230] sm:$0xff]
    %v63 = vld [vmem:[%s0 + $0x240] sm:$0xff]
    %v64 = vld [vmem:[%s0 + $0x248] sm:$0xff]
    %v65 = vld [vmem:[%s0 + $0x258] sm:$0xff]
    %v66 = vld [vmem:[%s0 + $0x260] sm:$0xff]
    %v67 = vld [vmem:[%s0 + $0x270] sm:$0xff]
    %v68 = vld [vmem:[%s0 + $0x278] sm:$0xff]
    %v69 = vld [vmem:[%s0 + $0x288] sm:$0xff]
    %v70 = vld [vmem:[%s0 + $0x290] sm:$0xff]
    %v71 = vld [vmem:[%s0 + $0x2a0] sm:$0xff]
    %v72 = vld [vmem:[%s0 + $0x2a8] sm:$0xff]
    %v73 = vld [vmem:[%s0 + $0x2b8] sm:$0xff]
    %v74 = vld [vmem:[%s0 + $0x2c0] sm:$0xff]
    %v75 = vld [vmem:[%s0 + $0x2d0] sm:$0xff]
    %v76 = vld [vmem:[%s0 + $0x2d8] sm:$0xff]
    %v77 = vld [vmem:[%s0 + $0x2e8] sm:$0xff]
    %v78 = vld [vmem:[%s0 + $0x2f0] sm:$0xff]
    %v79 = vld [vmem:[%s0 + $0x300] sm:$0xff]
    %v80 = vld [vmem:[%s0 + $0x308] sm:$0xff]
    %v81 = vld [vmem:[%s0 + $0x318] sm:$0xff]
    %v82 = vld [vmem:[%s0 + $0x320] sm:$0xff]
    %v83 = vpack.c.bf16 %v20, %v19
    %v84 = vpack.c.bf16 %v22, %v21
    %v85 = vpack.c.bf16 %v24, %v23
    %v86 = vpack.c.bf16 %v26, %v25
    %v87 = vpack.c.bf16 %v28, %v27
    %v88 = vpack.c.bf16 %v30, %v29
    %v89 = vpack.c.bf16 %v32, %v31
    %v90 = vpack.c.bf16 %v34, %v33
    %v91 = vpack.c.bf16 %v36, %v35
    %v92 = vpack.c.bf16 %v38, %v37
    %v93 = vpack.c.bf16 %v40, %v39
    %v94 = vpack.c.bf16 %v42, %v41
    %v95 = vpack.c.bf16 %v44, %v43
    %v96 = vpack.c.bf16 %v46, %v45
    %v97 = vpack.c.bf16 %v48, %v47
    %v98 = vpack.c.bf16 %v50, %v49
    %v99 = vpack.c.bf16 %v52, %v51
    %v100 = vpack.c.bf16 %v54, %v53
    %v101 = vpack.c.bf16 %v56, %v55
    %v102 = vpack.c.bf16 %v58, %v57
    %v103 = vpack.c.bf16 %v60, %v59
    %v104 = vpack.c.bf16 %v62, %v61
    %v105 = vpack.c.bf16 %v64, %v63
    %v106 = vpack.c.bf16 %v66, %v65
    %v107 = vpack.c.bf16 %v68, %v67
    %v108 = vpack.c.bf16 %v70, %v69
    %v109 = vpack.c.bf16 %v72, %v71
    %v110 = vpack.c.bf16 %v74, %v73
    %v111 = vpack.c.bf16 %v76, %v75
    %v112 = vpack.c.bf16 %v78, %v77
    %v113 = vpack.c.bf16 %v80, %v79
    %v114 = vpack.c.bf16 %v82, %v81
    %v115 = vld [vmem:[%s1] sm:$0xf]
    %v116 = vld [vmem:[%s1 + $0x4] sm:$0xf]
    %v117 = vld [vmem:[%s1 + $0x8] sm:$0xf]
    %v118 = vld [vmem:[%s1 + $0xc] sm:$0xf]
    %v119 = vld [vmem:[%s1 + $0x10] sm:$0xf]
    %v120 = vld [vmem:[%s1 + $0x14] sm:$0xf]
    %v121 = vld [vmem:[%s1 + $0x18] sm:$0xf]
    %v122 = vld [vmem:[%s1 + $0x1c] sm:$0xf]
    %v123 = vld [vmem:[%s1 + $0x20] sm:$0xf]
    %v124 = vld [vmem:[%s1 + $0x24] sm:$0xf]
    %v125 = vld [vmem:[%s1 + $0x28] sm:$0xf]
    %v126 = vld [vmem:[%s1 + $0x2c] sm:$0xf]
    %v127 = vld [vmem:[%s1 + $0x30] sm:$0xf]
    %v128 = vld [vmem:[%s1 + $0x34] sm:$0xf]
    %v129 = vld [vmem:[%s1 + $0x38] sm:$0xf]
    %v130 = vld [vmem:[%s1 + $0x3c] sm:$0xf]
    %v131 = vld [vmem:[%s0 + $0x1] sm:$0xff]
    %v132 = vld [vmem:[%s0 + $0x9] sm:$0xff]
    %v133 = vld [vmem:[%s0 + $0x19] sm:$0xff]
    %v134 = vld [vmem:[%s0 + $0x21] sm:$0xff]
    %v135 = vld [vmem:[%s0 + $0x31] sm:$0xff]
    %v136 = vld [vmem:[%s0 + $0x39] sm:$0xff]
    %v137 = vld [vmem:[%s0 + $0x49] sm:$0xff]
    %v138 = vld [vmem:[%s0 + $0x51] sm:$0xff]
    %v139 = vld [vmem:[%s0 + $0x61] sm:$0xff]
    %v140 = vld [vmem:[%s0 + $0x69] sm:$0xff]
    %v141 = vld [vmem:[%s0 + $0x79] sm:$0xff]
    %v142 = vld [vmem:[%s0 + $0x81] sm:$0xff]
    %v143 = vld [vmem:[%s0 + $0x91] sm:$0xff]
    %v144 = vld [vmem:[%s0 + $0x99] sm:$0xff]
    %v145 = vld [vmem:[%s0 + $0xa9] sm:$0xff]
    %v146 = vld [vmem:[%s0 + $0xb1] sm:$0xff]
    %v147 = vld [vmem:[%s0 + $0xc1] sm:$0xff]
    %v148 = vld [vmem:[%s0 + $0xc9] sm:$0xff]
    %v149 = vld [vmem:[%s0 + $0xd9] sm:$0xff]
    %v150 = vld [vmem:[%s0 + $0xe1] sm:$0xff]
    %v151 = vld [vmem:[%s0 + $0xf1] sm:$0xff]
    %v152 = vld [vmem:[%s0 + $0xf9] sm:$0xff]
    %v153 = vld [vmem:[%s0 + $0x109] sm:$0xff]
    %v154 = vld [vmem:[%s0 + $0x111] sm:$0xff]
    %v155 = vld [vmem:[%s0 + $0x121] sm:$0xff]
    %v156 = vld [vmem:[%s0 + $0x129] sm:$0xff]
    %v157 = vld [vmem:[%s0 + $0x139] sm:$0xff]
    %v158 = vld [vmem:[%s0 + $0x141] sm:$0xff]
    %v159 = vld [vmem:[%s0 + $0x151] sm:$0xff]
    %v160 = vld [vmem:[%s0 + $0x159] sm:$0xff]
    %v161 = vld [vmem:[%s0 + $0x169] sm:$0xff]
    %v162 = vld [vmem:[%s0 + $0x171] sm:$0xff]
    %v163 = vld [vmem:[%s0 + $0x1b1] sm:$0xff]
    %v164 = vld [vmem:[%s0 + $0x1b9] sm:$0xff]
    %v165 = vld [vmem:[%s0 + $0x1c9] sm:$0xff]
    %v166 = vld [vmem:[%s0 + $0x1d1] sm:$0xff]
    %v167 = vld [vmem:[%s0 + $0x1e1] sm:$0xff]
    %v168 = vld [vmem:[%s0 + $0x1e9] sm:$0xff]
    %v169 = vld [vmem:[%s0 + $0x1f9] sm:$0xff]
    %v170 = vld [vmem:[%s0 + $0x201] sm:$0xff]
    %v171 = vld [vmem:[%s0 + $0x211] sm:$0xff]
    %v172 = vld [vmem:[%s0 + $0x219] sm:$0xff]
    %v173 = vld [vmem:[%s0 + $0x229] sm:$0xff]
    %v174 = vld [vmem:[%s0 + $0x231] sm:$0xff]
    %v175 = vld [vmem:[%s0 + $0x241] sm:$0xff]
    %v176 = vld [vmem:[%s0 + $0x249] sm:$0xff]
    %v177 = vld [vmem:[%s0 + $0x259] sm:$0xff]
    %v178 = vld [vmem:[%s0 + $0x261] sm:$0xff]
    %v179 = vld [vmem:[%s0 + $0x271] sm:$0xff]
    %v180 = vld [vmem:[%s0 + $0x279] sm:$0xff]
    %v181 = vld [vmem:[%s0 + $0x289] sm:$0xff]
    %v182 = vld [vmem:[%s0 + $0x291] sm:$0xff]
    %v183 = vld [vmem:[%s0 + $0x2a1] sm:$0xff]
    %v184 = vld [vmem:[%s0 + $0x2a9] sm:$0xff]
    %v185 = vld [vmem:[%s0 + $0x2b9] sm:$0xff]
    %v186 = vld [vmem:[%s0 + $0x2c1] sm:$0xff]
    %v187 = vld [vmem:[%s0 + $0x2d1] sm:$0xff]
    %v188 = vld [vmem:[%s0 + $0x2d9] sm:$0xff]
    %v189 = vld [vmem:[%s0 + $0x2e9] sm:$0xff]
    %v190 = vld [vmem:[%s0 + $0x2f1] sm:$0xff]
    %v191 = vld [vmem:[%s0 + $0x301] sm:$0xff]
    %v192 = vld [vmem:[%s0 + $0x309] sm:$0xff]
    %v193 = vld [vmem:[%s0 + $0x319] sm:$0xff]
    %v194 = vld [vmem:[%s0 + $0x321] sm:$0xff]
    %v195 = vpack.c.bf16 %v132, %v131
    %v196 = vpack.c.bf16 %v134, %v133
    %v197 = vpack.c.bf16 %v136, %v135
    %v198 = vpack.c.bf16 %v138, %v137
    %v199 = vpack.c.bf16 %v140, %v139
    %v200 = vpack.c.bf16 %v142, %v141
    %v201 = vpack.c.bf16 %v144, %v143
    %v202 = vpack.c.bf16 %v146, %v145
    %v203 = vpack.c.bf16 %v148, %v147
    %v204 = vpack.c.bf16 %v150, %v149
    %v205 = vpack.c.bf16 %v152, %v151
    %v206 = vpack.c.bf16 %v154, %v153
    %v207 = vpack.c.bf16 %v156, %v155
    %v208 = vpack.c.bf16 %v158, %v157
    %v209 = vpack.c.bf16 %v160, %v159
    %v210 = vpack.c.bf16 %v162, %v161
    %v211 = vpack.c.bf16 %v164, %v163
    %v212 = vpack.c.bf16 %v166, %v165
    %v213 = vpack.c.bf16 %v168, %v167
    %v214 = vpack.c.bf16 %v170, %v169
    %v215 = vpack.c.bf16 %v172, %v171
    %v216 = vpack.c.bf16 %v174, %v173
    %v217 = vpack.c.bf16 %v176, %v175
    %v218 = vpack.c.bf16 %v178, %v177
    %v219 = vpack.c.bf16 %v180, %v179
    %v220 = vpack.c.bf16 %v182, %v181
    %v221 = vpack.c.bf16 %v184, %v183
    %v222 = vpack.c.bf16 %v186, %v185
    %v223 = vpack.c.bf16 %v188, %v187
    %v224 = vpack.c.bf16 %v190, %v189
    %v225 = vpack.c.bf16 %v192, %v191
    %v226 = vpack.c.bf16 %v194, %v193
    %s227 = scalar_lea.vmem %s1, 64
    %v228 = vld [vmem:[%s227] sm:$0xf]
    %v229 = vld [vmem:[%s227 + $0x4] sm:$0xf]
    %v230 = vld [vmem:[%s227 + $0x8] sm:$0xf]
    %v231 = vld [vmem:[%s227 + $0xc] sm:$0xf]
    %v232 = vld [vmem:[%s227 + $0x10] sm:$0xf]
    %v233 = vld [vmem:[%s227 + $0x14] sm:$0xf]
    %v234 = vld [vmem:[%s227 + $0x18] sm:$0xf]
    %v235 = vld [vmem:[%s227 + $0x1c] sm:$0xf]
    %v236 = vld [vmem:[%s227 + $0x20] sm:$0xf]
    %v237 = vld [vmem:[%s227 + $0x24] sm:$0xf]
    %v238 = vld [vmem:[%s227 + $0x28] sm:$0xf]
    %v239 = vld [vmem:[%s227 + $0x2c] sm:$0xf]
    %v240 = vld [vmem:[%s227 + $0x30] sm:$0xf]
    %v241 = vld [vmem:[%s227 + $0x34] sm:$0xf]
    %v242 = vld [vmem:[%s227 + $0x38] sm:$0xf]
    %v243 = vld [vmem:[%s227 + $0x3c] sm:$0xf]
    %v260 = vunpack.c.l.b16 %v228
    %v261 = vunpack.c.l.b16 %v229
    %v262 = vunpack.c.l.b16 %v230
    %v263 = vunpack.c.l.b16 %v231
    %v264 = vunpack.c.l.b16 %v232
    %v265 = vunpack.c.l.b16 %v233
    %v266 = vunpack.c.l.b16 %v234
    %v267 = vunpack.c.l.b16 %v235
    %v268 = vunpack.c.l.b16 %v236
    %v269 = vunpack.c.l.b16 %v237
    %v270 = vunpack.c.l.b16 %v238
    %v271 = vunpack.c.l.b16 %v239
    %v272 = vunpack.c.l.b16 %v240
    %v273 = vunpack.c.l.b16 %v241
    %v274 = vunpack.c.l.b16 %v242
    %v275 = vunpack.c.l.b16 %v243
    %v276 = vpack.c.b16 %v261, %v260
    %v277 = vpack.c.b16 %v263, %v262
    %v278 = vpack.c.b16 %v265, %v264
    %v279 = vpack.c.b16 %v267, %v266
    %v280 = vpack.c.b16 %v269, %v268
    %v281 = vpack.c.b16 %v271, %v270
    %v282 = vpack.c.b16 %v273, %v272
    %v283 = vpack.c.b16 %v275, %v274
    %292 = vmatprep.subr.bf16.mxu0 0
    %293 = vmatpush1.bf16.msra.mxu0 %v283
    %294 = vmatprep.subr.bf16.mxu0 0
    %295 = vmatpush1.bf16.msra.mxu0 %v282
    %296 = vmatprep.subr.bf16.mxu0 0
    %297 = vmatpush1.bf16.msra.mxu0 %v281
    %298 = vmatprep.subr.bf16.mxu0 0
    %299 = vmatpush1.bf16.msra.mxu0 %v280
    %300 = vmatprep.subr.bf16.mxu0 0
    %301 = vmatpush1.bf16.msra.mxu0 %v279
    %302 = vmatprep.subr.bf16.mxu0 0
    %303 = vmatpush1.bf16.msra.mxu0 %v278
    %304 = vmatprep.subr.bf16.mxu0 0
    %305 = vmatpush1.bf16.msra.mxu0 %v277
    %306 = vmatprep.subr.bf16.mxu0 0
    %307 = vmatpush1.bf16.msra.mxu0 %v276
    %308 = vmatprep.subr.bf16.mxu0 0
    %309 = vmatpush2.bf16.msra.mxu0 0
    %310 = vmatprep.subr.bf16.mxu0 0
    %311 = vmatpush2.bf16.msra.mxu0 0
    %312 = vmatprep.subr.bf16.mxu0 0
    %313 = vmatpush2.bf16.msra.mxu0 0
    %314 = vmatprep.subr.bf16.mxu0 0
    %315 = vmatpush2.bf16.msra.mxu0 0
    %316 = vmatprep.subr.bf16.mxu0 0
    %317 = vmatpush2.bf16.msra.mxu0 0
    %318 = vmatprep.subr.bf16.mxu0 0
    %319 = vmatpush2.bf16.msra.mxu0 0
    %320 = vmatprep.subr.bf16.mxu0 0
    %321 = vmatpush2.bf16.msra.mxu0 0
    %322 = vmatprep.subr.bf16.mxu0 0
    %323 = vmatpush2.bf16.msra.mxu0 0
    %324 = vmatprep.mubr.bf16.mxu0 0
    %325 = vmatmul.mubr.bf16.gmra.mxu0 %v195
    %v326 = vpop.f32.mrf.mxu0
    %v327 = vadd.f32 0.0, %v326
    %v328 = vpop.f32.mrf.mxu0
    %v329 = vpop.f32.mrf.mxu0
    %v330 = vadd.f32 0.0, %v329
    %v331 = vpop.f32.mrf.mxu0
    %332 = vmatprep.mubr.bf16.mxu0 0
    %333 = vmatmul.mubr.bf16.gmra.mxu0 %v196
    %v334 = vpop.f32.mrf.mxu0
    %v335 = vadd.f32 0.0, %v334
    %v336 = vpop.f32.mrf.mxu0
    %v337 = vpop.f32.mrf.mxu0
    %v338 = vadd.f32 0.0, %v337
    %v339 = vpop.f32.mrf.mxu0
    %340 = vmatprep.mubr.bf16.mxu0 0
    %341 = vmatmul.mubr.bf16.gmra.mxu0 %v197
    %v342 = vpop.f32.mrf.mxu0
    %v343 = vadd.f32 0.0, %v342
    %v344 = vpop.f32.mrf.mxu0
    %v345 = vpop.f32.mrf.mxu0
    %v346 = vadd.f32 0.0, %v345
    %v347 = vpop.f32.mrf.mxu0
    %348 = vmatprep.mubr.bf16.mxu0 0
    %349 = vmatmul.mubr.bf16.gmra.mxu0 %v198
    %v350 = vpop.f32.mrf.mxu0
    %v351 = vadd.f32 0.0, %v350
    %v352 = vpop.f32.mrf.mxu0
    %v353 = vpop.f32.mrf.mxu0
    %v354 = vadd.f32 0.0, %v353
    %v355 = vpop.f32.mrf.mxu0
    %356 = vmatprep.mubr.bf16.mxu0 0
    %357 = vmatmul.mubr.bf16.gmra.mxu0 %v199
    %v358 = vpop.f32.mrf.mxu0
    %v359 = vadd.f32 0.0, %v358
    %v360 = vpop.f32.mrf.mxu0
    %v361 = vpop.f32.mrf.mxu0
    %v362 = vadd.f32 0.0, %v361
    %v363 = vpop.f32.mrf.mxu0
    %364 = vmatprep.mubr.bf16.mxu0 0
    %365 = vmatmul.mubr.bf16.gmra.mxu0 %v200
    %v366 = vpop.f32.mrf.mxu0
    %v367 = vadd.f32 0.0, %v366
    %v368 = vpop.f32.mrf.mxu0
    %v369 = vpop.f32.mrf.mxu0
    %v370 = vadd.f32 0.0, %v369
    %v371 = vpop.f32.mrf.mxu0
    %372 = vmatprep.mubr.bf16.mxu0 0
    %373 = vmatmul.mubr.bf16.gmra.mxu0 %v201
    %v374 = vpop.f32.mrf.mxu0
    %v375 = vadd.f32 0.0, %v374
    %v376 = vpop.f32.mrf.mxu0
    %v377 = vpop.f32.mrf.mxu0
    %v378 = vadd.f32 0.0, %v377
    %v379 = vpop.f32.mrf.mxu0
    %380 = vmatprep.mubr.bf16.mxu0 0
    %381 = vmatmul.mubr.bf16.gmra.mxu0 %v202
    %v382 = vpop.f32.mrf.mxu0
    %v383 = vadd.f32 0.0, %v382
    %v384 = vpop.f32.mrf.mxu0
    %v385 = vpop.f32.mrf.mxu0
    %v386 = vadd.f32 0.0, %v385
    %v387 = vpop.f32.mrf.mxu0
    %388 = vmatprep.mubr.bf16.mxu0 0
    %389 = vmatmul.mubr.bf16.gmra.mxu0 %v203
    %v390 = vpop.f32.mrf.mxu0
    %v391 = vadd.f32 0.0, %v390
    %v392 = vpop.f32.mrf.mxu0
    %v393 = vpop.f32.mrf.mxu0
    %v394 = vadd.f32 0.0, %v393
    %v395 = vpop.f32.mrf.mxu0
    %396 = vmatprep.mubr.bf16.mxu0 0
    %397 = vmatmul.mubr.bf16.gmra.mxu0 %v204
    %v398 = vpop.f32.mrf.mxu0
    %v399 = vadd.f32 0.0, %v398
    %v400 = vpop.f32.mrf.mxu0
    %v401 = vpop.f32.mrf.mxu0
    %v402 = vadd.f32 0.0, %v401
    %v403 = vpop.f32.mrf.mxu0
    %404 = vmatprep.mubr.bf16.mxu0 0
    %405 = vmatmul.mubr.bf16.gmra.mxu0 %v205
    %v406 = vpop.f32.mrf.mxu0
    %v407 = vadd.f32 0.0, %v406
    %v408 = vpop.f32.mrf.mxu0
    %v409 = vpop.f32.mrf.mxu0
    %v410 = vadd.f32 0.0, %v409
    %v411 = vpop.f32.mrf.mxu0
    %412 = vmatprep.mubr.bf16.mxu0 0
    %413 = vmatmul.mubr.bf16.gmra.mxu0 %v206
    %v414 = vpop.f32.mrf.mxu0
    %v415 = vadd.f32 0.0, %v414
    %v416 = vpop.f32.mrf.mxu0
    %v417 = vpop.f32.mrf.mxu0
    %v418 = vadd.f32 0.0, %v417
    %v419 = vpop.f32.mrf.mxu0
    %420 = vmatprep.mubr.bf16.mxu0 0
    %421 = vmatmul.mubr.bf16.gmra.mxu0 %v207
    %v422 = vpop.f32.mrf.mxu0
    %v423 = vadd.f32 0.0, %v422
    %v424 = vpop.f32.mrf.mxu0
    %v425 = vpop.f32.mrf.mxu0
    %v426 = vadd.f32 0.0, %v425
    %v427 = vpop.f32.mrf.mxu0
    %428 = vmatprep.mubr.bf16.mxu0 0
    %429 = vmatmul.mubr.bf16.gmra.mxu0 %v208
    %v430 = vpop.f32.mrf.mxu0
    %v431 = vadd.f32 0.0, %v430
    %v432 = vpop.f32.mrf.mxu0
    %v433 = vpop.f32.mrf.mxu0
    %v434 = vadd.f32 0.0, %v433
    %v435 = vpop.f32.mrf.mxu0
    %436 = vmatprep.mubr.bf16.mxu0 0
    %437 = vmatmul.mubr.bf16.gmra.mxu0 %v209
    %v438 = vpop.f32.mrf.mxu0
    %v439 = vadd.f32 0.0, %v438
    %v440 = vpop.f32.mrf.mxu0
    %v441 = vpop.f32.mrf.mxu0
    %v442 = vadd.f32 0.0, %v441
    %v443 = vpop.f32.mrf.mxu0
    %444 = vmatprep.mubr.bf16.mxu0 0
    %445 = vmatmul.mubr.bf16.gmra.mxu0 %v210
    %v446 = vpop.f32.mrf.mxu0
    %v447 = vadd.f32 0.0, %v446
    %v448 = vpop.f32.mrf.mxu0
    %v449 = vpop.f32.mrf.mxu0
    %v450 = vadd.f32 0.0, %v449
    %v451 = vpop.f32.mrf.mxu0
    %452 = vmatprep.mubr.bf16.mxu0 0
    %453 = vmatmul.mubr.bf16.gmra.mxu0 %v211
    %v454 = vpop.f32.mrf.mxu0
    %v455 = vadd.f32 0.0, %v454
    %v456 = vpop.f32.mrf.mxu0
    %v457 = vpop.f32.mrf.mxu0
    %v458 = vadd.f32 0.0, %v457
    %v459 = vpop.f32.mrf.mxu0
    %460 = vmatprep.mubr.bf16.mxu0 0
    %461 = vmatmul.mubr.bf16.gmra.mxu0 %v212
    %v462 = vpop.f32.mrf.mxu0
    %v463 = vadd.f32 0.0, %v462
    %v464 = vpop.f32.mrf.mxu0
    %v465 = vpop.f32.mrf.mxu0
    %v466 = vadd.f32 0.0, %v465
    %v467 = vpop.f32.mrf.mxu0
    %468 = vmatprep.mubr.bf16.mxu0 0
    %469 = vmatmul.mubr.bf16.gmra.mxu0 %v213
    %v470 = vpop.f32.mrf.mxu0
    %v471 = vadd.f32 0.0, %v470
    %v472 = vpop.f32.mrf.mxu0
    %v473 = vpop.f32.mrf.mxu0
    %v474 = vadd.f32 0.0, %v473
    %v475 = vpop.f32.mrf.mxu0
    %476 = vmatprep.mubr.bf16.mxu0 0
    %477 = vmatmul.mubr.bf16.gmra.mxu0 %v214
    %v478 = vpop.f32.mrf.mxu0
    %v479 = vadd.f32 0.0, %v478
    %v480 = vpop.f32.mrf.mxu0
    %v481 = vpop.f32.mrf.mxu0
    %v482 = vadd.f32 0.0, %v481
    %v483 = vpop.f32.mrf.mxu0
    %484 = vmatprep.mubr.bf16.mxu0 0
    %485 = vmatmul.mubr.bf16.gmra.mxu0 %v215
    %v486 = vpop.f32.mrf.mxu0
    %v487 = vadd.f32 0.0, %v486
    %v488 = vpop.f32.mrf.mxu0
    %v489 = vpop.f32.mrf.mxu0
    %v490 = vadd.f32 0.0, %v489
    %v491 = vpop.f32.mrf.mxu0
    %492 = vmatprep.mubr.bf16.mxu0 0
    %493 = vmatmul.mubr.bf16.gmra.mxu0 %v216
    %v494 = vpop.f32.mrf.mxu0
    %v495 = vadd.f32 0.0, %v494
    %v496 = vpop.f32.mrf.mxu0
    %v497 = vpop.f32.mrf.mxu0
    %v498 = vadd.f32 0.0, %v497
    %v499 = vpop.f32.mrf.mxu0
    %500 = vmatprep.mubr.bf16.mxu0 0
    %501 = vmatmul.mubr.bf16.gmra.mxu0 %v217
    %v502 = vpop.f32.mrf.mxu0
    %v503 = vadd.f32 0.0, %v502
    %v504 = vpop.f32.mrf.mxu0
    %v505 = vpop.f32.mrf.mxu0
    %v506 = vadd.f32 0.0, %v505
    %v507 = vpop.f32.mrf.mxu0
    %508 = vmatprep.mubr.bf16.mxu0 0
    %509 = vmatmul.mubr.bf16.gmra.mxu0 %v218
    %v510 = vpop.f32.mrf.mxu0
    %v511 = vadd.f32 0.0, %v510
    %v512 = vpop.f32.mrf.mxu0
    %v513 = vpop.f32.mrf.mxu0
    %v514 = vadd.f32 0.0, %v513
    %v515 = vpop.f32.mrf.mxu0
    %516 = vmatprep.mubr.bf16.mxu0 0
    %517 = vmatmul.mubr.bf16.gmra.mxu0 %v219
    %v518 = vpop.f32.mrf.mxu0
    %v519 = vadd.f32 0.0, %v518
    %v520 = vpop.f32.mrf.mxu0
    %v521 = vpop.f32.mrf.mxu0
    %v522 = vadd.f32 0.0, %v521
    %v523 = vpop.f32.mrf.mxu0
    %524 = vmatprep.mubr.bf16.mxu0 0
    %525 = vmatmul.mubr.bf16.gmra.mxu0 %v220
    %v526 = vpop.f32.mrf.mxu0
    %v527 = vadd.f32 0.0, %v526
    %v528 = vpop.f32.mrf.mxu0
    %v529 = vpop.f32.mrf.mxu0
    %v530 = vadd.f32 0.0, %v529
    %v531 = vpop.f32.mrf.mxu0
    %532 = vmatprep.mubr.bf16.mxu0 0
    %533 = vmatmul.mubr.bf16.gmra.mxu0 %v221
    %v534 = vpop.f32.mrf.mxu0
    %v535 = vadd.f32 0.0, %v534
    %v536 = vpop.f32.mrf.mxu0
    %v537 = vpop.f32.mrf.mxu0
    %v538 = vadd.f32 0.0, %v537
    %v539 = vpop.f32.mrf.mxu0
    %540 = vmatprep.mubr.bf16.mxu0 0
    %541 = vmatmul.mubr.bf16.gmra.mxu0 %v222
    %v542 = vpop.f32.mrf.mxu0
    %v543 = vadd.f32 0.0, %v542
    %v544 = vpop.f32.mrf.mxu0
    %v545 = vpop.f32.mrf.mxu0
    %v546 = vadd.f32 0.0, %v545
    %v547 = vpop.f32.mrf.mxu0
    %548 = vmatprep.mubr.bf16.mxu0 0
    %549 = vmatmul.mubr.bf16.gmra.mxu0 %v223
    %v550 = vpop.f32.mrf.mxu0
    %v551 = vadd.f32 0.0, %v550
    %v552 = vpop.f32.mrf.mxu0
    %v553 = vpop.f32.mrf.mxu0
    %v554 = vadd.f32 0.0, %v553
    %v555 = vpop.f32.mrf.mxu0
    %556 = vmatprep.mubr.bf16.mxu0 0
    %557 = vmatmul.mubr.bf16.gmra.mxu0 %v224
    %v558 = vpop.f32.mrf.mxu0
    %v559 = vadd.f32 0.0, %v558
    %v560 = vpop.f32.mrf.mxu0
    %v561 = vpop.f32.mrf.mxu0
    %v562 = vadd.f32 0.0, %v561
    %v563 = vpop.f32.mrf.mxu0
    %564 = vmatprep.mubr.bf16.mxu0 0
    %565 = vmatmul.mubr.bf16.gmra.mxu0 %v225
    %v566 = vpop.f32.mrf.mxu0
    %v567 = vadd.f32 0.0, %v566
    %v568 = vpop.f32.mrf.mxu0
    %v569 = vpop.f32.mrf.mxu0
    %v570 = vadd.f32 0.0, %v569
    %v571 = vpop.f32.mrf.mxu0
    %572 = vmatprep.mubr.bf16.mxu0 0
    %573 = vmatmul.mubr.bf16.gmra.mxu0 %v226
    %v574 = vpop.f32.mrf.mxu0
    %v575 = vadd.f32 0.0, %v574
    %v576 = vpop.f32.mrf.mxu0
    %v577 = vpop.f32.mrf.mxu0
    %v578 = vadd.f32 0.0, %v577
    %v579 = vpop.f32.mrf.mxu0
    %580 = vdwg.mxu0
    %v597 = vunpack.c.l.b16 %v115
    %v598 = vunpack.c.l.b16 %v116
    %v599 = vunpack.c.l.b16 %v117
    %v600 = vunpack.c.l.b16 %v118
    %v601 = vunpack.c.l.b16 %v119
    %v602 = vunpack.c.l.b16 %v120
    %v603 = vunpack.c.l.b16 %v121
    %v604 = vunpack.c.l.b16 %v122
    %v605 = vunpack.c.l.b16 %v123
    %v606 = vunpack.c.l.b16 %v124
    %v607 = vunpack.c.l.b16 %v125
    %v608 = vunpack.c.l.b16 %v126
    %v609 = vunpack.c.l.b16 %v127
    %v610 = vunpack.c.l.b16 %v128
    %v611 = vunpack.c.l.b16 %v129
    %v612 = vunpack.c.l.b16 %v130
    %v613 = vpack.c.b16 %v598, %v597
    %v614 = vpack.c.b16 %v600, %v599
    %v615 = vpack.c.b16 %v602, %v601
    %v616 = vpack.c.b16 %v604, %v603
    %v617 = vpack.c.b16 %v606, %v605
    %v618 = vpack.c.b16 %v608, %v607
    %v619 = vpack.c.b16 %v610, %v609
    %v620 = vpack.c.b16 %v612, %v611
    %629 = vmatprep.subr.bf16.mxu0 0
    %630 = vmatpush1.bf16.msra.mxu0 %v620
    %631 = vmatprep.subr.bf16.mxu0 0
    %632 = vmatpush1.bf16.msra.mxu0 %v619
    %633 = vmatprep.subr.bf16.mxu0 0
    %634 = vmatpush1.bf16.msra.mxu0 %v618
    %635 = vmatprep.subr.bf16.mxu0 0
    %636 = vmatpush1.bf16.msra.mxu0 %v617
    %637 = vmatprep.subr.bf16.mxu0 0
    %638 = vmatpush1.bf16.msra.mxu0 %v616
    %639 = vmatprep.subr.bf16.mxu0 0
    %640 = vmatpush1.bf16.msra.mxu0 %v615
    %641 = vmatprep.subr.bf16.mxu0 0
    %642 = vmatpush1.bf16.msra.mxu0 %v614
    %643 = vmatprep.subr.bf16.mxu0 0
    %644 = vmatpush1.bf16.msra.mxu0 %v613
    %645 = vmatprep.subr.bf16.mxu0 0
    %646 = vmatpush2.bf16.msra.mxu0 0
    %647 = vmatprep.subr.bf16.mxu0 0
    %648 = vmatpush2.bf16.msra.mxu0 0
    %649 = vmatprep.subr.bf16.mxu0 0
    %650 = vmatpush2.bf16.msra.mxu0 0
    %651 = vmatprep.subr.bf16.mxu0 0
    %652 = vmatpush2.bf16.msra.mxu0 0
    %653 = vmatprep.subr.bf16.mxu0 0
    %654 = vmatpush2.bf16.msra.mxu0 0
    %655 = vmatprep.subr.bf16.mxu0 0
    %656 = vmatpush2.bf16.msra.mxu0 0
    %657 = vmatprep.subr.bf16.mxu0 0
    %658 = vmatpush2.bf16.msra.mxu0 0
    %659 = vmatprep.subr.bf16.mxu0 0
    %660 = vmatpush2.bf16.msra.mxu0 0
    %661 = vmatprep.mubr.bf16.mxu0 0
    %662 = vmatmul.mubr.bf16.gmra.mxu0 %v83
    %v663 = vpop.f32.mrf.mxu0
    %v664 = vadd.f32 %v327, %v663
    %v665 = vpop.f32.mrf.mxu0
    %v666 = vpop.f32.mrf.mxu0
    %v667 = vadd.f32 %v330, %v666
    %v668 = vpop.f32.mrf.mxu0
    %669 = vmatprep.mubr.bf16.mxu0 0
    %670 = vmatmul.mubr.bf16.gmra.mxu0 %v84
    %v671 = vpop.f32.mrf.mxu0
    %v672 = vadd.f32 %v335, %v671
    %v673 = vpop.f32.mrf.mxu0
    %v674 = vpop.f32.mrf.mxu0
    %v675 = vadd.f32 %v338, %v674
    %v676 = vpop.f32.mrf.mxu0
    %677 = vmatprep.mubr.bf16.mxu0 0
    %678 = vmatmul.mubr.bf16.gmra.mxu0 %v85
    %v679 = vpop.f32.mrf.mxu0
    %v680 = vadd.f32 %v343, %v679
    %v681 = vpop.f32.mrf.mxu0
    %v682 = vpop.f32.mrf.mxu0
    %v683 = vadd.f32 %v346, %v682
    %v684 = vpop.f32.mrf.mxu0
    %685 = vmatprep.mubr.bf16.mxu0 0
    %686 = vmatmul.mubr.bf16.gmra.mxu0 %v86
    %v687 = vpop.f32.mrf.mxu0
    %v688 = vadd.f32 %v351, %v687
    %v689 = vpop.f32.mrf.mxu0
    %v690 = vpop.f32.mrf.mxu0
    %v691 = vadd.f32 %v354, %v690
    %v692 = vpop.f32.mrf.mxu0
    %693 = vmatprep.mubr.bf16.mxu0 0
    %694 = vmatmul.mubr.bf16.gmra.mxu0 %v87
    %v695 = vpop.f32.mrf.mxu0
    %v696 = vadd.f32 %v359, %v695
    %v697 = vpop.f32.mrf.mxu0
    %v698 = vpop.f32.mrf.mxu0
    %v699 = vadd.f32 %v362, %v698
    %v700 = vpop.f32.mrf.mxu0
    %701 = vmatprep.mubr.bf16.mxu0 0
    %702 = vmatmul.mubr.bf16.gmra.mxu0 %v88
    %v703 = vpop.f32.mrf.mxu0
    %v704 = vadd.f32 %v367, %v703
    %v705 = vpop.f32.mrf.mxu0
    %v706 = vpop.f32.mrf.mxu0
    %v707 = vadd.f32 %v370, %v706
    %v708 = vpop.f32.mrf.mxu0
    %709 = vmatprep.mubr.bf16.mxu0 0
    %710 = vmatmul.mubr.bf16.gmra.mxu0 %v89
    %v711 = vpop.f32.mrf.mxu0
    %v712 = vadd.f32 %v375, %v711
    %v713 = vpop.f32.mrf.mxu0
    %v714 = vpop.f32.mrf.mxu0
    %v715 = vadd.f32 %v378, %v714
    %v716 = vpop.f32.mrf.mxu0
    %717 = vmatprep.mubr.bf16.mxu0 0
    %718 = vmatmul.mubr.bf16.gmra.mxu0 %v90
    %v719 = vpop.f32.mrf.mxu0
    %v720 = vadd.f32 %v383, %v719
    %v721 = vpop.f32.mrf.mxu0
    %v722 = vpop.f32.mrf.mxu0
    %v723 = vadd.f32 %v386, %v722
    %v724 = vpop.f32.mrf.mxu0
    %725 = vmatprep.mubr.bf16.mxu0 0
    %726 = vmatmul.mubr.bf16.gmra.mxu0 %v91
    %v727 = vpop.f32.mrf.mxu0
    %v728 = vadd.f32 %v391, %v727
    %v729 = vpop.f32.mrf.mxu0
    %v730 = vpop.f32.mrf.mxu0
    %v731 = vadd.f32 %v394, %v730
    %v732 = vpop.f32.mrf.mxu0
    %733 = vmatprep.mubr.bf16.mxu0 0
    %734 = vmatmul.mubr.bf16.gmra.mxu0 %v92
    %v735 = vpop.f32.mrf.mxu0
    %v736 = vadd.f32 %v399, %v735
    %v737 = vpop.f32.mrf.mxu0
    %v738 = vpop.f32.mrf.mxu0
    %v739 = vadd.f32 %v402, %v738
    %v740 = vpop.f32.mrf.mxu0
    %741 = vmatprep.mubr.bf16.mxu0 0
    %742 = vmatmul.mubr.bf16.gmra.mxu0 %v93
    %v743 = vpop.f32.mrf.mxu0
    %v744 = vadd.f32 %v407, %v743
    %v745 = vpop.f32.mrf.mxu0
    %v746 = vpop.f32.mrf.mxu0
    %v747 = vadd.f32 %v410, %v746
    %v748 = vpop.f32.mrf.mxu0
    %749 = vmatprep.mubr.bf16.mxu0 0
    %750 = vmatmul.mubr.bf16.gmra.mxu0 %v94
    %v751 = vpop.f32.mrf.mxu0
    %v752 = vadd.f32 %v415, %v751
    %v753 = vpop.f32.mrf.mxu0
    %v754 = vpop.f32.mrf.mxu0
    %v755 = vadd.f32 %v418, %v754
    %v756 = vpop.f32.mrf.mxu0
    %757 = vmatprep.mubr.bf16.mxu0 0
    %758 = vmatmul.mubr.bf16.gmra.mxu0 %v95
    %v759 = vpop.f32.mrf.mxu0
    %v760 = vadd.f32 %v423, %v759
    %v761 = vpop.f32.mrf.mxu0
    %v762 = vpop.f32.mrf.mxu0
    %v763 = vadd.f32 %v426, %v762
    %v764 = vpop.f32.mrf.mxu0
    %765 = vmatprep.mubr.bf16.mxu0 0
    %766 = vmatmul.mubr.bf16.gmra.mxu0 %v96
    %v767 = vpop.f32.mrf.mxu0
    %v768 = vadd.f32 %v431, %v767
    %v769 = vpop.f32.mrf.mxu0
    %v770 = vpop.f32.mrf.mxu0
    %v771 = vadd.f32 %v434, %v770
    %v772 = vpop.f32.mrf.mxu0
    %773 = vmatprep.mubr.bf16.mxu0 0
    %774 = vmatmul.mubr.bf16.gmra.mxu0 %v97
    %v775 = vpop.f32.mrf.mxu0
    %v776 = vadd.f32 %v439, %v775
    %v777 = vpop.f32.mrf.mxu0
    %v778 = vpop.f32.mrf.mxu0
    %v779 = vadd.f32 %v442, %v778
    %v780 = vpop.f32.mrf.mxu0
    %781 = vmatprep.mubr.bf16.mxu0 0
    %782 = vmatmul.mubr.bf16.gmra.mxu0 %v98
    %v783 = vpop.f32.mrf.mxu0
    %v784 = vadd.f32 %v447, %v783
    %v785 = vpop.f32.mrf.mxu0
    %v786 = vpop.f32.mrf.mxu0
    %v787 = vadd.f32 %v450, %v786
    %v788 = vpop.f32.mrf.mxu0
    %789 = vmatprep.mubr.bf16.mxu0 0
    %790 = vmatmul.mubr.bf16.gmra.mxu0 %v99
    %v791 = vpop.f32.mrf.mxu0
    %v792 = vadd.f32 %v455, %v791
    %v793 = vpop.f32.mrf.mxu0
    %v794 = vpop.f32.mrf.mxu0
    %v795 = vadd.f32 %v458, %v794
    %v796 = vpop.f32.mrf.mxu0
    %797 = vmatprep.mubr.bf16.mxu0 0
    %798 = vmatmul.mubr.bf16.gmra.mxu0 %v100
    %v799 = vpop.f32.mrf.mxu0
    %v800 = vadd.f32 %v463, %v799
    %v801 = vpop.f32.mrf.mxu0
    %v802 = vpop.f32.mrf.mxu0
    %v803 = vadd.f32 %v466, %v802
    %v804 = vpop.f32.mrf.mxu0
    %805 = vmatprep.mubr.bf16.mxu0 0
    %806 = vmatmul.mubr.bf16.gmra.mxu0 %v101
    %v807 = vpop.f32.mrf.mxu0
    %v808 = vadd.f32 %v471, %v807
    %v809 = vpop.f32.mrf.mxu0
    %v810 = vpop.f32.mrf.mxu0
    %v811 = vadd.f32 %v474, %v810
    %v812 = vpop.f32.mrf.mxu0
    %813 = vmatprep.mubr.bf16.mxu0 0
    %814 = vmatmul.mubr.bf16.gmra.mxu0 %v102
    %v815 = vpop.f32.mrf.mxu0
    %v816 = vadd.f32 %v479, %v815
    %v817 = vpop.f32.mrf.mxu0
    %v818 = vpop.f32.mrf.mxu0
    %v819 = vadd.f32 %v482, %v818
    %v820 = vpop.f32.mrf.mxu0
    %821 = vmatprep.mubr.bf16.mxu0 0
    %822 = vmatmul.mubr.bf16.gmra.mxu0 %v103
    %v823 = vpop.f32.mrf.mxu0
    %v824 = vadd.f32 %v487, %v823
    %v825 = vpop.f32.mrf.mxu0
    %v826 = vpop.f32.mrf.mxu0
    %v827 = vadd.f32 %v490, %v826
    %v828 = vpop.f32.mrf.mxu0
    %829 = vmatprep.mubr.bf16.mxu0 0
    %830 = vmatmul.mubr.bf16.gmra.mxu0 %v104
    %v831 = vpop.f32.mrf.mxu0
    %v832 = vadd.f32 %v495, %v831
    %v833 = vpop.f32.mrf.mxu0
    %v834 = vpop.f32.mrf.mxu0
    %v835 = vadd.f32 %v498, %v834
    %v836 = vpop.f32.mrf.mxu0
    %837 = vmatprep.mubr.bf16.mxu0 0
    %838 = vmatmul.mubr.bf16.gmra.mxu0 %v105
    %v839 = vpop.f32.mrf.mxu0
    %v840 = vadd.f32 %v503, %v839
    %v841 = vpop.f32.mrf.mxu0
    %v842 = vpop.f32.mrf.mxu0
    %v843 = vadd.f32 %v506, %v842
    %v844 = vpop.f32.mrf.mxu0
    %845 = vmatprep.mubr.bf16.mxu0 0
    %846 = vmatmul.mubr.bf16.gmra.mxu0 %v106
    %v847 = vpop.f32.mrf.mxu0
    %v848 = vadd.f32 %v511, %v847
    %v849 = vpop.f32.mrf.mxu0
    %v850 = vpop.f32.mrf.mxu0
    %v851 = vadd.f32 %v514, %v850
    %v852 = vpop.f32.mrf.mxu0
    %853 = vmatprep.mubr.bf16.mxu0 0
    %854 = vmatmul.mubr.bf16.gmra.mxu0 %v107
    %v855 = vpop.f32.mrf.mxu0
    %v856 = vadd.f32 %v519, %v855
    %v857 = vpop.f32.mrf.mxu0
    %v858 = vpop.f32.mrf.mxu0
    %v859 = vadd.f32 %v522, %v858
    %v860 = vpop.f32.mrf.mxu0
    %861 = vmatprep.mubr.bf16.mxu0 0
    %862 = vmatmul.mubr.bf16.gmra.mxu0 %v108
    %v863 = vpop.f32.mrf.mxu0
    %v864 = vadd.f32 %v527, %v863
    %v865 = vpop.f32.mrf.mxu0
    %v866 = vpop.f32.mrf.mxu0
    %v867 = vadd.f32 %v530, %v866
    %v868 = vpop.f32.mrf.mxu0
    %869 = vmatprep.mubr.bf16.mxu0 0
    %870 = vmatmul.mubr.bf16.gmra.mxu0 %v109
    %v871 = vpop.f32.mrf.mxu0
    %v872 = vadd.f32 %v535, %v871
    %v873 = vpop.f32.mrf.mxu0
    %v874 = vpop.f32.mrf.mxu0
    %v875 = vadd.f32 %v538, %v874
    %v876 = vpop.f32.mrf.mxu0
    %877 = vmatprep.mubr.bf16.mxu0 0
    %878 = vmatmul.mubr.bf16.gmra.mxu0 %v110
    %v879 = vpop.f32.mrf.mxu0
    %v880 = vadd.f32 %v543, %v879
    %v881 = vpop.f32.mrf.mxu0
    %v882 = vpop.f32.mrf.mxu0
    %v883 = vadd.f32 %v546, %v882
    %v884 = vpop.f32.mrf.mxu0
    %885 = vmatprep.mubr.bf16.mxu0 0
    %886 = vmatmul.mubr.bf16.gmra.mxu0 %v111
    %v887 = vpop.f32.mrf.mxu0
    %v888 = vadd.f32 %v551, %v887
    %v889 = vpop.f32.mrf.mxu0
    %v890 = vpop.f32.mrf.mxu0
    %v891 = vadd.f32 %v554, %v890
    %v892 = vpop.f32.mrf.mxu0
    %893 = vmatprep.mubr.bf16.mxu0 0
    %894 = vmatmul.mubr.bf16.gmra.mxu0 %v112
    %v895 = vpop.f32.mrf.mxu0
    %v896 = vadd.f32 %v559, %v895
    %v897 = vpop.f32.mrf.mxu0
    %v898 = vpop.f32.mrf.mxu0
    %v899 = vadd.f32 %v562, %v898
    %v900 = vpop.f32.mrf.mxu0
    %901 = vmatprep.mubr.bf16.mxu0 0
    %902 = vmatmul.mubr.bf16.gmra.mxu0 %v113
    %v903 = vpop.f32.mrf.mxu0
    %v904 = vadd.f32 %v567, %v903
    %v905 = vpop.f32.mrf.mxu0
    %v906 = vpop.f32.mrf.mxu0
    %v907 = vadd.f32 %v570, %v906
    %v908 = vpop.f32.mrf.mxu0
    %909 = vmatprep.mubr.bf16.mxu0 0
    %910 = vmatmul.mubr.bf16.gmra.mxu0 %v114
    %v911 = vpop.f32.mrf.mxu0
    %v912 = vadd.f32 %v575, %v911
    %v913 = vpop.f32.mrf.mxu0
    %v914 = vpop.f32.mrf.mxu0
    %v915 = vadd.f32 %v578, %v914
    %v916 = vpop.f32.mrf.mxu0
    %917 = vdwg.mxu0
    %v918 = vld [vmem:[%s0 + $0x2] sm:$0xff]
    %v919 = vld [vmem:[%s0 + $0xa] sm:$0xff]
    %v920 = vld [vmem:[%s0 + $0x1a] sm:$0xff]
    %v921 = vld [vmem:[%s0 + $0x22] sm:$0xff]
    %v922 = vld [vmem:[%s0 + $0x32] sm:$0xff]
    %v923 = vld [vmem:[%s0 + $0x3a] sm:$0xff]
    %v924 = vld [vmem:[%s0 + $0x4a] sm:$0xff]
    %v925 = vld [vmem:[%s0 + $0x52] sm:$0xff]
    %v926 = vld [vmem:[%s0 + $0x62] sm:$0xff]
    %v927 = vld [vmem:[%s0 + $0x6a] sm:$0xff]
    %v928 = vld [vmem:[%s0 + $0x7a] sm:$0xff]
    %v929 = vld [vmem:[%s0 + $0x82] sm:$0xff]
    %v930 = vld [vmem:[%s0 + $0x92] sm:$0xff]
    %v931 = vld [vmem:[%s0 + $0x9a] sm:$0xff]
    %v932 = vld [vmem:[%s0 + $0xaa] sm:$0xff]
    %v933 = vld [vmem:[%s0 + $0xb2] sm:$0xff]
    %v934 = vld [vmem:[%s0 + $0xc2] sm:$0xff]
    %v935 = vld [vmem:[%s0 + $0xca] sm:$0xff]
    %v936 = vld [vmem:[%s0 + $0xda] sm:$0xff]
    %v937 = vld [vmem:[%s0 + $0xe2] sm:$0xff]
    %v938 = vld [vmem:[%s0 + $0xf2] sm:$0xff]
    %v939 = vld [vmem:[%s0 + $0xfa] sm:$0xff]
    %v940 = vld [vmem:[%s0 + $0x10a] sm:$0xff]
    %v941 = vld [vmem:[%s0 + $0x112] sm:$0xff]
    %v942 = vld [vmem:[%s0 + $0x122] sm:$0xff]
    %v943 = vld [vmem:[%s0 + $0x12a] sm:$0xff]
    %v944 = vld [vmem:[%s0 + $0x13a] sm:$0xff]
    %v945 = vld [vmem:[%s0 + $0x142] sm:$0xff]
    %v946 = vld [vmem:[%s0 + $0x152] sm:$0xff]
    %v947 = vld [vmem:[%s0 + $0x15a] sm:$0xff]
    %v948 = vld [vmem:[%s0 + $0x16a] sm:$0xff]
    %v949 = vld [vmem:[%s0 + $0x172] sm:$0xff]
    %v950 = vld [vmem:[%s0 + $0x1b2] sm:$0xff]
    %v951 = vld [vmem:[%s0 + $0x1ba] sm:$0xff]
    %v952 = vld [vmem:[%s0 + $0x1ca] sm:$0xff]
    %v953 = vld [vmem:[%s0 + $0x1d2] sm:$0xff]
    %v954 = vld [vmem:[%s0 + $0x1e2] sm:$0xff]
    %v955 = vld [vmem:[%s0 + $0x1ea] sm:$0xff]
    %v956 = vld [vmem:[%s0 + $0x1fa] sm:$0xff]
    %v957 = vld [vmem:[%s0 + $0x202] sm:$0xff]
    %v958 = vld [vmem:[%s0 + $0x212] sm:$0xff]
    %v959 = vld [vmem:[%s0 + $0x21a] sm:$0xff]
    %v960 = vld [vmem:[%s0 + $0x22a] sm:$0xff]
    %v961 = vld [vmem:[%s0 + $0x232] sm:$0xff]
    %v962 = vld [vmem:[%s0 + $0x242] sm:$0xff]
    %v963 = vld [vmem:[%s0 + $0x24a] sm:$0xff]
    %v964 = vld [vmem:[%s0 + $0x25a] sm:$0xff]
    %v965 = vld [vmem:[%s0 + $0x262] sm:$0xff]
    %v966 = vld [vmem:[%s0 + $0x272] sm:$0xff]
    %v967 = vld [vmem:[%s0 + $0x27a] sm:$0xff]
    %v968 = vld [vmem:[%s0 + $0x28a] sm:$0xff]
    %v969 = vld [vmem:[%s0 + $0x292] sm:$0xff]
    %v970 = vld [vmem:[%s0 + $0x2a2] sm:$0xff]
    %v971 = vld [vmem:[%s0 + $0x2aa] sm:$0xff]
    %v972 = vld [vmem:[%s0 + $0x2ba] sm:$0xff]
    %v973 = vld [vmem:[%s0 + $0x2c2] sm:$0xff]
    %v974 = vld [vmem:[%s0 + $0x2d2] sm:$0xff]
    %v975 = vld [vmem:[%s0 + $0x2da] sm:$0xff]
    %v976 = vld [vmem:[%s0 + $0x2ea] sm:$0xff]
    %v977 = vld [vmem:[%s0 + $0x2f2] sm:$0xff]
    %v978 = vld [vmem:[%s0 + $0x302] sm:$0xff]
    %v979 = vld [vmem:[%s0 + $0x30a] sm:$0xff]
    %v980 = vld [vmem:[%s0 + $0x31a] sm:$0xff]
    %v981 = vld [vmem:[%s0 + $0x322] sm:$0xff]
    %v982 = vpack.c.bf16 %v919, %v918
    %v983 = vpack.c.bf16 %v921, %v920
    %v984 = vpack.c.bf16 %v923, %v922
    %v985 = vpack.c.bf16 %v925, %v924
    %v986 = vpack.c.bf16 %v927, %v926
    %v987 = vpack.c.bf16 %v929, %v928
    %v988 = vpack.c.bf16 %v931, %v930
    %v989 = vpack.c.bf16 %v933, %v932
    %v990 = vpack.c.bf16 %v935, %v934
    %v991 = vpack.c.bf16 %v937, %v936
    %v992 = vpack.c.bf16 %v939, %v938
    %v993 = vpack.c.bf16 %v941, %v940
    %v994 = vpack.c.bf16 %v943, %v942
    %v995 = vpack.c.bf16 %v945, %v944
    %v996 = vpack.c.bf16 %v947, %v946
    %v997 = vpack.c.bf16 %v949, %v948
    %v998 = vpack.c.bf16 %v951, %v950
    %v999 = vpack.c.bf16 %v953, %v952
    %v1000 = vpack.c.bf16 %v955, %v954
    %v1001 = vpack.c.bf16 %v957, %v956
    %v1002 = vpack.c.bf16 %v959, %v958
    %v1003 = vpack.c.bf16 %v961, %v960
    %v1004 = vpack.c.bf16 %v963, %v962
    %v1005 = vpack.c.bf16 %v965, %v964
    %v1006 = vpack.c.bf16 %v967, %v966
    %v1007 = vpack.c.bf16 %v969, %v968
    %v1008 = vpack.c.bf16 %v971, %v970
    %v1009 = vpack.c.bf16 %v973, %v972
    %v1010 = vpack.c.bf16 %v975, %v974
    %v1011 = vpack.c.bf16 %v977, %v976
    %v1012 = vpack.c.bf16 %v979, %v978
    %v1013 = vpack.c.bf16 %v981, %v980
    %s1014 = scalar_lea.vmem %s1, 128
    %v1015 = vld [vmem:[%s1014] sm:$0xf]
    %v1016 = vld [vmem:[%s1014 + $0x4] sm:$0xf]
    %v1017 = vld [vmem:[%s1014 + $0x8] sm:$0xf]
    %v1018 = vld [vmem:[%s1014 + $0xc] sm:$0xf]
    %v1019 = vld [vmem:[%s1014 + $0x10] sm:$0xf]
    %v1020 = vld [vmem:[%s1014 + $0x14] sm:$0xf]
    %v1021 = vld [vmem:[%s1014 + $0x18] sm:$0xf]
    %v1022 = vld [vmem:[%s1014 + $0x1c] sm:$0xf]
    %v1023 = vld [vmem:[%s1014 + $0x20] sm:$0xf]
    %v1024 = vld [vmem:[%s1014 + $0x24] sm:$0xf]
    %v1025 = vld [vmem:[%s1014 + $0x28] sm:$0xf]
    %v1026 = vld [vmem:[%s1014 + $0x2c] sm:$0xf]
    %v1027 = vld [vmem:[%s1014 + $0x30] sm:$0xf]
    %v1028 = vld [vmem:[%s1014 + $0x34] sm:$0xf]
    %v1029 = vld [vmem:[%s1014 + $0x38] sm:$0xf]
    %v1030 = vld [vmem:[%s1014 + $0x3c] sm:$0xf]
    %v1047 = vunpack.c.l.b16 %v1015
    %v1048 = vunpack.c.l.b16 %v1016
    %v1049 = vunpack.c.l.b16 %v1017
    %v1050 = vunpack.c.l.b16 %v1018
    %v1051 = vunpack.c.l.b16 %v1019
    %v1052 = vunpack.c.l.b16 %v1020
    %v1053 = vunpack.c.l.b16 %v1021
    %v1054 = vunpack.c.l.b16 %v1022
    %v1055 = vunpack.c.l.b16 %v1023
    %v1056 = vunpack.c.l.b16 %v1024
    %v1057 = vunpack.c.l.b16 %v1025
    %v1058 = vunpack.c.l.b16 %v1026
    %v1059 = vunpack.c.l.b16 %v1027
    %v1060 = vunpack.c.l.b16 %v1028
    %v1061 = vunpack.c.l.b16 %v1029
    %v1062 = vunpack.c.l.b16 %v1030
    %v1063 = vpack.c.b16 %v1048, %v1047
    %v1064 = vpack.c.b16 %v1050, %v1049
    %v1065 = vpack.c.b16 %v1052, %v1051
    %v1066 = vpack.c.b16 %v1054, %v1053
    %v1067 = vpack.c.b16 %v1056, %v1055
    %v1068 = vpack.c.b16 %v1058, %v1057
    %v1069 = vpack.c.b16 %v1060, %v1059
    %v1070 = vpack.c.b16 %v1062, %v1061
    %1079 = vmatprep.subr.bf16.mxu0 0
    %1080 = vmatpush1.bf16.msra.mxu0 %v1070
    %1081 = vmatprep.subr.bf16.mxu0 0
    %1082 = vmatpush1.bf16.msra.mxu0 %v1069
    %1083 = vmatprep.subr.bf16.mxu0 0
    %1084 = vmatpush1.bf16.msra.mxu0 %v1068
    %1085 = vmatprep.subr.bf16.mxu0 0
    %1086 = vmatpush1.bf16.msra.mxu0 %v1067
    %1087 = vmatprep.subr.bf16.mxu0 0
    %1088 = vmatpush1.bf16.msra.mxu0 %v1066
    %1089 = vmatprep.subr.bf16.mxu0 0
    %1090 = vmatpush1.bf16.msra.mxu0 %v1065
    %1091 = vmatprep.subr.bf16.mxu0 0
    %1092 = vmatpush1.bf16.msra.mxu0 %v1064
    %1093 = vmatprep.subr.bf16.mxu0 0
    %1094 = vmatpush1.bf16.msra.mxu0 %v1063
    %1095 = vmatprep.subr.bf16.mxu0 0
    %1096 = vmatpush2.bf16.msra.mxu0 0
    %1097 = vmatprep.subr.bf16.mxu0 0
    %1098 = vmatpush2.bf16.msra.mxu0 0
    %1099 = vmatprep.subr.bf16.mxu0 0
    %1100 = vmatpush2.bf16.msra.mxu0 0
    %1101 = vmatprep.subr.bf16.mxu0 0
    %1102 = vmatpush2.bf16.msra.mxu0 0
    %1103 = vmatprep.subr.bf16.mxu0 0
    %1104 = vmatpush2.bf16.msra.mxu0 0
    %1105 = vmatprep.subr.bf16.mxu0 0
    %1106 = vmatpush2.bf16.msra.mxu0 0
    %1107 = vmatprep.subr.bf16.mxu0 0
    %1108 = vmatpush2.bf16.msra.mxu0 0
    %1109 = vmatprep.subr.bf16.mxu0 0
    %1110 = vmatpush2.bf16.msra.mxu0 0
    %1111 = vmatprep.mubr.bf16.mxu0 0
    %1112 = vmatmul.mubr.bf16.gmra.mxu0 %v982
    %v1113 = vpop.f32.mrf.mxu0
    %v1114 = vadd.f32 0.0, %v1113
    %v1115 = vpop.f32.mrf.mxu0
    %v1116 = vpop.f32.mrf.mxu0
    %v1117 = vadd.f32 0.0, %v1116
    %v1118 = vpop.f32.mrf.mxu0
    %1119 = vmatprep.mubr.bf16.mxu0 0
    %1120 = vmatmul.mubr.bf16.gmra.mxu0 %v983
    %v1121 = vpop.f32.mrf.mxu0
    %v1122 = vadd.f32 0.0, %v1121
    %v1123 = vpop.f32.mrf.mxu0
    %v1124 = vpop.f32.mrf.mxu0
    %v1125 = vadd.f32 0.0, %v1124
    %v1126 = vpop.f32.mrf.mxu0
    %1127 = vmatprep.mubr.bf16.mxu0 0
    %1128 = vmatmul.mubr.bf16.gmra.mxu0 %v984
    %v1129 = vpop.f32.mrf.mxu0
    %v1130 = vadd.f32 0.0, %v1129
    %v1131 = vpop.f32.mrf.mxu0
    %v1132 = vpop.f32.mrf.mxu0
    %v1133 = vadd.f32 0.0, %v1132
    %v1134 = vpop.f32.mrf.mxu0
    %1135 = vmatprep.mubr.bf16.mxu0 0
    %1136 = vmatmul.mubr.bf16.gmra.mxu0 %v985
    %v1137 = vpop.f32.mrf.mxu0
    %v1138 = vadd.f32 0.0, %v1137
    %v1139 = vpop.f32.mrf.mxu0
    %v1140 = vpop.f32.mrf.mxu0
    %v1141 = vadd.f32 0.0, %v1140
    %v1142 = vpop.f32.mrf.mxu0
    %1143 = vmatprep.mubr.bf16.mxu0 0
    %1144 = vmatmul.mubr.bf16.gmra.mxu0 %v986
    %v1145 = vpop.f32.mrf.mxu0
    %v1146 = vadd.f32 0.0, %v1145
    %v1147 = vpop.f32.mrf.mxu0
    %v1148 = vpop.f32.mrf.mxu0
    %v1149 = vadd.f32 0.0, %v1148
    %v1150 = vpop.f32.mrf.mxu0
    %1151 = vmatprep.mubr.bf16.mxu0 0
    %1152 = vmatmul.mubr.bf16.gmra.mxu0 %v987
    %v1153 = vpop.f32.mrf.mxu0
    %v1154 = vadd.f32 0.0, %v1153
    %v1155 = vpop.f32.mrf.mxu0
    %v1156 = vpop.f32.mrf.mxu0
    %v1157 = vadd.f32 0.0, %v1156
    %v1158 = vpop.f32.mrf.mxu0
    %1159 = vmatprep.mubr.bf16.mxu0 0
    %1160 = vmatmul.mubr.bf16.gmra.mxu0 %v988
    %v1161 = vpop.f32.mrf.mxu0
    %v1162 = vadd.f32 0.0, %v1161
    %v1163 = vpop.f32.mrf.mxu0
    %v1164 = vpop.f32.mrf.mxu0
    %v1165 = vadd.f32 0.0, %v1164
    %v1166 = vpop.f32.mrf.mxu0
    %1167 = vmatprep.mubr.bf16.mxu0 0
    %1168 = vmatmul.mubr.bf16.gmra.mxu0 %v989
    %v1169 = vpop.f32.mrf.mxu0
    %v1170 = vadd.f32 0.0, %v1169
    %v1171 = vpop.f32.mrf.mxu0
    %v1172 = vpop.f32.mrf.mxu0
    %v1173 = vadd.f32 0.0, %v1172
    %v1174 = vpop.f32.mrf.mxu0
    %1175 = vmatprep.mubr.bf16.mxu0 0
    %1176 = vmatmul.mubr.bf16.gmra.mxu0 %v990
    %v1177 = vpop.f32.mrf.mxu0
    %v1178 = vadd.f32 0.0, %v1177
    %v1179 = vpop.f32.mrf.mxu0
    %v1180 = vpop.f32.mrf.mxu0
    %v1181 = vadd.f32 0.0, %v1180
    %v1182 = vpop.f32.mrf.mxu0
    %1183 = vmatprep.mubr.bf16.mxu0 0
    %1184 = vmatmul.mubr.bf16.gmra.mxu0 %v991
    %v1185 = vpop.f32.mrf.mxu0
    %v1186 = vadd.f32 0.0, %v1185
    %v1187 = vpop.f32.mrf.mxu0
    %v1188 = vpop.f32.mrf.mxu0
    %v1189 = vadd.f32 0.0, %v1188
    %v1190 = vpop.f32.mrf.mxu0
    %1191 = vmatprep.mubr.bf16.mxu0 0
    %1192 = vmatmul.mubr.bf16.gmra.mxu0 %v992
    %v1193 = vpop.f32.mrf.mxu0
    %v1194 = vadd.f32 0.0, %v1193
    %v1195 = vpop.f32.mrf.mxu0
    %v1196 = vpop.f32.mrf.mxu0
    %v1197 = vadd.f32 0.0, %v1196
    %v1198 = vpop.f32.mrf.mxu0
    %1199 = vmatprep.mubr.bf16.mxu0 0
    %1200 = vmatmul.mubr.bf16.gmra.mxu0 %v993
    %v1201 = vpop.f32.mrf.mxu0
    %v1202 = vadd.f32 0.0, %v1201
    %v1203 = vpop.f32.mrf.mxu0
    %v1204 = vpop.f32.mrf.mxu0
    %v1205 = vadd.f32 0.0, %v1204
    %v1206 = vpop.f32.mrf.mxu0
    %1207 = vmatprep.mubr.bf16.mxu0 0
    %1208 = vmatmul.mubr.bf16.gmra.mxu0 %v994
    %v1209 = vpop.f32.mrf.mxu0
    %v1210 = vadd.f32 0.0, %v1209
    %v1211 = vpop.f32.mrf.mxu0
    %v1212 = vpop.f32.mrf.mxu0
    %v1213 = vadd.f32 0.0, %v1212
    %v1214 = vpop.f32.mrf.mxu0
    %1215 = vmatprep.mubr.bf16.mxu0 0
    %1216 = vmatmul.mubr.bf16.gmra.mxu0 %v995
    %v1217 = vpop.f32.mrf.mxu0
    %v1218 = vadd.f32 0.0, %v1217
    %v1219 = vpop.f32.mrf.mxu0
    %v1220 = vpop.f32.mrf.mxu0
    %v1221 = vadd.f32 0.0, %v1220
    %v1222 = vpop.f32.mrf.mxu0
    %1223 = vmatprep.mubr.bf16.mxu0 0
    %1224 = vmatmul.mubr.bf16.gmra.mxu0 %v996
    %v1225 = vpop.f32.mrf.mxu0
    %v1226 = vadd.f32 0.0, %v1225
    %v1227 = vpop.f32.mrf.mxu0
    %v1228 = vpop.f32.mrf.mxu0
    %v1229 = vadd.f32 0.0, %v1228
    %v1230 = vpop.f32.mrf.mxu0
    %1231 = vmatprep.mubr.bf16.mxu0 0
    %1232 = vmatmul.mubr.bf16.gmra.mxu0 %v997
    %v1233 = vpop.f32.mrf.mxu0
    %v1234 = vadd.f32 0.0, %v1233
    %v1235 = vpop.f32.mrf.mxu0
    %v1236 = vpop.f32.mrf.mxu0
    %v1237 = vadd.f32 0.0, %v1236
    %v1238 = vpop.f32.mrf.mxu0
    %1239 = vmatprep.mubr.bf16.mxu0 0
    %1240 = vmatmul.mubr.bf16.gmra.mxu0 %v998
    %v1241 = vpop.f32.mrf.mxu0
    %v1242 = vadd.f32 0.0, %v1241
    %v1243 = vpop.f32.mrf.mxu0
    %v1244 = vpop.f32.mrf.mxu0
    %v1245 = vadd.f32 0.0, %v1244
    %v1246 = vpop.f32.mrf.mxu0
    %1247 = vmatprep.mubr.bf16.mxu0 0
    %1248 = vmatmul.mubr.bf16.gmra.mxu0 %v999
    %v1249 = vpop.f32.mrf.mxu0
    %v1250 = vadd.f32 0.0, %v1249
    %v1251 = vpop.f32.mrf.mxu0
    %v1252 = vpop.f32.mrf.mxu0
    %v1253 = vadd.f32 0.0, %v1252
    %v1254 = vpop.f32.mrf.mxu0
    %1255 = vmatprep.mubr.bf16.mxu0 0
    %1256 = vmatmul.mubr.bf16.gmra.mxu0 %v1000
    %v1257 = vpop.f32.mrf.mxu0
    %v1258 = vadd.f32 0.0, %v1257
    %v1259 = vpop.f32.mrf.mxu0
    %v1260 = vpop.f32.mrf.mxu0
    %v1261 = vadd.f32 0.0, %v1260
    %v1262 = vpop.f32.mrf.mxu0
    %1263 = vmatprep.mubr.bf16.mxu0 0
    %1264 = vmatmul.mubr.bf16.gmra.mxu0 %v1001
    %v1265 = vpop.f32.mrf.mxu0
    %v1266 = vadd.f32 0.0, %v1265
    %v1267 = vpop.f32.mrf.mxu0
    %v1268 = vpop.f32.mrf.mxu0
    %v1269 = vadd.f32 0.0, %v1268
    %v1270 = vpop.f32.mrf.mxu0
    %1271 = vmatprep.mubr.bf16.mxu0 0
    %1272 = vmatmul.mubr.bf16.gmra.mxu0 %v1002
    %v1273 = vpop.f32.mrf.mxu0
    %v1274 = vadd.f32 0.0, %v1273
    %v1275 = vpop.f32.mrf.mxu0
    %v1276 = vpop.f32.mrf.mxu0
    %v1277 = vadd.f32 0.0, %v1276
    %v1278 = vpop.f32.mrf.mxu0
    %1279 = vmatprep.mubr.bf16.mxu0 0
    %1280 = vmatmul.mubr.bf16.gmra.mxu0 %v1003
    %v1281 = vpop.f32.mrf.mxu0
    %v1282 = vadd.f32 0.0, %v1281
    %v1283 = vpop.f32.mrf.mxu0
    %v1284 = vpop.f32.mrf.mxu0
    %v1285 = vadd.f32 0.0, %v1284
    %v1286 = vpop.f32.mrf.mxu0
    %1287 = vmatprep.mubr.bf16.mxu0 0
    %1288 = vmatmul.mubr.bf16.gmra.mxu0 %v1004
    %v1289 = vpop.f32.mrf.mxu0
    %v1290 = vadd.f32 0.0, %v1289
    %v1291 = vpop.f32.mrf.mxu0
    %v1292 = vpop.f32.mrf.mxu0
    %v1293 = vadd.f32 0.0, %v1292
    %v1294 = vpop.f32.mrf.mxu0
    %1295 = vmatprep.mubr.bf16.mxu0 0
    %1296 = vmatmul.mubr.bf16.gmra.mxu0 %v1005
    %v1297 = vpop.f32.mrf.mxu0
    %v1298 = vadd.f32 0.0, %v1297
    %v1299 = vpop.f32.mrf.mxu0
    %v1300 = vpop.f32.mrf.mxu0
    %v1301 = vadd.f32 0.0, %v1300
    %v1302 = vpop.f32.mrf.mxu0
    %1303 = vmatprep.mubr.bf16.mxu0 0
    %1304 = vmatmul.mubr.bf16.gmra.mxu0 %v1006
    %v1305 = vpop.f32.mrf.mxu0
    %v1306 = vadd.f32 0.0, %v1305
    %v1307 = vpop.f32.mrf.mxu0
    %v1308 = vpop.f32.mrf.mxu0
    %v1309 = vadd.f32 0.0, %v1308
    %v1310 = vpop.f32.mrf.mxu0
    %1311 = vmatprep.mubr.bf16.mxu0 0
    %1312 = vmatmul.mubr.bf16.gmra.mxu0 %v1007
    %v1313 = vpop.f32.mrf.mxu0
    %v1314 = vadd.f32 0.0, %v1313
    %v1315 = vpop.f32.mrf.mxu0
    %v1316 = vpop.f32.mrf.mxu0
    %v1317 = vadd.f32 0.0, %v1316
    %v1318 = vpop.f32.mrf.mxu0
    %1319 = vmatprep.mubr.bf16.mxu0 0
    %1320 = vmatmul.mubr.bf16.gmra.mxu0 %v1008
    %v1321 = vpop.f32.mrf.mxu0
    %v1322 = vadd.f32 0.0, %v1321
    %v1323 = vpop.f32.mrf.mxu0
    %v1324 = vpop.f32.mrf.mxu0
    %v1325 = vadd.f32 0.0, %v1324
    %v1326 = vpop.f32.mrf.mxu0
    %1327 = vmatprep.mubr.bf16.mxu0 0
    %1328 = vmatmul.mubr.bf16.gmra.mxu0 %v1009
    %v1329 = vpop.f32.mrf.mxu0
    %v1330 = vadd.f32 0.0, %v1329
    %v1331 = vpop.f32.mrf.mxu0
    %v1332 = vpop.f32.mrf.mxu0
    %v1333 = vadd.f32 0.0, %v1332
    %v1334 = vpop.f32.mrf.mxu0
    %1335 = vmatprep.mubr.bf16.mxu0 0
    %1336 = vmatmul.mubr.bf16.gmra.mxu0 %v1010
    %v1337 = vpop.f32.mrf.mxu0
    %v1338 = vadd.f32 0.0, %v1337
    %v1339 = vpop.f32.mrf.mxu0
    %v1340 = vpop.f32.mrf.mxu0
    %v1341 = vadd.f32 0.0, %v1340
    %v1342 = vpop.f32.mrf.mxu0
    %1343 = vmatprep.mubr.bf16.mxu0 0
    %1344 = vmatmul.mubr.bf16.gmra.mxu0 %v1011
    %v1345 = vpop.f32.mrf.mxu0
    %v1346 = vadd.f32 0.0, %v1345
    %v1347 = vpop.f32.mrf.mxu0
    %v1348 = vpop.f32.mrf.mxu0
    %v1349 = vadd.f32 0.0, %v1348
    %v1350 = vpop.f32.mrf.mxu0
    %1351 = vmatprep.mubr.bf16.mxu0 0
    %1352 = vmatmul.mubr.bf16.gmra.mxu0 %v1012
    %v1353 = vpop.f32.mrf.mxu0
    %v1354 = vadd.f32 0.0, %v1353
    %v1355 = vpop.f32.mrf.mxu0
    %v1356 = vpop.f32.mrf.mxu0
    %v1357 = vadd.f32 0.0, %v1356
    %v1358 = vpop.f32.mrf.mxu0
    %1359 = vmatprep.mubr.bf16.mxu0 0
    %1360 = vmatmul.mubr.bf16.gmra.mxu0 %v1013
    %v1361 = vpop.f32.mrf.mxu0
    %v1362 = vadd.f32 0.0, %v1361
    %v1363 = vpop.f32.mrf.mxu0
    %v1364 = vpop.f32.mrf.mxu0
    %v1365 = vadd.f32 0.0, %v1364
    %v1366 = vpop.f32.mrf.mxu0
    %1367 = vdwg.mxu0
    %v1368 = vadd.f32 %v664, %v1114
    %v1369 = vadd.f32 %v667, %v1117
    %v1370 = vadd.f32 %v672, %v1122
    %v1371 = vadd.f32 %v675, %v1125
    %v1372 = vadd.f32 %v680, %v1130
    %v1373 = vadd.f32 %v683, %v1133
    %v1374 = vadd.f32 %v688, %v1138
    %v1375 = vadd.f32 %v691, %v1141
    %v1376 = vadd.f32 %v696, %v1146
    %v1377 = vadd.f32 %v699, %v1149
    %v1378 = vadd.f32 %v704, %v1154
    %v1379 = vadd.f32 %v707, %v1157
    %v1380 = vadd.f32 %v712, %v1162
    %v1381 = vadd.f32 %v715, %v1165
    %v1382 = vadd.f32 %v720, %v1170
    %v1383 = vadd.f32 %v723, %v1173
    %v1384 = vadd.f32 %v728, %v1178
    %v1385 = vadd.f32 %v731, %v1181
    %v1386 = vadd.f32 %v736, %v1186
    %v1387 = vadd.f32 %v739, %v1189
    %v1388 = vadd.f32 %v744, %v1194
    %v1389 = vadd.f32 %v747, %v1197
    %v1390 = vadd.f32 %v752, %v1202
    %v1391 = vadd.f32 %v755, %v1205
    %v1392 = vadd.f32 %v760, %v1210
    %v1393 = vadd.f32 %v763, %v1213
    %v1394 = vadd.f32 %v768, %v1218
    %v1395 = vadd.f32 %v771, %v1221
    %v1396 = vadd.f32 %v776, %v1226
    %v1397 = vadd.f32 %v779, %v1229
    %v1398 = vadd.f32 %v784, %v1234
    %v1399 = vadd.f32 %v787, %v1237
    %v1400 = vadd.f32 %v792, %v1242
    %v1401 = vadd.f32 %v795, %v1245
    %v1402 = vadd.f32 %v800, %v1250
    %v1403 = vadd.f32 %v803, %v1253
    %v1404 = vadd.f32 %v808, %v1258
    %v1405 = vadd.f32 %v811, %v1261
    %v1406 = vadd.f32 %v816, %v1266
    %v1407 = vadd.f32 %v819, %v1269
    %v1408 = vadd.f32 %v824, %v1274
    %v1409 = vadd.f32 %v827, %v1277
    %v1410 = vadd.f32 %v832, %v1282
    %v1411 = vadd.f32 %v835, %v1285
    %v1412 = vadd.f32 %v840, %v1290
    %v1413 = vadd.f32 %v843, %v1293
    %v1414 = vadd.f32 %v848, %v1298
    %v1415 = vadd.f32 %v851, %v1301
    %v1416 = vadd.f32 %v856, %v1306
    %v1417 = vadd.f32 %v859, %v1309
    %v1418 = vadd.f32 %v864, %v1314
    %v1419 = vadd.f32 %v867, %v1317
    %v1420 = vadd.f32 %v872, %v1322
    %v1421 = vadd.f32 %v875, %v1325
    %v1422 = vadd.f32 %v880, %v1330
    %v1423 = vadd.f32 %v883, %v1333
    %v1424 = vadd.f32 %v888, %v1338
    %v1425 = vadd.f32 %v891, %v1341
    %v1426 = vadd.f32 %v896, %v1346
    %v1427 = vadd.f32 %v899, %v1349
    %v1428 = vadd.f32 %v904, %v1354
    %v1429 = vadd.f32 %v907, %v1357
    %v1430 = vadd.f32 %v912, %v1362
    %v1431 = vadd.f32 %v915, %v1365
    %s1432 = scalar_lea.vmem %s0, 24
    %v1433 = vld [vmem:[%s1432] sm:$0xff]
    %v1434 = vld [vmem:[%s1432 + $0x8] sm:$0xff]
    %v1435 = vld [vmem:[%s1432 + $0x18] sm:$0xff]
    %v1436 = vld [vmem:[%s1432 + $0x20] sm:$0xff]
    %v1437 = vld [vmem:[%s1432 + $0x30] sm:$0xff]
    %v1438 = vld [vmem:[%s1432 + $0x38] sm:$0xff]
    %v1439 = vld [vmem:[%s1432 + $0x48] sm:$0xff]
    %v1440 = vld [vmem:[%s1432 + $0x50] sm:$0xff]
    %v1441 = vld [vmem:[%s1432 + $0x60] sm:$0xff]
    %v1442 = vld [vmem:[%s1432 + $0x68] sm:$0xff]
    %v1443 = vld [vmem:[%s1432 + $0x78] sm:$0xff]
    %v1444 = vld [vmem:[%s1432 + $0x80] sm:$0xff]
    %v1445 = vld [vmem:[%s1432 + $0x90] sm:$0xff]
    %v1446 = vld [vmem:[%s1432 + $0x98] sm:$0xff]
    %v1447 = vld [vmem:[%s1432 + $0xa8] sm:$0xff]
    %v1448 = vld [vmem:[%s1432 + $0xb0] sm:$0xff]
    %v1449 = vld [vmem:[%s1432 + $0xc0] sm:$0xff]
    %v1450 = vld [vmem:[%s1432 + $0xc8] sm:$0xff]
    %v1451 = vld [vmem:[%s1432 + $0xd8] sm:$0xff]
    %v1452 = vld [vmem:[%s1432 + $0xe0] sm:$0xff]
    %v1453 = vld [vmem:[%s1432 + $0xf0] sm:$0xff]
    %v1454 = vld [vmem:[%s1432 + $0xf8] sm:$0xff]
    %v1455 = vld [vmem:[%s1432 + $0x108] sm:$0xff]
    %v1456 = vld [vmem:[%s1432 + $0x110] sm:$0xff]
    %v1457 = vld [vmem:[%s1432 + $0x120] sm:$0xff]
    %v1458 = vld [vmem:[%s1432 + $0x128] sm:$0xff]
    %v1459 = vld [vmem:[%s1432 + $0x138] sm:$0xff]
    %v1460 = vld [vmem:[%s1432 + $0x140] sm:$0xff]
    %v1461 = vld [vmem:[%s1432 + $0x150] sm:$0xff]
    %v1462 = vld [vmem:[%s1432 + $0x158] sm:$0xff]
    %v1463 = vld [vmem:[%s1432 + $0x168] sm:$0xff]
    %v1464 = vld [vmem:[%s1432 + $0x170] sm:$0xff]
    %v1465 = vld [vmem:[%s1432 + $0x1b0] sm:$0xff]
    %v1466 = vld [vmem:[%s1432 + $0x1b8] sm:$0xff]
    %v1467 = vld [vmem:[%s1432 + $0x1c8] sm:$0xff]
    %v1468 = vld [vmem:[%s1432 + $0x1d0] sm:$0xff]
    %v1469 = vld [vmem:[%s1432 + $0x1e0] sm:$0xff]
    %v1470 = vld [vmem:[%s1432 + $0x1e8] sm:$0xff]
    %v1471 = vld [vmem:[%s1432 + $0x1f8] sm:$0xff]
    %v1472 = vld [vmem:[%s1432 + $0x200] sm:$0xff]
    %v1473 = vld [vmem:[%s1432 + $0x210] sm:$0xff]
    %v1474 = vld [vmem:[%s1432 + $0x218] sm:$0xff]
    %v1475 = vld [vmem:[%s1432 + $0x228] sm:$0xff]
    %v1476 = vld [vmem:[%s1432 + $0x230] sm:$0xff]
    %v1477 = vld [vmem:[%s1432 + $0x240] sm:$0xff]
    %v1478 = vld [vmem:[%s1432 + $0x248] sm:$0xff]
    %v1479 = vld [vmem:[%s1432 + $0x258] sm:$0xff]
    %v1480 = vld [vmem:[%s1432 + $0x260] sm:$0xff]
    %v1481 = vld [vmem:[%s1432 + $0x270] sm:$0xff]
    %v1482 = vld [vmem:[%s1432 + $0x278] sm:$0xff]
    %v1483 = vld [vmem:[%s1432 + $0x288] sm:$0xff]
    %v1484 = vld [vmem:[%s1432 + $0x290] sm:$0xff]
    %v1485 = vld [vmem:[%s1432 + $0x2a0] sm:$0xff]
    %v1486 = vld [vmem:[%s1432 + $0x2a8] sm:$0xff]
    %v1487 = vld [vmem:[%s1432 + $0x2b8] sm:$0xff]
    %v1488 = vld [vmem:[%s1432 + $0x2c0] sm:$0xff]
    %v1489 = vld [vmem:[%s1432 + $0x2d0] sm:$0xff]
    %v1490 = vld [vmem:[%s1432 + $0x2d8] sm:$0xff]
    %v1491 = vld [vmem:[%s1432 + $0x2e8] sm:$0xff]
    %v1492 = vld [vmem:[%s1432 + $0x2f0] sm:$0xff]
    %v1493 = vld [vmem:[%s1432 + $0x300] sm:$0xff]
    %v1494 = vld [vmem:[%s1432 + $0x308] sm:$0xff]
    %v1495 = vld [vmem:[%s1432 + $0x318] sm:$0xff]
    %v1496 = vld [vmem:[%s1432 + $0x320] sm:$0xff]
    %v1497 = vpack.c.bf16 %v1434, %v1433
    %v1498 = vpack.c.bf16 %v1436, %v1435
    %v1499 = vpack.c.bf16 %v1438, %v1437
    %v1500 = vpack.c.bf16 %v1440, %v1439
    %v1501 = vpack.c.bf16 %v1442, %v1441
    %v1502 = vpack.c.bf16 %v1444, %v1443
    %v1503 = vpack.c.bf16 %v1446, %v1445
    %v1504 = vpack.c.bf16 %v1448, %v1447
    %v1505 = vpack.c.bf16 %v1450, %v1449
    %v1506 = vpack.c.bf16 %v1452, %v1451
    %v1507 = vpack.c.bf16 %v1454, %v1453
    %v1508 = vpack.c.bf16 %v1456, %v1455
    %v1509 = vpack.c.bf16 %v1458, %v1457
    %v1510 = vpack.c.bf16 %v1460, %v1459
    %v1511 = vpack.c.bf16 %v1462, %v1461
    %v1512 = vpack.c.bf16 %v1464, %v1463
    %v1513 = vpack.c.bf16 %v1466, %v1465
    %v1514 = vpack.c.bf16 %v1468, %v1467
    %v1515 = vpack.c.bf16 %v1470, %v1469
    %v1516 = vpack.c.bf16 %v1472, %v1471
    %v1517 = vpack.c.bf16 %v1474, %v1473
    %v1518 = vpack.c.bf16 %v1476, %v1475
    %v1519 = vpack.c.bf16 %v1478, %v1477
    %v1520 = vpack.c.bf16 %v1480, %v1479
    %v1521 = vpack.c.bf16 %v1482, %v1481
    %v1522 = vpack.c.bf16 %v1484, %v1483
    %v1523 = vpack.c.bf16 %v1486, %v1485
    %v1524 = vpack.c.bf16 %v1488, %v1487
    %v1525 = vpack.c.bf16 %v1490, %v1489
    %v1526 = vpack.c.bf16 %v1492, %v1491
    %v1527 = vpack.c.bf16 %v1494, %v1493
    %v1528 = vpack.c.bf16 %v1496, %v1495
    %s1529 = scalar_lea.vmem %s1, 192
    %v1530 = vld [vmem:[%s1529] sm:$0xf]
    %v1531 = vld [vmem:[%s1529 + $0x4] sm:$0xf]
    %v1532 = vld [vmem:[%s1529 + $0x8] sm:$0xf]
    %v1533 = vld [vmem:[%s1529 + $0xc] sm:$0xf]
    %v1534 = vld [vmem:[%s1529 + $0x10] sm:$0xf]
    %v1535 = vld [vmem:[%s1529 + $0x14] sm:$0xf]
    %v1536 = vld [vmem:[%s1529 + $0x18] sm:$0xf]
    %v1537 = vld [vmem:[%s1529 + $0x1c] sm:$0xf]
    %v1538 = vld [vmem:[%s1529 + $0x20] sm:$0xf]
    %v1539 = vld [vmem:[%s1529 + $0x24] sm:$0xf]
    %v1540 = vld [vmem:[%s1529 + $0x28] sm:$0xf]
    %v1541 = vld [vmem:[%s1529 + $0x2c] sm:$0xf]
    %v1542 = vld [vmem:[%s1529 + $0x30] sm:$0xf]
    %v1543 = vld [vmem:[%s1529 + $0x34] sm:$0xf]
    %v1544 = vld [vmem:[%s1529 + $0x38] sm:$0xf]
    %v1545 = vld [vmem:[%s1529 + $0x3c] sm:$0xf]
    %v1562 = vunpack.c.l.b16 %v1530
    %v1563 = vunpack.c.l.b16 %v1531
    %v1564 = vunpack.c.l.b16 %v1532
    %v1565 = vunpack.c.l.b16 %v1533
    %v1566 = vunpack.c.l.b16 %v1534
    %v1567 = vunpack.c.l.b16 %v1535
    %v1568 = vunpack.c.l.b16 %v1536
    %v1569 = vunpack.c.l.b16 %v1537
    %v1570 = vunpack.c.l.b16 %v1538
    %v1571 = vunpack.c.l.b16 %v1539
    %v1572 = vunpack.c.l.b16 %v1540
    %v1573 = vunpack.c.l.b16 %v1541
    %v1574 = vunpack.c.l.b16 %v1542
    %v1575 = vunpack.c.l.b16 %v1543
    %v1576 = vunpack.c.l.b16 %v1544
    %v1577 = vunpack.c.l.b16 %v1545
    %v1578 = vpack.c.b16 %v1563, %v1562
    %v1579 = vpack.c.b16 %v1565, %v1564
    %v1580 = vpack.c.b16 %v1567, %v1566
    %v1581 = vpack.c.b16 %v1569, %v1568
    %v1582 = vpack.c.b16 %v1571, %v1570
    %v1583 = vpack.c.b16 %v1573, %v1572
    %v1584 = vpack.c.b16 %v1575, %v1574
    %v1585 = vpack.c.b16 %v1577, %v1576
    %1594 = vmatprep.subr.bf16.mxu0 0
    %1595 = vmatpush1.bf16.msra.mxu0 %v1585
    %1596 = vmatprep.subr.bf16.mxu0 0
    %1597 = vmatpush1.bf16.msra.mxu0 %v1584
    %1598 = vmatprep.subr.bf16.mxu0 0
    %1599 = vmatpush1.bf16.msra.mxu0 %v1583
    %1600 = vmatprep.subr.bf16.mxu0 0
    %1601 = vmatpush1.bf16.msra.mxu0 %v1582
    %1602 = vmatprep.subr.bf16.mxu0 0
    %1603 = vmatpush1.bf16.msra.mxu0 %v1581
    %1604 = vmatprep.subr.bf16.mxu0 0
    %1605 = vmatpush1.bf16.msra.mxu0 %v1580
    %1606 = vmatprep.subr.bf16.mxu0 0
    %1607 = vmatpush1.bf16.msra.mxu0 %v1579
    %1608 = vmatprep.subr.bf16.mxu0 0
    %1609 = vmatpush1.bf16.msra.mxu0 %v1578
    %1610 = vmatprep.subr.bf16.mxu0 0
    %1611 = vmatpush2.bf16.msra.mxu0 0
    %1612 = vmatprep.subr.bf16.mxu0 0
    %1613 = vmatpush2.bf16.msra.mxu0 0
    %1614 = vmatprep.subr.bf16.mxu0 0
    %1615 = vmatpush2.bf16.msra.mxu0 0
    %1616 = vmatprep.subr.bf16.mxu0 0
    %1617 = vmatpush2.bf16.msra.mxu0 0
    %1618 = vmatprep.subr.bf16.mxu0 0
    %1619 = vmatpush2.bf16.msra.mxu0 0
    %1620 = vmatprep.subr.bf16.mxu0 0
    %1621 = vmatpush2.bf16.msra.mxu0 0
    %1622 = vmatprep.subr.bf16.mxu0 0
    %1623 = vmatpush2.bf16.msra.mxu0 0
    %1624 = vmatprep.subr.bf16.mxu0 0
    %1625 = vmatpush2.bf16.msra.mxu0 0
    %1626 = vmatprep.mubr.bf16.mxu0 0
    %1627 = vmatmul.mubr.bf16.gmra.mxu0 %v1497
    %v1628 = vpop.f32.mrf.mxu0
    %v1629 = vadd.f32 0.0, %v1628
    %v1630 = vpop.f32.mrf.mxu0
    %v1631 = vpop.f32.mrf.mxu0
    %v1632 = vadd.f32 0.0, %v1631
    %v1633 = vpop.f32.mrf.mxu0
    %1634 = vmatprep.mubr.bf16.mxu0 0
    %1635 = vmatmul.mubr.bf16.gmra.mxu0 %v1498
    %v1636 = vpop.f32.mrf.mxu0
    %v1637 = vadd.f32 0.0, %v1636
    %v1638 = vpop.f32.mrf.mxu0
    %v1639 = vpop.f32.mrf.mxu0
    %v1640 = vadd.f32 0.0, %v1639
    %v1641 = vpop.f32.mrf.mxu0
    %1642 = vmatprep.mubr.bf16.mxu0 0
    %1643 = vmatmul.mubr.bf16.gmra.mxu0 %v1499
    %v1644 = vpop.f32.mrf.mxu0
    %v1645 = vadd.f32 0.0, %v1644
    %v1646 = vpop.f32.mrf.mxu0
    %v1647 = vpop.f32.mrf.mxu0
    %v1648 = vadd.f32 0.0, %v1647
    %v1649 = vpop.f32.mrf.mxu0
    %1650 = vmatprep.mubr.bf16.mxu0 0
    %1651 = vmatmul.mubr.bf16.gmra.mxu0 %v1500
    %v1652 = vpop.f32.mrf.mxu0
    %v1653 = vadd.f32 0.0, %v1652
    %v1654 = vpop.f32.mrf.mxu0
    %v1655 = vpop.f32.mrf.mxu0
    %v1656 = vadd.f32 0.0, %v1655
    %v1657 = vpop.f32.mrf.mxu0
    %1658 = vmatprep.mubr.bf16.mxu0 0
    %1659 = vmatmul.mubr.bf16.gmra.mxu0 %v1501
    %v1660 = vpop.f32.mrf.mxu0
    %v1661 = vadd.f32 0.0, %v1660
    %v1662 = vpop.f32.mrf.mxu0
    %v1663 = vpop.f32.mrf.mxu0
    %v1664 = vadd.f32 0.0, %v1663
    %v1665 = vpop.f32.mrf.mxu0
    %1666 = vmatprep.mubr.bf16.mxu0 0
    %1667 = vmatmul.mubr.bf16.gmra.mxu0 %v1502
    %v1668 = vpop.f32.mrf.mxu0
    %v1669 = vadd.f32 0.0, %v1668
    %v1670 = vpop.f32.mrf.mxu0
    %v1671 = vpop.f32.mrf.mxu0
    %v1672 = vadd.f32 0.0, %v1671
    %v1673 = vpop.f32.mrf.mxu0
    %1674 = vmatprep.mubr.bf16.mxu0 0
    %1675 = vmatmul.mubr.bf16.gmra.mxu0 %v1503
    %v1676 = vpop.f32.mrf.mxu0
    %v1677 = vadd.f32 0.0, %v1676
    %v1678 = vpop.f32.mrf.mxu0
    %v1679 = vpop.f32.mrf.mxu0
    %v1680 = vadd.f32 0.0, %v1679
    %v1681 = vpop.f32.mrf.mxu0
    %1682 = vmatprep.mubr.bf16.mxu0 0
    %1683 = vmatmul.mubr.bf16.gmra.mxu0 %v1504
    %v1684 = vpop.f32.mrf.mxu0
    %v1685 = vadd.f32 0.0, %v1684
    %v1686 = vpop.f32.mrf.mxu0
    %v1687 = vpop.f32.mrf.mxu0
    %v1688 = vadd.f32 0.0, %v1687
    %v1689 = vpop.f32.mrf.mxu0
    %1690 = vmatprep.mubr.bf16.mxu0 0
    %1691 = vmatmul.mubr.bf16.gmra.mxu0 %v1505
    %v1692 = vpop.f32.mrf.mxu0
    %v1693 = vadd.f32 0.0, %v1692
    %v1694 = vpop.f32.mrf.mxu0
    %v1695 = vpop.f32.mrf.mxu0
    %v1696 = vadd.f32 0.0, %v1695
    %v1697 = vpop.f32.mrf.mxu0
    %1698 = vmatprep.mubr.bf16.mxu0 0
    %1699 = vmatmul.mubr.bf16.gmra.mxu0 %v1506
    %v1700 = vpop.f32.mrf.mxu0
    %v1701 = vadd.f32 0.0, %v1700
    %v1702 = vpop.f32.mrf.mxu0
    %v1703 = vpop.f32.mrf.mxu0
    %v1704 = vadd.f32 0.0, %v1703
    %v1705 = vpop.f32.mrf.mxu0
    %1706 = vmatprep.mubr.bf16.mxu0 0
    %1707 = vmatmul.mubr.bf16.gmra.mxu0 %v1507
    %v1708 = vpop.f32.mrf.mxu0
    %v1709 = vadd.f32 0.0, %v1708
    %v1710 = vpop.f32.mrf.mxu0
    %v1711 = vpop.f32.mrf.mxu0
    %v1712 = vadd.f32 0.0, %v1711
    %v1713 = vpop.f32.mrf.mxu0
    %1714 = vmatprep.mubr.bf16.mxu0 0
    %1715 = vmatmul.mubr.bf16.gmra.mxu0 %v1508
    %v1716 = vpop.f32.mrf.mxu0
    %v1717 = vadd.f32 0.0, %v1716
    %v1718 = vpop.f32.mrf.mxu0
    %v1719 = vpop.f32.mrf.mxu0
    %v1720 = vadd.f32 0.0, %v1719
    %v1721 = vpop.f32.mrf.mxu0
    %1722 = vmatprep.mubr.bf16.mxu0 0
    %1723 = vmatmul.mubr.bf16.gmra.mxu0 %v1509
    %v1724 = vpop.f32.mrf.mxu0
    %v1725 = vadd.f32 0.0, %v1724
    %v1726 = vpop.f32.mrf.mxu0
    %v1727 = vpop.f32.mrf.mxu0
    %v1728 = vadd.f32 0.0, %v1727
    %v1729 = vpop.f32.mrf.mxu0
    %1730 = vmatprep.mubr.bf16.mxu0 0
    %1731 = vmatmul.mubr.bf16.gmra.mxu0 %v1510
    %v1732 = vpop.f32.mrf.mxu0
    %v1733 = vadd.f32 0.0, %v1732
    %v1734 = vpop.f32.mrf.mxu0
    %v1735 = vpop.f32.mrf.mxu0
    %v1736 = vadd.f32 0.0, %v1735
    %v1737 = vpop.f32.mrf.mxu0
    %1738 = vmatprep.mubr.bf16.mxu0 0
    %1739 = vmatmul.mubr.bf16.gmra.mxu0 %v1511
    %v1740 = vpop.f32.mrf.mxu0
    %v1741 = vadd.f32 0.0, %v1740
    %v1742 = vpop.f32.mrf.mxu0
    %v1743 = vpop.f32.mrf.mxu0
    %v1744 = vadd.f32 0.0, %v1743
    %v1745 = vpop.f32.mrf.mxu0
    %1746 = vmatprep.mubr.bf16.mxu0 0
    %1747 = vmatmul.mubr.bf16.gmra.mxu0 %v1512
    %v1748 = vpop.f32.mrf.mxu0
    %v1749 = vadd.f32 0.0, %v1748
    %v1750 = vpop.f32.mrf.mxu0
    %v1751 = vpop.f32.mrf.mxu0
    %v1752 = vadd.f32 0.0, %v1751
    %v1753 = vpop.f32.mrf.mxu0
    %1754 = vmatprep.mubr.bf16.mxu0 0
    %1755 = vmatmul.mubr.bf16.gmra.mxu0 %v1513
    %v1756 = vpop.f32.mrf.mxu0
    %v1757 = vadd.f32 0.0, %v1756
    %v1758 = vpop.f32.mrf.mxu0
    %v1759 = vpop.f32.mrf.mxu0
    %v1760 = vadd.f32 0.0, %v1759
    %v1761 = vpop.f32.mrf.mxu0
    %1762 = vmatprep.mubr.bf16.mxu0 0
    %1763 = vmatmul.mubr.bf16.gmra.mxu0 %v1514
    %v1764 = vpop.f32.mrf.mxu0
    %v1765 = vadd.f32 0.0, %v1764
    %v1766 = vpop.f32.mrf.mxu0
    %v1767 = vpop.f32.mrf.mxu0
    %v1768 = vadd.f32 0.0, %v1767
    %v1769 = vpop.f32.mrf.mxu0
    %1770 = vmatprep.mubr.bf16.mxu0 0
    %1771 = vmatmul.mubr.bf16.gmra.mxu0 %v1515
    %v1772 = vpop.f32.mrf.mxu0
    %v1773 = vadd.f32 0.0, %v1772
    %v1774 = vpop.f32.mrf.mxu0
    %v1775 = vpop.f32.mrf.mxu0
    %v1776 = vadd.f32 0.0, %v1775
    %v1777 = vpop.f32.mrf.mxu0
    %1778 = vmatprep.mubr.bf16.mxu0 0
    %1779 = vmatmul.mubr.bf16.gmra.mxu0 %v1516
    %v1780 = vpop.f32.mrf.mxu0
    %v1781 = vadd.f32 0.0, %v1780
    %v1782 = vpop.f32.mrf.mxu0
    %v1783 = vpop.f32.mrf.mxu0
    %v1784 = vadd.f32 0.0, %v1783
    %v1785 = vpop.f32.mrf.mxu0
    %1786 = vmatprep.mubr.bf16.mxu0 0
    %1787 = vmatmul.mubr.bf16.gmra.mxu0 %v1517
    %v1788 = vpop.f32.mrf.mxu0
    %v1789 = vadd.f32 0.0, %v1788
    %v1790 = vpop.f32.mrf.mxu0
    %v1791 = vpop.f32.mrf.mxu0
    %v1792 = vadd.f32 0.0, %v1791
    %v1793 = vpop.f32.mrf.mxu0
    %1794 = vmatprep.mubr.bf16.mxu0 0
    %1795 = vmatmul.mubr.bf16.gmra.mxu0 %v1518
    %v1796 = vpop.f32.mrf.mxu0
    %v1797 = vadd.f32 0.0, %v1796
    %v1798 = vpop.f32.mrf.mxu0
    %v1799 = vpop.f32.mrf.mxu0
    %v1800 = vadd.f32 0.0, %v1799
    %v1801 = vpop.f32.mrf.mxu0
    %1802 = vmatprep.mubr.bf16.mxu0 0
    %1803 = vmatmul.mubr.bf16.gmra.mxu0 %v1519
    %v1804 = vpop.f32.mrf.mxu0
    %v1805 = vadd.f32 0.0, %v1804
    %v1806 = vpop.f32.mrf.mxu0
    %v1807 = vpop.f32.mrf.mxu0
    %v1808 = vadd.f32 0.0, %v1807
    %v1809 = vpop.f32.mrf.mxu0
    %1810 = vmatprep.mubr.bf16.mxu0 0
    %1811 = vmatmul.mubr.bf16.gmra.mxu0 %v1520
    %v1812 = vpop.f32.mrf.mxu0
    %v1813 = vadd.f32 0.0, %v1812
    %v1814 = vpop.f32.mrf.mxu0
    %v1815 = vpop.f32.mrf.mxu0
    %v1816 = vadd.f32 0.0, %v1815
    %v1817 = vpop.f32.mrf.mxu0
    %1818 = vmatprep.mubr.bf16.mxu0 0
    %1819 = vmatmul.mubr.bf16.gmra.mxu0 %v1521
    %v1820 = vpop.f32.mrf.mxu0
    %v1821 = vadd.f32 0.0, %v1820
    %v1822 = vpop.f32.mrf.mxu0
    %v1823 = vpop.f32.mrf.mxu0
    %v1824 = vadd.f32 0.0, %v1823
    %v1825 = vpop.f32.mrf.mxu0
    %1826 = vmatprep.mubr.bf16.mxu0 0
    %1827 = vmatmul.mubr.bf16.gmra.mxu0 %v1522
    %v1828 = vpop.f32.mrf.mxu0
    %v1829 = vadd.f32 0.0, %v1828
    %v1830 = vpop.f32.mrf.mxu0
    %v1831 = vpop.f32.mrf.mxu0
    %v1832 = vadd.f32 0.0, %v1831
    %v1833 = vpop.f32.mrf.mxu0
    %1834 = vmatprep.mubr.bf16.mxu0 0
    %1835 = vmatmul.mubr.bf16.gmra.mxu0 %v1523
    %v1836 = vpop.f32.mrf.mxu0
    %v1837 = vadd.f32 0.0, %v1836
    %v1838 = vpop.f32.mrf.mxu0
    %v1839 = vpop.f32.mrf.mxu0
    %v1840 = vadd.f32 0.0, %v1839
    %v1841 = vpop.f32.mrf.mxu0
    %1842 = vmatprep.mubr.bf16.mxu0 0
    %1843 = vmatmul.mubr.bf16.gmra.mxu0 %v1524
    %v1844 = vpop.f32.mrf.mxu0
    %v1845 = vadd.f32 0.0, %v1844
    %v1846 = vpop.f32.mrf.mxu0
    %v1847 = vpop.f32.mrf.mxu0
    %v1848 = vadd.f32 0.0, %v1847
    %v1849 = vpop.f32.mrf.mxu0
    %1850 = vmatprep.mubr.bf16.mxu0 0
    %1851 = vmatmul.mubr.bf16.gmra.mxu0 %v1525
    %v1852 = vpop.f32.mrf.mxu0
    %v1853 = vadd.f32 0.0, %v1852
    %v1854 = vpop.f32.mrf.mxu0
    %v1855 = vpop.f32.mrf.mxu0
    %v1856 = vadd.f32 0.0, %v1855
    %v1857 = vpop.f32.mrf.mxu0
    %1858 = vmatprep.mubr.bf16.mxu0 0
    %1859 = vmatmul.mubr.bf16.gmra.mxu0 %v1526
    %v1860 = vpop.f32.mrf.mxu0
    %v1861 = vadd.f32 0.0, %v1860
    %v1862 = vpop.f32.mrf.mxu0
    %v1863 = vpop.f32.mrf.mxu0
    %v1864 = vadd.f32 0.0, %v1863
    %v1865 = vpop.f32.mrf.mxu0
    %1866 = vmatprep.mubr.bf16.mxu0 0
    %1867 = vmatmul.mubr.bf16.gmra.mxu0 %v1527
    %v1868 = vpop.f32.mrf.mxu0
    %v1869 = vadd.f32 0.0, %v1868
    %v1870 = vpop.f32.mrf.mxu0
    %v1871 = vpop.f32.mrf.mxu0
    %v1872 = vadd.f32 0.0, %v1871
    %v1873 = vpop.f32.mrf.mxu0
    %1874 = vmatprep.mubr.bf16.mxu0 0
    %1875 = vmatmul.mubr.bf16.gmra.mxu0 %v1528
    %v1876 = vpop.f32.mrf.mxu0
    %v1877 = vadd.f32 0.0, %v1876
    %v1878 = vpop.f32.mrf.mxu0
    %v1879 = vpop.f32.mrf.mxu0
    %v1880 = vadd.f32 0.0, %v1879
    %v1881 = vpop.f32.mrf.mxu0
    %1882 = vdwg.mxu0
    %v1883 = vadd.f32 %v1368, %v1629
    %v1884 = vadd.f32 %v1369, %v1632
    %v1885 = vadd.f32 %v1370, %v1637
    %v1886 = vadd.f32 %v1371, %v1640
    %v1887 = vadd.f32 %v1372, %v1645
    %v1888 = vadd.f32 %v1373, %v1648
    %v1889 = vadd.f32 %v1374, %v1653
    %v1890 = vadd.f32 %v1375, %v1656
    %v1891 = vadd.f32 %v1376, %v1661
    %v1892 = vadd.f32 %v1377, %v1664
    %v1893 = vadd.f32 %v1378, %v1669
    %v1894 = vadd.f32 %v1379, %v1672
    %v1895 = vadd.f32 %v1380, %v1677
    %v1896 = vadd.f32 %v1381, %v1680
    %v1897 = vadd.f32 %v1382, %v1685
    %v1898 = vadd.f32 %v1383, %v1688
    %v1899 = vadd.f32 %v1384, %v1693
    %v1900 = vadd.f32 %v1385, %v1696
    %v1901 = vadd.f32 %v1386, %v1701
    %v1902 = vadd.f32 %v1387, %v1704
    %v1903 = vadd.f32 %v1388, %v1709
    %v1904 = vadd.f32 %v1389, %v1712
    %v1905 = vadd.f32 %v1390, %v1717
    %v1906 = vadd.f32 %v1391, %v1720
    %v1907 = vadd.f32 %v1392, %v1725
    %v1908 = vadd.f32 %v1393, %v1728
    %v1909 = vadd.f32 %v1394, %v1733
    %v1910 = vadd.f32 %v1395, %v1736
    %v1911 = vadd.f32 %v1396, %v1741
    %v1912 = vadd.f32 %v1397, %v1744
    %v1913 = vadd.f32 %v1398, %v1749
    %v1914 = vadd.f32 %v1399, %v1752
    %v1915 = vadd.f32 %v1400, %v1757
    %v1916 = vadd.f32 %v1401, %v1760
    %v1917 = vadd.f32 %v1402, %v1765
    %v1918 = vadd.f32 %v1403, %v1768
    %v1919 = vadd.f32 %v1404, %v1773
    %v1920 = vadd.f32 %v1405, %v1776
    %v1921 = vadd.f32 %v1406, %v1781
    %v1922 = vadd.f32 %v1407, %v1784
    %v1923 = vadd.f32 %v1408, %v1789
    %v1924 = vadd.f32 %v1409, %v1792
    %v1925 = vadd.f32 %v1410, %v1797
    %v1926 = vadd.f32 %v1411, %v1800
    %v1927 = vadd.f32 %v1412, %v1805
    %v1928 = vadd.f32 %v1413, %v1808
    %v1929 = vadd.f32 %v1414, %v1813
    %v1930 = vadd.f32 %v1415, %v1816
    %v1931 = vadd.f32 %v1416, %v1821
    %v1932 = vadd.f32 %v1417, %v1824
    %v1933 = vadd.f32 %v1418, %v1829
    %v1934 = vadd.f32 %v1419, %v1832
    %v1935 = vadd.f32 %v1420, %v1837
    %v1936 = vadd.f32 %v1421, %v1840
    %v1937 = vadd.f32 %v1422, %v1845
    %v1938 = vadd.f32 %v1423, %v1848
    %v1939 = vadd.f32 %v1424, %v1853
    %v1940 = vadd.f32 %v1425, %v1856
    %v1941 = vadd.f32 %v1426, %v1861
    %v1942 = vadd.f32 %v1427, %v1864
    %v1943 = vadd.f32 %v1428, %v1869
    %v1944 = vadd.f32 %v1429, %v1872
    %v1945 = vadd.f32 %v1430, %v1877
    %v1946 = vadd.f32 %v1431, %v1880
    %v1947 = vld [vmem:[%s1432 + $0x1] sm:$0xff]
    %v1948 = vld [vmem:[%s1432 + $0x9] sm:$0xff]
    %v1949 = vld [vmem:[%s1432 + $0x19] sm:$0xff]
    %v1950 = vld [vmem:[%s1432 + $0x21] sm:$0xff]
    %v1951 = vld [vmem:[%s1432 + $0x31] sm:$0xff]
    %v1952 = vld [vmem:[%s1432 + $0x39] sm:$0xff]
    %v1953 = vld [vmem:[%s1432 + $0x49] sm:$0xff]
    %v1954 = vld [vmem:[%s1432 + $0x51] sm:$0xff]
    %v1955 = vld [vmem:[%s1432 + $0x61] sm:$0xff]
    %v1956 = vld [vmem:[%s1432 + $0x69] sm:$0xff]
    %v1957 = vld [vmem:[%s1432 + $0x79] sm:$0xff]
    %v1958 = vld [vmem:[%s1432 + $0x81] sm:$0xff]
    %v1959 = vld [vmem:[%s1432 + $0x91] sm:$0xff]
    %v1960 = vld [vmem:[%s1432 + $0x99] sm:$0xff]
    %v1961 = vld [vmem:[%s1432 + $0xa9] sm:$0xff]
    %v1962 = vld [vmem:[%s1432 + $0xb1] sm:$0xff]
    %v1963 = vld [vmem:[%s1432 + $0xc1] sm:$0xff]
    %v1964 = vld [vmem:[%s1432 + $0xc9] sm:$0xff]
    %v1965 = vld [vmem:[%s1432 + $0xd9] sm:$0xff]
    %v1966 = vld [vmem:[%s1432 + $0xe1] sm:$0xff]
    %v1967 = vld [vmem:[%s1432 + $0xf1] sm:$0xff]
    %v1968 = vld [vmem:[%s1432 + $0xf9] sm:$0xff]
    %v1969 = vld [vmem:[%s1432 + $0x109] sm:$0xff]
    %v1970 = vld [vmem:[%s1432 + $0x111] sm:$0xff]
    %v1971 = vld [vmem:[%s1432 + $0x121] sm:$0xff]
    %v1972 = vld [vmem:[%s1432 + $0x129] sm:$0xff]
    %v1973 = vld [vmem:[%s1432 + $0x139] sm:$0xff]
    %v1974 = vld [vmem:[%s1432 + $0x141] sm:$0xff]
    %v1975 = vld [vmem:[%s1432 + $0x151] sm:$0xff]
    %v1976 = vld [vmem:[%s1432 + $0x159] sm:$0xff]
    %v1977 = vld [vmem:[%s1432 + $0x169] sm:$0xff]
    %v1978 = vld [vmem:[%s1432 + $0x171] sm:$0xff]
    %v1979 = vld [vmem:[%s1432 + $0x1b1] sm:$0xff]
    %v1980 = vld [vmem:[%s1432 + $0x1b9] sm:$0xff]
    %v1981 = vld [vmem:[%s1432 + $0x1c9] sm:$0xff]
    %v1982 = vld [vmem:[%s1432 + $0x1d1] sm:$0xff]
    %v1983 = vld [vmem:[%s1432 + $0x1e1] sm:$0xff]
    %v1984 = vld [vmem:[%s1432 + $0x1e9] sm:$0xff]
    %v1985 = vld [vmem:[%s1432 + $0x1f9] sm:$0xff]
    %v1986 = vld [vmem:[%s1432 + $0x201] sm:$0xff]
    %v1987 = vld [vmem:[%s1432 + $0x211] sm:$0xff]
    %v1988 = vld [vmem:[%s1432 + $0x219] sm:$0xff]
    %v1989 = vld [vmem:[%s1432 + $0x229] sm:$0xff]
    %v1990 = vld [vmem:[%s1432 + $0x231] sm:$0xff]
    %v1991 = vld [vmem:[%s1432 + $0x241] sm:$0xff]
    %v1992 = vld [vmem:[%s1432 + $0x249] sm:$0xff]
    %v1993 = vld [vmem:[%s1432 + $0x259] sm:$0xff]
    %v1994 = vld [vmem:[%s1432 + $0x261] sm:$0xff]
    %v1995 = vld [vmem:[%s1432 + $0x271] sm:$0xff]
    %v1996 = vld [vmem:[%s1432 + $0x279] sm:$0xff]
    %v1997 = vld [vmem:[%s1432 + $0x289] sm:$0xff]
    %v1998 = vld [vmem:[%s1432 + $0x291] sm:$0xff]
    %v1999 = vld [vmem:[%s1432 + $0x2a1] sm:$0xff]
    %v2000 = vld [vmem:[%s1432 + $0x2a9] sm:$0xff]
    %v2001 = vld [vmem:[%s1432 + $0x2b9] sm:$0xff]
    %v2002 = vld [vmem:[%s1432 + $0x2c1] sm:$0xff]
    %v2003 = vld [vmem:[%s1432 + $0x2d1] sm:$0xff]
    %v2004 = vld [vmem:[%s1432 + $0x2d9] sm:$0xff]
    %v2005 = vld [vmem:[%s1432 + $0x2e9] sm:$0xff]
    %v2006 = vld [vmem:[%s1432 + $0x2f1] sm:$0xff]
    %v2007 = vld [vmem:[%s1432 + $0x301] sm:$0xff]
    %v2008 = vld [vmem:[%s1432 + $0x309] sm:$0xff]
    %v2009 = vld [vmem:[%s1432 + $0x319] sm:$0xff]
    %v2010 = vld [vmem:[%s1432 + $0x321] sm:$0xff]
    %v2011 = vpack.c.bf16 %v1948, %v1947
    %v2012 = vpack.c.bf16 %v1950, %v1949
    %v2013 = vpack.c.bf16 %v1952, %v1951
    %v2014 = vpack.c.bf16 %v1954, %v1953
    %v2015 = vpack.c.bf16 %v1956, %v1955
    %v2016 = vpack.c.bf16 %v1958, %v1957
    %v2017 = vpack.c.bf16 %v1960, %v1959
    %v2018 = vpack.c.bf16 %v1962, %v1961
    %v2019 = vpack.c.bf16 %v1964, %v1963
    %v2020 = vpack.c.bf16 %v1966, %v1965
    %v2021 = vpack.c.bf16 %v1968, %v1967
    %v2022 = vpack.c.bf16 %v1970, %v1969
    %v2023 = vpack.c.bf16 %v1972, %v1971
    %v2024 = vpack.c.bf16 %v1974, %v1973
    %v2025 = vpack.c.bf16 %v1976, %v1975
    %v2026 = vpack.c.bf16 %v1978, %v1977
    %v2027 = vpack.c.bf16 %v1980, %v1979
    %v2028 = vpack.c.bf16 %v1982, %v1981
    %v2029 = vpack.c.bf16 %v1984, %v1983
    %v2030 = vpack.c.bf16 %v1986, %v1985
    %v2031 = vpack.c.bf16 %v1988, %v1987
    %v2032 = vpack.c.bf16 %v1990, %v1989
    %v2033 = vpack.c.bf16 %v1992, %v1991
    %v2034 = vpack.c.bf16 %v1994, %v1993
    %v2035 = vpack.c.bf16 %v1996, %v1995
    %v2036 = vpack.c.bf16 %v1998, %v1997
    %v2037 = vpack.c.bf16 %v2000, %v1999
    %v2038 = vpack.c.bf16 %v2002, %v2001
    %v2039 = vpack.c.bf16 %v2004, %v2003
    %v2040 = vpack.c.bf16 %v2006, %v2005
    %v2041 = vpack.c.bf16 %v2008, %v2007
    %v2042 = vpack.c.bf16 %v2010, %v2009
    %s2043 = scalar_lea.vmem %s1, 256
    %v2044 = vld [vmem:[%s2043] sm:$0xf]
    %v2045 = vld [vmem:[%s2043 + $0x4] sm:$0xf]
    %v2046 = vld [vmem:[%s2043 + $0x8] sm:$0xf]
    %v2047 = vld [vmem:[%s2043 + $0xc] sm:$0xf]
    %v2048 = vld [vmem:[%s2043 + $0x10] sm:$0xf]
    %v2049 = vld [vmem:[%s2043 + $0x14] sm:$0xf]
    %v2050 = vld [vmem:[%s2043 + $0x18] sm:$0xf]
    %v2051 = vld [vmem:[%s2043 + $0x1c] sm:$0xf]
    %v2052 = vld [vmem:[%s2043 + $0x20] sm:$0xf]
    %v2053 = vld [vmem:[%s2043 + $0x24] sm:$0xf]
    %v2054 = vld [vmem:[%s2043 + $0x28] sm:$0xf]
    %v2055 = vld [vmem:[%s2043 + $0x2c] sm:$0xf]
    %v2056 = vld [vmem:[%s2043 + $0x30] sm:$0xf]
    %v2057 = vld [vmem:[%s2043 + $0x34] sm:$0xf]
    %v2058 = vld [vmem:[%s2043 + $0x38] sm:$0xf]
    %v2059 = vld [vmem:[%s2043 + $0x3c] sm:$0xf]
    %v2076 = vunpack.c.l.b16 %v2044
    %v2077 = vunpack.c.l.b16 %v2045
    %v2078 = vunpack.c.l.b16 %v2046
    %v2079 = vunpack.c.l.b16 %v2047
    %v2080 = vunpack.c.l.b16 %v2048
    %v2081 = vunpack.c.l.b16 %v2049
    %v2082 = vunpack.c.l.b16 %v2050
    %v2083 = vunpack.c.l.b16 %v2051
    %v2084 = vunpack.c.l.b16 %v2052
    %v2085 = vunpack.c.l.b16 %v2053
    %v2086 = vunpack.c.l.b16 %v2054
    %v2087 = vunpack.c.l.b16 %v2055
    %v2088 = vunpack.c.l.b16 %v2056
    %v2089 = vunpack.c.l.b16 %v2057
    %v2090 = vunpack.c.l.b16 %v2058
    %v2091 = vunpack.c.l.b16 %v2059
    %v2092 = vpack.c.b16 %v2077, %v2076
    %v2093 = vpack.c.b16 %v2079, %v2078
    %v2094 = vpack.c.b16 %v2081, %v2080
    %v2095 = vpack.c.b16 %v2083, %v2082
    %v2096 = vpack.c.b16 %v2085, %v2084
    %v2097 = vpack.c.b16 %v2087, %v2086
    %v2098 = vpack.c.b16 %v2089, %v2088
    %v2099 = vpack.c.b16 %v2091, %v2090
    %2108 = vmatprep.subr.bf16.mxu0 0
    %2109 = vmatpush1.bf16.msra.mxu0 %v2099
    %2110 = vmatprep.subr.bf16.mxu0 0
    %2111 = vmatpush1.bf16.msra.mxu0 %v2098
    %2112 = vmatprep.subr.bf16.mxu0 0
    %2113 = vmatpush1.bf16.msra.mxu0 %v2097
    %2114 = vmatprep.subr.bf16.mxu0 0
    %2115 = vmatpush1.bf16.msra.mxu0 %v2096
    %2116 = vmatprep.subr.bf16.mxu0 0
    %2117 = vmatpush1.bf16.msra.mxu0 %v2095
    %2118 = vmatprep.subr.bf16.mxu0 0
    %2119 = vmatpush1.bf16.msra.mxu0 %v2094
    %2120 = vmatprep.subr.bf16.mxu0 0
    %2121 = vmatpush1.bf16.msra.mxu0 %v2093
    %2122 = vmatprep.subr.bf16.mxu0 0
    %2123 = vmatpush1.bf16.msra.mxu0 %v2092
    %2124 = vmatprep.subr.bf16.mxu0 0
    %2125 = vmatpush2.bf16.msra.mxu0 0
    %2126 = vmatprep.subr.bf16.mxu0 0
    %2127 = vmatpush2.bf16.msra.mxu0 0
    %2128 = vmatprep.subr.bf16.mxu0 0
    %2129 = vmatpush2.bf16.msra.mxu0 0
    %2130 = vmatprep.subr.bf16.mxu0 0
    %2131 = vmatpush2.bf16.msra.mxu0 0
    %2132 = vmatprep.subr.bf16.mxu0 0
    %2133 = vmatpush2.bf16.msra.mxu0 0
    %2134 = vmatprep.subr.bf16.mxu0 0
    %2135 = vmatpush2.bf16.msra.mxu0 0
    %2136 = vmatprep.subr.bf16.mxu0 0
    %2137 = vmatpush2.bf16.msra.mxu0 0
    %2138 = vmatprep.subr.bf16.mxu0 0
    %2139 = vmatpush2.bf16.msra.mxu0 0
    %2140 = vmatprep.mubr.bf16.mxu0 0
    %2141 = vmatmul.mubr.bf16.gmra.mxu0 %v2011
    %v2142 = vpop.f32.mrf.mxu0
    %v2143 = vadd.f32 0.0, %v2142
    %v2144 = vpop.f32.mrf.mxu0
    %v2145 = vpop.f32.mrf.mxu0
    %v2146 = vadd.f32 0.0, %v2145
    %v2147 = vpop.f32.mrf.mxu0
    %2148 = vmatprep.mubr.bf16.mxu0 0
    %2149 = vmatmul.mubr.bf16.gmra.mxu0 %v2012
    %v2150 = vpop.f32.mrf.mxu0
    %v2151 = vadd.f32 0.0, %v2150
    %v2152 = vpop.f32.mrf.mxu0
    %v2153 = vpop.f32.mrf.mxu0
    %v2154 = vadd.f32 0.0, %v2153
    %v2155 = vpop.f32.mrf.mxu0
    %2156 = vmatprep.mubr.bf16.mxu0 0
    %2157 = vmatmul.mubr.bf16.gmra.mxu0 %v2013
    %v2158 = vpop.f32.mrf.mxu0
    %v2159 = vadd.f32 0.0, %v2158
    %v2160 = vpop.f32.mrf.mxu0
    %v2161 = vpop.f32.mrf.mxu0
    %v2162 = vadd.f32 0.0, %v2161
    %v2163 = vpop.f32.mrf.mxu0
    %2164 = vmatprep.mubr.bf16.mxu0 0
    %2165 = vmatmul.mubr.bf16.gmra.mxu0 %v2014
    %v2166 = vpop.f32.mrf.mxu0
    %v2167 = vadd.f32 0.0, %v2166
    %v2168 = vpop.f32.mrf.mxu0
    %v2169 = vpop.f32.mrf.mxu0
    %v2170 = vadd.f32 0.0, %v2169
    %v2171 = vpop.f32.mrf.mxu0
    %2172 = vmatprep.mubr.bf16.mxu0 0
    %2173 = vmatmul.mubr.bf16.gmra.mxu0 %v2015
    %v2174 = vpop.f32.mrf.mxu0
    %v2175 = vadd.f32 0.0, %v2174
    %v2176 = vpop.f32.mrf.mxu0
    %v2177 = vpop.f32.mrf.mxu0
    %v2178 = vadd.f32 0.0, %v2177
    %v2179 = vpop.f32.mrf.mxu0
    %2180 = vmatprep.mubr.bf16.mxu0 0
    %2181 = vmatmul.mubr.bf16.gmra.mxu0 %v2016
    %v2182 = vpop.f32.mrf.mxu0
    %v2183 = vadd.f32 0.0, %v2182
    %v2184 = vpop.f32.mrf.mxu0
    %v2185 = vpop.f32.mrf.mxu0
    %v2186 = vadd.f32 0.0, %v2185
    %v2187 = vpop.f32.mrf.mxu0
    %2188 = vmatprep.mubr.bf16.mxu0 0
    %2189 = vmatmul.mubr.bf16.gmra.mxu0 %v2017
    %v2190 = vpop.f32.mrf.mxu0
    %v2191 = vadd.f32 0.0, %v2190
    %v2192 = vpop.f32.mrf.mxu0
    %v2193 = vpop.f32.mrf.mxu0
    %v2194 = vadd.f32 0.0, %v2193
    %v2195 = vpop.f32.mrf.mxu0
    %2196 = vmatprep.mubr.bf16.mxu0 0
    %2197 = vmatmul.mubr.bf16.gmra.mxu0 %v2018
    %v2198 = vpop.f32.mrf.mxu0
    %v2199 = vadd.f32 0.0, %v2198
    %v2200 = vpop.f32.mrf.mxu0
    %v2201 = vpop.f32.mrf.mxu0
    %v2202 = vadd.f32 0.0, %v2201
    %v2203 = vpop.f32.mrf.mxu0
    %2204 = vmatprep.mubr.bf16.mxu0 0
    %2205 = vmatmul.mubr.bf16.gmra.mxu0 %v2019
    %v2206 = vpop.f32.mrf.mxu0
    %v2207 = vadd.f32 0.0, %v2206
    %v2208 = vpop.f32.mrf.mxu0
    %v2209 = vpop.f32.mrf.mxu0
    %v2210 = vadd.f32 0.0, %v2209
    %v2211 = vpop.f32.mrf.mxu0
    %2212 = vmatprep.mubr.bf16.mxu0 0
    %2213 = vmatmul.mubr.bf16.gmra.mxu0 %v2020
    %v2214 = vpop.f32.mrf.mxu0
    %v2215 = vadd.f32 0.0, %v2214
    %v2216 = vpop.f32.mrf.mxu0
    %v2217 = vpop.f32.mrf.mxu0
    %v2218 = vadd.f32 0.0, %v2217
    %v2219 = vpop.f32.mrf.mxu0
    %2220 = vmatprep.mubr.bf16.mxu0 0
    %2221 = vmatmul.mubr.bf16.gmra.mxu0 %v2021
    %v2222 = vpop.f32.mrf.mxu0
    %v2223 = vadd.f32 0.0, %v2222
    %v2224 = vpop.f32.mrf.mxu0
    %v2225 = vpop.f32.mrf.mxu0
    %v2226 = vadd.f32 0.0, %v2225
    %v2227 = vpop.f32.mrf.mxu0
    %2228 = vmatprep.mubr.bf16.mxu0 0
    %2229 = vmatmul.mubr.bf16.gmra.mxu0 %v2022
    %v2230 = vpop.f32.mrf.mxu0
    %v2231 = vadd.f32 0.0, %v2230
    %v2232 = vpop.f32.mrf.mxu0
    %v2233 = vpop.f32.mrf.mxu0
    %v2234 = vadd.f32 0.0, %v2233
    %v2235 = vpop.f32.mrf.mxu0
    %2236 = vmatprep.mubr.bf16.mxu0 0
    %2237 = vmatmul.mubr.bf16.gmra.mxu0 %v2023
    %v2238 = vpop.f32.mrf.mxu0
    %v2239 = vadd.f32 0.0, %v2238
    %v2240 = vpop.f32.mrf.mxu0
    %v2241 = vpop.f32.mrf.mxu0
    %v2242 = vadd.f32 0.0, %v2241
    %v2243 = vpop.f32.mrf.mxu0
    %2244 = vmatprep.mubr.bf16.mxu0 0
    %2245 = vmatmul.mubr.bf16.gmra.mxu0 %v2024
    %v2246 = vpop.f32.mrf.mxu0
    %v2247 = vadd.f32 0.0, %v2246
    %v2248 = vpop.f32.mrf.mxu0
    %v2249 = vpop.f32.mrf.mxu0
    %v2250 = vadd.f32 0.0, %v2249
    %v2251 = vpop.f32.mrf.mxu0
    %2252 = vmatprep.mubr.bf16.mxu0 0
    %2253 = vmatmul.mubr.bf16.gmra.mxu0 %v2025
    %v2254 = vpop.f32.mrf.mxu0
    %v2255 = vadd.f32 0.0, %v2254
    %v2256 = vpop.f32.mrf.mxu0
    %v2257 = vpop.f32.mrf.mxu0
    %v2258 = vadd.f32 0.0, %v2257
    %v2259 = vpop.f32.mrf.mxu0
    %2260 = vmatprep.mubr.bf16.mxu0 0
    %2261 = vmatmul.mubr.bf16.gmra.mxu0 %v2026
    %v2262 = vpop.f32.mrf.mxu0
    %v2263 = vadd.f32 0.0, %v2262
    %v2264 = vpop.f32.mrf.mxu0
    %v2265 = vpop.f32.mrf.mxu0
    %v2266 = vadd.f32 0.0, %v2265
    %v2267 = vpop.f32.mrf.mxu0
    %2268 = vmatprep.mubr.bf16.mxu0 0
    %2269 = vmatmul.mubr.bf16.gmra.mxu0 %v2027
    %v2270 = vpop.f32.mrf.mxu0
    %v2271 = vadd.f32 0.0, %v2270
    %v2272 = vpop.f32.mrf.mxu0
    %v2273 = vpop.f32.mrf.mxu0
    %v2274 = vadd.f32 0.0, %v2273
    %v2275 = vpop.f32.mrf.mxu0
    %2276 = vmatprep.mubr.bf16.mxu0 0
    %2277 = vmatmul.mubr.bf16.gmra.mxu0 %v2028
    %v2278 = vpop.f32.mrf.mxu0
    %v2279 = vadd.f32 0.0, %v2278
    %v2280 = vpop.f32.mrf.mxu0
    %v2281 = vpop.f32.mrf.mxu0
    %v2282 = vadd.f32 0.0, %v2281
    %v2283 = vpop.f32.mrf.mxu0
    %2284 = vmatprep.mubr.bf16.mxu0 0
    %2285 = vmatmul.mubr.bf16.gmra.mxu0 %v2029
    %v2286 = vpop.f32.mrf.mxu0
    %v2287 = vadd.f32 0.0, %v2286
    %v2288 = vpop.f32.mrf.mxu0
    %v2289 = vpop.f32.mrf.mxu0
    %v2290 = vadd.f32 0.0, %v2289
    %v2291 = vpop.f32.mrf.mxu0
    %2292 = vmatprep.mubr.bf16.mxu0 0
    %2293 = vmatmul.mubr.bf16.gmra.mxu0 %v2030
    %v2294 = vpop.f32.mrf.mxu0
    %v2295 = vadd.f32 0.0, %v2294
    %v2296 = vpop.f32.mrf.mxu0
    %v2297 = vpop.f32.mrf.mxu0
    %v2298 = vadd.f32 0.0, %v2297
    %v2299 = vpop.f32.mrf.mxu0
    %2300 = vmatprep.mubr.bf16.mxu0 0
    %2301 = vmatmul.mubr.bf16.gmra.mxu0 %v2031
    %v2302 = vpop.f32.mrf.mxu0
    %v2303 = vadd.f32 0.0, %v2302
    %v2304 = vpop.f32.mrf.mxu0
    %v2305 = vpop.f32.mrf.mxu0
    %v2306 = vadd.f32 0.0, %v2305
    %v2307 = vpop.f32.mrf.mxu0
    %2308 = vmatprep.mubr.bf16.mxu0 0
    %2309 = vmatmul.mubr.bf16.gmra.mxu0 %v2032
    %v2310 = vpop.f32.mrf.mxu0
    %v2311 = vadd.f32 0.0, %v2310
    %v2312 = vpop.f32.mrf.mxu0
    %v2313 = vpop.f32.mrf.mxu0
    %v2314 = vadd.f32 0.0, %v2313
    %v2315 = vpop.f32.mrf.mxu0
    %2316 = vmatprep.mubr.bf16.mxu0 0
    %2317 = vmatmul.mubr.bf16.gmra.mxu0 %v2033
    %v2318 = vpop.f32.mrf.mxu0
    %v2319 = vadd.f32 0.0, %v2318
    %v2320 = vpop.f32.mrf.mxu0
    %v2321 = vpop.f32.mrf.mxu0
    %v2322 = vadd.f32 0.0, %v2321
    %v2323 = vpop.f32.mrf.mxu0
    %2324 = vmatprep.mubr.bf16.mxu0 0
    %2325 = vmatmul.mubr.bf16.gmra.mxu0 %v2034
    %v2326 = vpop.f32.mrf.mxu0
    %v2327 = vadd.f32 0.0, %v2326
    %v2328 = vpop.f32.mrf.mxu0
    %v2329 = vpop.f32.mrf.mxu0
    %v2330 = vadd.f32 0.0, %v2329
    %v2331 = vpop.f32.mrf.mxu0
    %2332 = vmatprep.mubr.bf16.mxu0 0
    %2333 = vmatmul.mubr.bf16.gmra.mxu0 %v2035
    %v2334 = vpop.f32.mrf.mxu0
    %v2335 = vadd.f32 0.0, %v2334
    %v2336 = vpop.f32.mrf.mxu0
    %v2337 = vpop.f32.mrf.mxu0
    %v2338 = vadd.f32 0.0, %v2337
    %v2339 = vpop.f32.mrf.mxu0
    %2340 = vmatprep.mubr.bf16.mxu0 0
    %2341 = vmatmul.mubr.bf16.gmra.mxu0 %v2036
    %v2342 = vpop.f32.mrf.mxu0
    %v2343 = vadd.f32 0.0, %v2342
    %v2344 = vpop.f32.mrf.mxu0
    %v2345 = vpop.f32.mrf.mxu0
    %v2346 = vadd.f32 0.0, %v2345
    %v2347 = vpop.f32.mrf.mxu0
    %2348 = vmatprep.mubr.bf16.mxu0 0
    %2349 = vmatmul.mubr.bf16.gmra.mxu0 %v2037
    %v2350 = vpop.f32.mrf.mxu0
    %v2351 = vadd.f32 0.0, %v2350
    %v2352 = vpop.f32.mrf.mxu0
    %v2353 = vpop.f32.mrf.mxu0
    %v2354 = vadd.f32 0.0, %v2353
    %v2355 = vpop.f32.mrf.mxu0
    %2356 = vmatprep.mubr.bf16.mxu0 0
    %2357 = vmatmul.mubr.bf16.gmra.mxu0 %v2038
    %v2358 = vpop.f32.mrf.mxu0
    %v2359 = vadd.f32 0.0, %v2358
    %v2360 = vpop.f32.mrf.mxu0
    %v2361 = vpop.f32.mrf.mxu0
    %v2362 = vadd.f32 0.0, %v2361
    %v2363 = vpop.f32.mrf.mxu0
    %2364 = vmatprep.mubr.bf16.mxu0 0
    %2365 = vmatmul.mubr.bf16.gmra.mxu0 %v2039
    %v2366 = vpop.f32.mrf.mxu0
    %v2367 = vadd.f32 0.0, %v2366
    %v2368 = vpop.f32.mrf.mxu0
    %v2369 = vpop.f32.mrf.mxu0
    %v2370 = vadd.f32 0.0, %v2369
    %v2371 = vpop.f32.mrf.mxu0
    %2372 = vmatprep.mubr.bf16.mxu0 0
    %2373 = vmatmul.mubr.bf16.gmra.mxu0 %v2040
    %v2374 = vpop.f32.mrf.mxu0
    %v2375 = vadd.f32 0.0, %v2374
    %v2376 = vpop.f32.mrf.mxu0
    %v2377 = vpop.f32.mrf.mxu0
    %v2378 = vadd.f32 0.0, %v2377
    %v2379 = vpop.f32.mrf.mxu0
    %2380 = vmatprep.mubr.bf16.mxu0 0
    %2381 = vmatmul.mubr.bf16.gmra.mxu0 %v2041
    %v2382 = vpop.f32.mrf.mxu0
    %v2383 = vadd.f32 0.0, %v2382
    %v2384 = vpop.f32.mrf.mxu0
    %v2385 = vpop.f32.mrf.mxu0
    %v2386 = vadd.f32 0.0, %v2385
    %v2387 = vpop.f32.mrf.mxu0
    %2388 = vmatprep.mubr.bf16.mxu0 0
    %2389 = vmatmul.mubr.bf16.gmra.mxu0 %v2042
    %v2390 = vpop.f32.mrf.mxu0
    %v2391 = vadd.f32 0.0, %v2390
    %v2392 = vpop.f32.mrf.mxu0
    %v2393 = vpop.f32.mrf.mxu0
    %v2394 = vadd.f32 0.0, %v2393
    %v2395 = vpop.f32.mrf.mxu0
    %2396 = vdwg.mxu0
    %v2397 = vadd.f32 %v1883, %v2143
    %v2398 = vadd.f32 %v1884, %v2146
    %v2399 = vadd.f32 %v1885, %v2151
    %v2400 = vadd.f32 %v1886, %v2154
    %v2401 = vadd.f32 %v1887, %v2159
    %v2402 = vadd.f32 %v1888, %v2162
    %v2403 = vadd.f32 %v1889, %v2167
    %v2404 = vadd.f32 %v1890, %v2170
    %v2405 = vadd.f32 %v1891, %v2175
    %v2406 = vadd.f32 %v1892, %v2178
    %v2407 = vadd.f32 %v1893, %v2183
    %v2408 = vadd.f32 %v1894, %v2186
    %v2409 = vadd.f32 %v1895, %v2191
    %v2410 = vadd.f32 %v1896, %v2194
    %v2411 = vadd.f32 %v1897, %v2199
    %v2412 = vadd.f32 %v1898, %v2202
    %v2413 = vadd.f32 %v1899, %v2207
    %v2414 = vadd.f32 %v1900, %v2210
    %v2415 = vadd.f32 %v1901, %v2215
    %v2416 = vadd.f32 %v1902, %v2218
    %v2417 = vadd.f32 %v1903, %v2223
    %v2418 = vadd.f32 %v1904, %v2226
    %v2419 = vadd.f32 %v1905, %v2231
    %v2420 = vadd.f32 %v1906, %v2234
    %v2421 = vadd.f32 %v1907, %v2239
    %v2422 = vadd.f32 %v1908, %v2242
    %v2423 = vadd.f32 %v1909, %v2247
    %v2424 = vadd.f32 %v1910, %v2250
    %v2425 = vadd.f32 %v1911, %v2255
    %v2426 = vadd.f32 %v1912, %v2258
    %v2427 = vadd.f32 %v1913, %v2263
    %v2428 = vadd.f32 %v1914, %v2266
    %v2429 = vadd.f32 %v1915, %v2271
    %v2430 = vadd.f32 %v1916, %v2274
    %v2431 = vadd.f32 %v1917, %v2279
    %v2432 = vadd.f32 %v1918, %v2282
    %v2433 = vadd.f32 %v1919, %v2287
    %v2434 = vadd.f32 %v1920, %v2290
    %v2435 = vadd.f32 %v1921, %v2295
    %v2436 = vadd.f32 %v1922, %v2298
    %v2437 = vadd.f32 %v1923, %v2303
    %v2438 = vadd.f32 %v1924, %v2306
    %v2439 = vadd.f32 %v1925, %v2311
    %v2440 = vadd.f32 %v1926, %v2314
    %v2441 = vadd.f32 %v1927, %v2319
    %v2442 = vadd.f32 %v1928, %v2322
    %v2443 = vadd.f32 %v1929, %v2327
    %v2444 = vadd.f32 %v1930, %v2330
    %v2445 = vadd.f32 %v1931, %v2335
    %v2446 = vadd.f32 %v1932, %v2338
    %v2447 = vadd.f32 %v1933, %v2343
    %v2448 = vadd.f32 %v1934, %v2346
    %v2449 = vadd.f32 %v1935, %v2351
    %v2450 = vadd.f32 %v1936, %v2354
    %v2451 = vadd.f32 %v1937, %v2359
    %v2452 = vadd.f32 %v1938, %v2362
    %v2453 = vadd.f32 %v1939, %v2367
    %v2454 = vadd.f32 %v1940, %v2370
    %v2455 = vadd.f32 %v1941, %v2375
    %v2456 = vadd.f32 %v1942, %v2378
    %v2457 = vadd.f32 %v1943, %v2383
    %v2458 = vadd.f32 %v1944, %v2386
    %v2459 = vadd.f32 %v1945, %v2391
    %v2460 = vadd.f32 %v1946, %v2394
    %v2461 = vld [vmem:[%s1432 + $0x2] sm:$0xff]
    %v2462 = vld [vmem:[%s1432 + $0xa] sm:$0xff]
    %v2463 = vld [vmem:[%s1432 + $0x1a] sm:$0xff]
    %v2464 = vld [vmem:[%s1432 + $0x22] sm:$0xff]
    %v2465 = vld [vmem:[%s1432 + $0x32] sm:$0xff]
    %v2466 = vld [vmem:[%s1432 + $0x3a] sm:$0xff]
    %v2467 = vld [vmem:[%s1432 + $0x4a] sm:$0xff]
    %v2468 = vld [vmem:[%s1432 + $0x52] sm:$0xff]
    %v2469 = vld [vmem:[%s1432 + $0x62] sm:$0xff]
    %v2470 = vld [vmem:[%s1432 + $0x6a] sm:$0xff]
    %v2471 = vld [vmem:[%s1432 + $0x7a] sm:$0xff]
    %v2472 = vld [vmem:[%s1432 + $0x82] sm:$0xff]
    %v2473 = vld [vmem:[%s1432 + $0x92] sm:$0xff]
    %v2474 = vld [vmem:[%s1432 + $0x9a] sm:$0xff]
    %v2475 = vld [vmem:[%s1432 + $0xaa] sm:$0xff]
    %v2476 = vld [vmem:[%s1432 + $0xb2] sm:$0xff]
    %v2477 = vld [vmem:[%s1432 + $0xc2] sm:$0xff]
    %v2478 = vld [vmem:[%s1432 + $0xca] sm:$0xff]
    %v2479 = vld [vmem:[%s1432 + $0xda] sm:$0xff]
    %v2480 = vld [vmem:[%s1432 + $0xe2] sm:$0xff]
    %v2481 = vld [vmem:[%s1432 + $0xf2] sm:$0xff]
    %v2482 = vld [vmem:[%s1432 + $0xfa] sm:$0xff]
    %v2483 = vld [vmem:[%s1432 + $0x10a] sm:$0xff]
    %v2484 = vld [vmem:[%s1432 + $0x112] sm:$0xff]
    %v2485 = vld [vmem:[%s1432 + $0x122] sm:$0xff]
    %v2486 = vld [vmem:[%s1432 + $0x12a] sm:$0xff]
    %v2487 = vld [vmem:[%s1432 + $0x13a] sm:$0xff]
    %v2488 = vld [vmem:[%s1432 + $0x142] sm:$0xff]
    %v2489 = vld [vmem:[%s1432 + $0x152] sm:$0xff]
    %v2490 = vld [vmem:[%s1432 + $0x15a] sm:$0xff]
    %v2491 = vld [vmem:[%s1432 + $0x16a] sm:$0xff]
    %v2492 = vld [vmem:[%s1432 + $0x172] sm:$0xff]
    %v2493 = vld [vmem:[%s1432 + $0x1b2] sm:$0xff]
    %v2494 = vld [vmem:[%s1432 + $0x1ba] sm:$0xff]
    %v2495 = vld [vmem:[%s1432 + $0x1ca] sm:$0xff]
    %v2496 = vld [vmem:[%s1432 + $0x1d2] sm:$0xff]
    %v2497 = vld [vmem:[%s1432 + $0x1e2] sm:$0xff]
    %v2498 = vld [vmem:[%s1432 + $0x1ea] sm:$0xff]
    %v2499 = vld [vmem:[%s1432 + $0x1fa] sm:$0xff]
    %v2500 = vld [vmem:[%s1432 + $0x202] sm:$0xff]
    %v2501 = vld [vmem:[%s1432 + $0x212] sm:$0xff]
    %v2502 = vld [vmem:[%s1432 + $0x21a] sm:$0xff]
    %v2503 = vld [vmem:[%s1432 + $0x22a] sm:$0xff]
    %v2504 = vld [vmem:[%s1432 + $0x232] sm:$0xff]
    %v2505 = vld [vmem:[%s1432 + $0x242] sm:$0xff]
    %v2506 = vld [vmem:[%s1432 + $0x24a] sm:$0xff]
    %v2507 = vld [vmem:[%s1432 + $0x25a] sm:$0xff]
    %v2508 = vld [vmem:[%s1432 + $0x262] sm:$0xff]
    %v2509 = vld [vmem:[%s1432 + $0x272] sm:$0xff]
    %v2510 = vld [vmem:[%s1432 + $0x27a] sm:$0xff]
    %v2511 = vld [vmem:[%s1432 + $0x28a] sm:$0xff]
    %v2512 = vld [vmem:[%s1432 + $0x292] sm:$0xff]
    %v2513 = vld [vmem:[%s1432 + $0x2a2] sm:$0xff]
    %v2514 = vld [vmem:[%s1432 + $0x2aa] sm:$0xff]
    %v2515 = vld [vmem:[%s1432 + $0x2ba] sm:$0xff]
    %v2516 = vld [vmem:[%s1432 + $0x2c2] sm:$0xff]
    %v2517 = vld [vmem:[%s1432 + $0x2d2] sm:$0xff]
    %v2518 = vld [vmem:[%s1432 + $0x2da] sm:$0xff]
    %v2519 = vld [vmem:[%s1432 + $0x2ea] sm:$0xff]
    %v2520 = vld [vmem:[%s1432 + $0x2f2] sm:$0xff]
    %v2521 = vld [vmem:[%s1432 + $0x302] sm:$0xff]
    %v2522 = vld [vmem:[%s1432 + $0x30a] sm:$0xff]
    %v2523 = vld [vmem:[%s1432 + $0x31a] sm:$0xff]
    %v2524 = vld [vmem:[%s1432 + $0x322] sm:$0xff]
    %v2525 = vpack.c.bf16 %v2462, %v2461
    %v2526 = vpack.c.bf16 %v2464, %v2463
    %v2527 = vpack.c.bf16 %v2466, %v2465
    %v2528 = vpack.c.bf16 %v2468, %v2467
    %v2529 = vpack.c.bf16 %v2470, %v2469
    %v2530 = vpack.c.bf16 %v2472, %v2471
    %v2531 = vpack.c.bf16 %v2474, %v2473
    %v2532 = vpack.c.bf16 %v2476, %v2475
    %v2533 = vpack.c.bf16 %v2478, %v2477
    %v2534 = vpack.c.bf16 %v2480, %v2479
    %v2535 = vpack.c.bf16 %v2482, %v2481
    %v2536 = vpack.c.bf16 %v2484, %v2483
    %v2537 = vpack.c.bf16 %v2486, %v2485
    %v2538 = vpack.c.bf16 %v2488, %v2487
    %v2539 = vpack.c.bf16 %v2490, %v2489
    %v2540 = vpack.c.bf16 %v2492, %v2491
    %v2541 = vpack.c.bf16 %v2494, %v2493
    %v2542 = vpack.c.bf16 %v2496, %v2495
    %v2543 = vpack.c.bf16 %v2498, %v2497
    %v2544 = vpack.c.bf16 %v2500, %v2499
    %v2545 = vpack.c.bf16 %v2502, %v2501
    %v2546 = vpack.c.bf16 %v2504, %v2503
    %v2547 = vpack.c.bf16 %v2506, %v2505
    %v2548 = vpack.c.bf16 %v2508, %v2507
    %v2549 = vpack.c.bf16 %v2510, %v2509
    %v2550 = vpack.c.bf16 %v2512, %v2511
    %v2551 = vpack.c.bf16 %v2514, %v2513
    %v2552 = vpack.c.bf16 %v2516, %v2515
    %v2553 = vpack.c.bf16 %v2518, %v2517
    %v2554 = vpack.c.bf16 %v2520, %v2519
    %v2555 = vpack.c.bf16 %v2522, %v2521
    %v2556 = vpack.c.bf16 %v2524, %v2523
    %s2557 = scalar_lea.vmem %s1, 320
    %v2558 = vld [vmem:[%s2557] sm:$0xf]
    %v2559 = vld [vmem:[%s2557 + $0x4] sm:$0xf]
    %v2560 = vld [vmem:[%s2557 + $0x8] sm:$0xf]
    %v2561 = vld [vmem:[%s2557 + $0xc] sm:$0xf]
    %v2562 = vld [vmem:[%s2557 + $0x10] sm:$0xf]
    %v2563 = vld [vmem:[%s2557 + $0x14] sm:$0xf]
    %v2564 = vld [vmem:[%s2557 + $0x18] sm:$0xf]
    %v2565 = vld [vmem:[%s2557 + $0x1c] sm:$0xf]
    %v2566 = vld [vmem:[%s2557 + $0x20] sm:$0xf]
    %v2567 = vld [vmem:[%s2557 + $0x24] sm:$0xf]
    %v2568 = vld [vmem:[%s2557 + $0x28] sm:$0xf]
    %v2569 = vld [vmem:[%s2557 + $0x2c] sm:$0xf]
    %v2570 = vld [vmem:[%s2557 + $0x30] sm:$0xf]
    %v2571 = vld [vmem:[%s2557 + $0x34] sm:$0xf]
    %v2572 = vld [vmem:[%s2557 + $0x38] sm:$0xf]
    %v2573 = vld [vmem:[%s2557 + $0x3c] sm:$0xf]
    %v2590 = vunpack.c.l.b16 %v2558
    %v2591 = vunpack.c.l.b16 %v2559
    %v2592 = vunpack.c.l.b16 %v2560
    %v2593 = vunpack.c.l.b16 %v2561
    %v2594 = vunpack.c.l.b16 %v2562
    %v2595 = vunpack.c.l.b16 %v2563
    %v2596 = vunpack.c.l.b16 %v2564
    %v2597 = vunpack.c.l.b16 %v2565
    %v2598 = vunpack.c.l.b16 %v2566
    %v2599 = vunpack.c.l.b16 %v2567
    %v2600 = vunpack.c.l.b16 %v2568
    %v2601 = vunpack.c.l.b16 %v2569
    %v2602 = vunpack.c.l.b16 %v2570
    %v2603 = vunpack.c.l.b16 %v2571
    %v2604 = vunpack.c.l.b16 %v2572
    %v2605 = vunpack.c.l.b16 %v2573
    %v2606 = vpack.c.b16 %v2591, %v2590
    %v2607 = vpack.c.b16 %v2593, %v2592
    %v2608 = vpack.c.b16 %v2595, %v2594
    %v2609 = vpack.c.b16 %v2597, %v2596
    %v2610 = vpack.c.b16 %v2599, %v2598
    %v2611 = vpack.c.b16 %v2601, %v2600
    %v2612 = vpack.c.b16 %v2603, %v2602
    %v2613 = vpack.c.b16 %v2605, %v2604
    %2622 = vmatprep.subr.bf16.mxu0 0
    %2623 = vmatpush1.bf16.msra.mxu0 %v2613
    %2624 = vmatprep.subr.bf16.mxu0 0
    %2625 = vmatpush1.bf16.msra.mxu0 %v2612
    %2626 = vmatprep.subr.bf16.mxu0 0
    %2627 = vmatpush1.bf16.msra.mxu0 %v2611
    %2628 = vmatprep.subr.bf16.mxu0 0
    %2629 = vmatpush1.bf16.msra.mxu0 %v2610
    %2630 = vmatprep.subr.bf16.mxu0 0
    %2631 = vmatpush1.bf16.msra.mxu0 %v2609
    %2632 = vmatprep.subr.bf16.mxu0 0
    %2633 = vmatpush1.bf16.msra.mxu0 %v2608
    %2634 = vmatprep.subr.bf16.mxu0 0
    %2635 = vmatpush1.bf16.msra.mxu0 %v2607
    %2636 = vmatprep.subr.bf16.mxu0 0
    %2637 = vmatpush1.bf16.msra.mxu0 %v2606
    %2638 = vmatprep.subr.bf16.mxu0 0
    %2639 = vmatpush2.bf16.msra.mxu0 0
    %2640 = vmatprep.subr.bf16.mxu0 0
    %2641 = vmatpush2.bf16.msra.mxu0 0
    %2642 = vmatprep.subr.bf16.mxu0 0
    %2643 = vmatpush2.bf16.msra.mxu0 0
    %2644 = vmatprep.subr.bf16.mxu0 0
    %2645 = vmatpush2.bf16.msra.mxu0 0
    %2646 = vmatprep.subr.bf16.mxu0 0
    %2647 = vmatpush2.bf16.msra.mxu0 0
    %2648 = vmatprep.subr.bf16.mxu0 0
    %2649 = vmatpush2.bf16.msra.mxu0 0
    %2650 = vmatprep.subr.bf16.mxu0 0
    %2651 = vmatpush2.bf16.msra.mxu0 0
    %2652 = vmatprep.subr.bf16.mxu0 0
    %2653 = vmatpush2.bf16.msra.mxu0 0
    %2654 = vmatprep.mubr.bf16.mxu0 0
    %2655 = vmatmul.mubr.bf16.gmra.mxu0 %v2525
    %v2656 = vpop.f32.mrf.mxu0
    %v2657 = vadd.f32 0.0, %v2656
    %v2658 = vpop.f32.mrf.mxu0
    %v2659 = vpop.f32.mrf.mxu0
    %v2660 = vadd.f32 0.0, %v2659
    %v2661 = vpop.f32.mrf.mxu0
    %2662 = vmatprep.mubr.bf16.mxu0 0
    %2663 = vmatmul.mubr.bf16.gmra.mxu0 %v2526
    %v2664 = vpop.f32.mrf.mxu0
    %v2665 = vadd.f32 0.0, %v2664
    %v2666 = vpop.f32.mrf.mxu0
    %v2667 = vpop.f32.mrf.mxu0
    %v2668 = vadd.f32 0.0, %v2667
    %v2669 = vpop.f32.mrf.mxu0
    %2670 = vmatprep.mubr.bf16.mxu0 0
    %2671 = vmatmul.mubr.bf16.gmra.mxu0 %v2527
    %v2672 = vpop.f32.mrf.mxu0
    %v2673 = vadd.f32 0.0, %v2672
    %v2674 = vpop.f32.mrf.mxu0
    %v2675 = vpop.f32.mrf.mxu0
    %v2676 = vadd.f32 0.0, %v2675
    %v2677 = vpop.f32.mrf.mxu0
    %2678 = vmatprep.mubr.bf16.mxu0 0
    %2679 = vmatmul.mubr.bf16.gmra.mxu0 %v2528
    %v2680 = vpop.f32.mrf.mxu0
    %v2681 = vadd.f32 0.0, %v2680
    %v2682 = vpop.f32.mrf.mxu0
    %v2683 = vpop.f32.mrf.mxu0
    %v2684 = vadd.f32 0.0, %v2683
    %v2685 = vpop.f32.mrf.mxu0
    %2686 = vmatprep.mubr.bf16.mxu0 0
    %2687 = vmatmul.mubr.bf16.gmra.mxu0 %v2529
    %v2688 = vpop.f32.mrf.mxu0
    %v2689 = vadd.f32 0.0, %v2688
    %v2690 = vpop.f32.mrf.mxu0
    %v2691 = vpop.f32.mrf.mxu0
    %v2692 = vadd.f32 0.0, %v2691
    %v2693 = vpop.f32.mrf.mxu0
    %2694 = vmatprep.mubr.bf16.mxu0 0
    %2695 = vmatmul.mubr.bf16.gmra.mxu0 %v2530
    %v2696 = vpop.f32.mrf.mxu0
    %v2697 = vadd.f32 0.0, %v2696
    %v2698 = vpop.f32.mrf.mxu0
    %v2699 = vpop.f32.mrf.mxu0
    %v2700 = vadd.f32 0.0, %v2699
    %v2701 = vpop.f32.mrf.mxu0
    %2702 = vmatprep.mubr.bf16.mxu0 0
    %2703 = vmatmul.mubr.bf16.gmra.mxu0 %v2531
    %v2704 = vpop.f32.mrf.mxu0
    %v2705 = vadd.f32 0.0, %v2704
    %v2706 = vpop.f32.mrf.mxu0
    %v2707 = vpop.f32.mrf.mxu0
    %v2708 = vadd.f32 0.0, %v2707
    %v2709 = vpop.f32.mrf.mxu0
    %2710 = vmatprep.mubr.bf16.mxu0 0
    %2711 = vmatmul.mubr.bf16.gmra.mxu0 %v2532
    %v2712 = vpop.f32.mrf.mxu0
    %v2713 = vadd.f32 0.0, %v2712
    %v2714 = vpop.f32.mrf.mxu0
    %v2715 = vpop.f32.mrf.mxu0
    %v2716 = vadd.f32 0.0, %v2715
    %v2717 = vpop.f32.mrf.mxu0
    %2718 = vmatprep.mubr.bf16.mxu0 0
    %2719 = vmatmul.mubr.bf16.gmra.mxu0 %v2533
    %v2720 = vpop.f32.mrf.mxu0
    %v2721 = vadd.f32 0.0, %v2720
    %v2722 = vpop.f32.mrf.mxu0
    %v2723 = vpop.f32.mrf.mxu0
    %v2724 = vadd.f32 0.0, %v2723
    %v2725 = vpop.f32.mrf.mxu0
    %2726 = vmatprep.mubr.bf16.mxu0 0
    %2727 = vmatmul.mubr.bf16.gmra.mxu0 %v2534
    %v2728 = vpop.f32.mrf.mxu0
    %v2729 = vadd.f32 0.0, %v2728
    %v2730 = vpop.f32.mrf.mxu0
    %v2731 = vpop.f32.mrf.mxu0
    %v2732 = vadd.f32 0.0, %v2731
    %v2733 = vpop.f32.mrf.mxu0
    %2734 = vmatprep.mubr.bf16.mxu0 0
    %2735 = vmatmul.mubr.bf16.gmra.mxu0 %v2535
    %v2736 = vpop.f32.mrf.mxu0
    %v2737 = vadd.f32 0.0, %v2736
    %v2738 = vpop.f32.mrf.mxu0
    %v2739 = vpop.f32.mrf.mxu0
    %v2740 = vadd.f32 0.0, %v2739
    %v2741 = vpop.f32.mrf.mxu0
    %2742 = vmatprep.mubr.bf16.mxu0 0
    %2743 = vmatmul.mubr.bf16.gmra.mxu0 %v2536
    %v2744 = vpop.f32.mrf.mxu0
    %v2745 = vadd.f32 0.0, %v2744
    %v2746 = vpop.f32.mrf.mxu0
    %v2747 = vpop.f32.mrf.mxu0
    %v2748 = vadd.f32 0.0, %v2747
    %v2749 = vpop.f32.mrf.mxu0
    %2750 = vmatprep.mubr.bf16.mxu0 0
    %2751 = vmatmul.mubr.bf16.gmra.mxu0 %v2537
    %v2752 = vpop.f32.mrf.mxu0
    %v2753 = vadd.f32 0.0, %v2752
    %v2754 = vpop.f32.mrf.mxu0
    %v2755 = vpop.f32.mrf.mxu0
    %v2756 = vadd.f32 0.0, %v2755
    %v2757 = vpop.f32.mrf.mxu0
    %2758 = vmatprep.mubr.bf16.mxu0 0
    %2759 = vmatmul.mubr.bf16.gmra.mxu0 %v2538
    %v2760 = vpop.f32.mrf.mxu0
    %v2761 = vadd.f32 0.0, %v2760
    %v2762 = vpop.f32.mrf.mxu0
    %v2763 = vpop.f32.mrf.mxu0
    %v2764 = vadd.f32 0.0, %v2763
    %v2765 = vpop.f32.mrf.mxu0
    %2766 = vmatprep.mubr.bf16.mxu0 0
    %2767 = vmatmul.mubr.bf16.gmra.mxu0 %v2539
    %v2768 = vpop.f32.mrf.mxu0
    %v2769 = vadd.f32 0.0, %v2768
    %v2770 = vpop.f32.mrf.mxu0
    %v2771 = vpop.f32.mrf.mxu0
    %v2772 = vadd.f32 0.0, %v2771
    %v2773 = vpop.f32.mrf.mxu0
    %2774 = vmatprep.mubr.bf16.mxu0 0
    %2775 = vmatmul.mubr.bf16.gmra.mxu0 %v2540
    %v2776 = vpop.f32.mrf.mxu0
    %v2777 = vadd.f32 0.0, %v2776
    %v2778 = vpop.f32.mrf.mxu0
    %v2779 = vpop.f32.mrf.mxu0
    %v2780 = vadd.f32 0.0, %v2779
    %v2781 = vpop.f32.mrf.mxu0
    %2782 = vmatprep.mubr.bf16.mxu0 0
    %2783 = vmatmul.mubr.bf16.gmra.mxu0 %v2541
    %v2784 = vpop.f32.mrf.mxu0
    %v2785 = vadd.f32 0.0, %v2784
    %v2786 = vpop.f32.mrf.mxu0
    %v2787 = vpop.f32.mrf.mxu0
    %v2788 = vadd.f32 0.0, %v2787
    %v2789 = vpop.f32.mrf.mxu0
    %2790 = vmatprep.mubr.bf16.mxu0 0
    %2791 = vmatmul.mubr.bf16.gmra.mxu0 %v2542
    %v2792 = vpop.f32.mrf.mxu0
    %v2793 = vadd.f32 0.0, %v2792
    %v2794 = vpop.f32.mrf.mxu0
    %v2795 = vpop.f32.mrf.mxu0
    %v2796 = vadd.f32 0.0, %v2795
    %v2797 = vpop.f32.mrf.mxu0
    %2798 = vmatprep.mubr.bf16.mxu0 0
    %2799 = vmatmul.mubr.bf16.gmra.mxu0 %v2543
    %v2800 = vpop.f32.mrf.mxu0
    %v2801 = vadd.f32 0.0, %v2800
    %v2802 = vpop.f32.mrf.mxu0
    %v2803 = vpop.f32.mrf.mxu0
    %v2804 = vadd.f32 0.0, %v2803
    %v2805 = vpop.f32.mrf.mxu0
    %2806 = vmatprep.mubr.bf16.mxu0 0
    %2807 = vmatmul.mubr.bf16.gmra.mxu0 %v2544
    %v2808 = vpop.f32.mrf.mxu0
    %v2809 = vadd.f32 0.0, %v2808
    %v2810 = vpop.f32.mrf.mxu0
    %v2811 = vpop.f32.mrf.mxu0
    %v2812 = vadd.f32 0.0, %v2811
    %v2813 = vpop.f32.mrf.mxu0
    %2814 = vmatprep.mubr.bf16.mxu0 0
    %2815 = vmatmul.mubr.bf16.gmra.mxu0 %v2545
    %v2816 = vpop.f32.mrf.mxu0
    %v2817 = vadd.f32 0.0, %v2816
    %v2818 = vpop.f32.mrf.mxu0
    %v2819 = vpop.f32.mrf.mxu0
    %v2820 = vadd.f32 0.0, %v2819
    %v2821 = vpop.f32.mrf.mxu0
    %2822 = vmatprep.mubr.bf16.mxu0 0
    %2823 = vmatmul.mubr.bf16.gmra.mxu0 %v2546
    %v2824 = vpop.f32.mrf.mxu0
    %v2825 = vadd.f32 0.0, %v2824
    %v2826 = vpop.f32.mrf.mxu0
    %v2827 = vpop.f32.mrf.mxu0
    %v2828 = vadd.f32 0.0, %v2827
    %v2829 = vpop.f32.mrf.mxu0
    %2830 = vmatprep.mubr.bf16.mxu0 0
    %2831 = vmatmul.mubr.bf16.gmra.mxu0 %v2547
    %v2832 = vpop.f32.mrf.mxu0
    %v2833 = vadd.f32 0.0, %v2832
    %v2834 = vpop.f32.mrf.mxu0
    %v2835 = vpop.f32.mrf.mxu0
    %v2836 = vadd.f32 0.0, %v2835
    %v2837 = vpop.f32.mrf.mxu0
    %2838 = vmatprep.mubr.bf16.mxu0 0
    %2839 = vmatmul.mubr.bf16.gmra.mxu0 %v2548
    %v2840 = vpop.f32.mrf.mxu0
    %v2841 = vadd.f32 0.0, %v2840
    %v2842 = vpop.f32.mrf.mxu0
    %v2843 = vpop.f32.mrf.mxu0
    %v2844 = vadd.f32 0.0, %v2843
    %v2845 = vpop.f32.mrf.mxu0
    %2846 = vmatprep.mubr.bf16.mxu0 0
    %2847 = vmatmul.mubr.bf16.gmra.mxu0 %v2549
    %v2848 = vpop.f32.mrf.mxu0
    %v2849 = vadd.f32 0.0, %v2848
    %v2850 = vpop.f32.mrf.mxu0
    %v2851 = vpop.f32.mrf.mxu0
    %v2852 = vadd.f32 0.0, %v2851
    %v2853 = vpop.f32.mrf.mxu0
    %2854 = vmatprep.mubr.bf16.mxu0 0
    %2855 = vmatmul.mubr.bf16.gmra.mxu0 %v2550
    %v2856 = vpop.f32.mrf.mxu0
    %v2857 = vadd.f32 0.0, %v2856
    %v2858 = vpop.f32.mrf.mxu0
    %v2859 = vpop.f32.mrf.mxu0
    %v2860 = vadd.f32 0.0, %v2859
    %v2861 = vpop.f32.mrf.mxu0
    %2862 = vmatprep.mubr.bf16.mxu0 0
    %2863 = vmatmul.mubr.bf16.gmra.mxu0 %v2551
    %v2864 = vpop.f32.mrf.mxu0
    %v2865 = vadd.f32 0.0, %v2864
    %v2866 = vpop.f32.mrf.mxu0
    %v2867 = vpop.f32.mrf.mxu0
    %v2868 = vadd.f32 0.0, %v2867
    %v2869 = vpop.f32.mrf.mxu0
    %2870 = vmatprep.mubr.bf16.mxu0 0
    %2871 = vmatmul.mubr.bf16.gmra.mxu0 %v2552
    %v2872 = vpop.f32.mrf.mxu0
    %v2873 = vadd.f32 0.0, %v2872
    %v2874 = vpop.f32.mrf.mxu0
    %v2875 = vpop.f32.mrf.mxu0
    %v2876 = vadd.f32 0.0, %v2875
    %v2877 = vpop.f32.mrf.mxu0
    %2878 = vmatprep.mubr.bf16.mxu0 0
    %2879 = vmatmul.mubr.bf16.gmra.mxu0 %v2553
    %v2880 = vpop.f32.mrf.mxu0
    %v2881 = vadd.f32 0.0, %v2880
    %v2882 = vpop.f32.mrf.mxu0
    %v2883 = vpop.f32.mrf.mxu0
    %v2884 = vadd.f32 0.0, %v2883
    %v2885 = vpop.f32.mrf.mxu0
    %2886 = vmatprep.mubr.bf16.mxu0 0
    %2887 = vmatmul.mubr.bf16.gmra.mxu0 %v2554
    %v2888 = vpop.f32.mrf.mxu0
    %v2889 = vadd.f32 0.0, %v2888
    %v2890 = vpop.f32.mrf.mxu0
    %v2891 = vpop.f32.mrf.mxu0
    %v2892 = vadd.f32 0.0, %v2891
    %v2893 = vpop.f32.mrf.mxu0
    %2894 = vmatprep.mubr.bf16.mxu0 0
    %2895 = vmatmul.mubr.bf16.gmra.mxu0 %v2555
    %v2896 = vpop.f32.mrf.mxu0
    %v2897 = vadd.f32 0.0, %v2896
    %v2898 = vpop.f32.mrf.mxu0
    %v2899 = vpop.f32.mrf.mxu0
    %v2900 = vadd.f32 0.0, %v2899
    %v2901 = vpop.f32.mrf.mxu0
    %2902 = vmatprep.mubr.bf16.mxu0 0
    %2903 = vmatmul.mubr.bf16.gmra.mxu0 %v2556
    %v2904 = vpop.f32.mrf.mxu0
    %v2905 = vadd.f32 0.0, %v2904
    %v2906 = vpop.f32.mrf.mxu0
    %v2907 = vpop.f32.mrf.mxu0
    %v2908 = vadd.f32 0.0, %v2907
    %v2909 = vpop.f32.mrf.mxu0
    %2910 = vdwg.mxu0
    %v2911 = vadd.f32 %v2397, %v2657
    %v2912 = vadd.f32 %v2398, %v2660
    %v2913 = vadd.f32 %v2399, %v2665
    %v2914 = vadd.f32 %v2400, %v2668
    %v2915 = vadd.f32 %v2401, %v2673
    %v2916 = vadd.f32 %v2402, %v2676
    %v2917 = vadd.f32 %v2403, %v2681
    %v2918 = vadd.f32 %v2404, %v2684
    %v2919 = vadd.f32 %v2405, %v2689
    %v2920 = vadd.f32 %v2406, %v2692
    %v2921 = vadd.f32 %v2407, %v2697
    %v2922 = vadd.f32 %v2408, %v2700
    %v2923 = vadd.f32 %v2409, %v2705
    %v2924 = vadd.f32 %v2410, %v2708
    %v2925 = vadd.f32 %v2411, %v2713
    %v2926 = vadd.f32 %v2412, %v2716
    %v2927 = vadd.f32 %v2413, %v2721
    %v2928 = vadd.f32 %v2414, %v2724
    %v2929 = vadd.f32 %v2415, %v2729
    %v2930 = vadd.f32 %v2416, %v2732
    %v2931 = vadd.f32 %v2417, %v2737
    %v2932 = vadd.f32 %v2418, %v2740
    %v2933 = vadd.f32 %v2419, %v2745
    %v2934 = vadd.f32 %v2420, %v2748
    %v2935 = vadd.f32 %v2421, %v2753
    %v2936 = vadd.f32 %v2422, %v2756
    %v2937 = vadd.f32 %v2423, %v2761
    %v2938 = vadd.f32 %v2424, %v2764
    %v2939 = vadd.f32 %v2425, %v2769
    %v2940 = vadd.f32 %v2426, %v2772
    %v2941 = vadd.f32 %v2427, %v2777
    %v2942 = vadd.f32 %v2428, %v2780
    %v2943 = vadd.f32 %v2429, %v2785
    %v2944 = vadd.f32 %v2430, %v2788
    %v2945 = vadd.f32 %v2431, %v2793
    %v2946 = vadd.f32 %v2432, %v2796
    %v2947 = vadd.f32 %v2433, %v2801
    %v2948 = vadd.f32 %v2434, %v2804
    %v2949 = vadd.f32 %v2435, %v2809
    %v2950 = vadd.f32 %v2436, %v2812
    %v2951 = vadd.f32 %v2437, %v2817
    %v2952 = vadd.f32 %v2438, %v2820
    %v2953 = vadd.f32 %v2439, %v2825
    %v2954 = vadd.f32 %v2440, %v2828
    %v2955 = vadd.f32 %v2441, %v2833
    %v2956 = vadd.f32 %v2442, %v2836
    %v2957 = vadd.f32 %v2443, %v2841
    %v2958 = vadd.f32 %v2444, %v2844
    %v2959 = vadd.f32 %v2445, %v2849
    %v2960 = vadd.f32 %v2446, %v2852
    %v2961 = vadd.f32 %v2447, %v2857
    %v2962 = vadd.f32 %v2448, %v2860
    %v2963 = vadd.f32 %v2449, %v2865
    %v2964 = vadd.f32 %v2450, %v2868
    %v2965 = vadd.f32 %v2451, %v2873
    %v2966 = vadd.f32 %v2452, %v2876
    %v2967 = vadd.f32 %v2453, %v2881
    %v2968 = vadd.f32 %v2454, %v2884
    %v2969 = vadd.f32 %v2455, %v2889
    %v2970 = vadd.f32 %v2456, %v2892
    %v2971 = vadd.f32 %v2457, %v2897
    %v2972 = vadd.f32 %v2458, %v2900
    %v2973 = vadd.f32 %v2459, %v2905
    %v2974 = vadd.f32 %v2460, %v2908
    %s2975 = scalar_lea.vmem %s0, 48
    %v2976 = vld [vmem:[%s2975] sm:$0xff]
    %v2977 = vld [vmem:[%s2975 + $0x8] sm:$0xff]
    %v2978 = vld [vmem:[%s2975 + $0x18] sm:$0xff]
    %v2979 = vld [vmem:[%s2975 + $0x20] sm:$0xff]
    %v2980 = vld [vmem:[%s2975 + $0x30] sm:$0xff]
    %v2981 = vld [vmem:[%s2975 + $0x38] sm:$0xff]
    %v2982 = vld [vmem:[%s2975 + $0x48] sm:$0xff]
    %v2983 = vld [vmem:[%s2975 + $0x50] sm:$0xff]
    %v2984 = vld [vmem:[%s2975 + $0x60] sm:$0xff]
    %v2985 = vld [vmem:[%s2975 + $0x68] sm:$0xff]
    %v2986 = vld [vmem:[%s2975 + $0x78] sm:$0xff]
    %v2987 = vld [vmem:[%s2975 + $0x80] sm:$0xff]
    %v2988 = vld [vmem:[%s2975 + $0x90] sm:$0xff]
    %v2989 = vld [vmem:[%s2975 + $0x98] sm:$0xff]
    %v2990 = vld [vmem:[%s2975 + $0xa8] sm:$0xff]
    %v2991 = vld [vmem:[%s2975 + $0xb0] sm:$0xff]
    %v2992 = vld [vmem:[%s2975 + $0xc0] sm:$0xff]
    %v2993 = vld [vmem:[%s2975 + $0xc8] sm:$0xff]
    %v2994 = vld [vmem:[%s2975 + $0xd8] sm:$0xff]
    %v2995 = vld [vmem:[%s2975 + $0xe0] sm:$0xff]
    %v2996 = vld [vmem:[%s2975 + $0xf0] sm:$0xff]
    %v2997 = vld [vmem:[%s2975 + $0xf8] sm:$0xff]
    %v2998 = vld [vmem:[%s2975 + $0x108] sm:$0xff]
    %v2999 = vld [vmem:[%s2975 + $0x110] sm:$0xff]
    %v3000 = vld [vmem:[%s2975 + $0x120] sm:$0xff]
    %v3001 = vld [vmem:[%s2975 + $0x128] sm:$0xff]
    %v3002 = vld [vmem:[%s2975 + $0x138] sm:$0xff]
    %v3003 = vld [vmem:[%s2975 + $0x140] sm:$0xff]
    %v3004 = vld [vmem:[%s2975 + $0x150] sm:$0xff]
    %v3005 = vld [vmem:[%s2975 + $0x158] sm:$0xff]
    %v3006 = vld [vmem:[%s2975 + $0x168] sm:$0xff]
    %v3007 = vld [vmem:[%s2975 + $0x170] sm:$0xff]
    %v3008 = vld [vmem:[%s2975 + $0x1b0] sm:$0xff]
    %v3009 = vld [vmem:[%s2975 + $0x1b8] sm:$0xff]
    %v3010 = vld [vmem:[%s2975 + $0x1c8] sm:$0xff]
    %v3011 = vld [vmem:[%s2975 + $0x1d0] sm:$0xff]
    %v3012 = vld [vmem:[%s2975 + $0x1e0] sm:$0xff]
    %v3013 = vld [vmem:[%s2975 + $0x1e8] sm:$0xff]
    %v3014 = vld [vmem:[%s2975 + $0x1f8] sm:$0xff]
    %v3015 = vld [vmem:[%s2975 + $0x200] sm:$0xff]
    %v3016 = vld [vmem:[%s2975 + $0x210] sm:$0xff]
    %v3017 = vld [vmem:[%s2975 + $0x218] sm:$0xff]
    %v3018 = vld [vmem:[%s2975 + $0x228] sm:$0xff]
    %v3019 = vld [vmem:[%s2975 + $0x230] sm:$0xff]
    %v3020 = vld [vmem:[%s2975 + $0x240] sm:$0xff]
    %v3021 = vld [vmem:[%s2975 + $0x248] sm:$0xff]
    %v3022 = vld [vmem:[%s2975 + $0x258] sm:$0xff]
    %v3023 = vld [vmem:[%s2975 + $0x260] sm:$0xff]
    %v3024 = vld [vmem:[%s2975 + $0x270] sm:$0xff]
    %v3025 = vld [vmem:[%s2975 + $0x278] sm:$0xff]
    %v3026 = vld [vmem:[%s2975 + $0x288] sm:$0xff]
    %v3027 = vld [vmem:[%s2975 + $0x290] sm:$0xff]
    %v3028 = vld [vmem:[%s2975 + $0x2a0] sm:$0xff]
    %v3029 = vld [vmem:[%s2975 + $0x2a8] sm:$0xff]
    %v3030 = vld [vmem:[%s2975 + $0x2b8] sm:$0xff]
    %v3031 = vld [vmem:[%s2975 + $0x2c0] sm:$0xff]
    %v3032 = vld [vmem:[%s2975 + $0x2d0] sm:$0xff]
    %v3033 = vld [vmem:[%s2975 + $0x2d8] sm:$0xff]
    %v3034 = vld [vmem:[%s2975 + $0x2e8] sm:$0xff]
    %v3035 = vld [vmem:[%s2975 + $0x2f0] sm:$0xff]
    %v3036 = vld [vmem:[%s2975 + $0x300] sm:$0xff]
    %v3037 = vld [vmem:[%s2975 + $0x308] sm:$0xff]
    %v3038 = vld [vmem:[%s2975 + $0x318] sm:$0xff]
    %v3039 = vld [vmem:[%s2975 + $0x320] sm:$0xff]
    %v3040 = vpack.c.bf16 %v2977, %v2976
    %v3041 = vpack.c.bf16 %v2979, %v2978
    %v3042 = vpack.c.bf16 %v2981, %v2980
    %v3043 = vpack.c.bf16 %v2983, %v2982
    %v3044 = vpack.c.bf16 %v2985, %v2984
    %v3045 = vpack.c.bf16 %v2987, %v2986
    %v3046 = vpack.c.bf16 %v2989, %v2988
    %v3047 = vpack.c.bf16 %v2991, %v2990
    %v3048 = vpack.c.bf16 %v2993, %v2992
    %v3049 = vpack.c.bf16 %v2995, %v2994
    %v3050 = vpack.c.bf16 %v2997, %v2996
    %v3051 = vpack.c.bf16 %v2999, %v2998
    %v3052 = vpack.c.bf16 %v3001, %v3000
    %v3053 = vpack.c.bf16 %v3003, %v3002
    %v3054 = vpack.c.bf16 %v3005, %v3004
    %v3055 = vpack.c.bf16 %v3007, %v3006
    %v3056 = vpack.c.bf16 %v3009, %v3008
    %v3057 = vpack.c.bf16 %v3011, %v3010
    %v3058 = vpack.c.bf16 %v3013, %v3012
    %v3059 = vpack.c.bf16 %v3015, %v3014
    %v3060 = vpack.c.bf16 %v3017, %v3016
    %v3061 = vpack.c.bf16 %v3019, %v3018
    %v3062 = vpack.c.bf16 %v3021, %v3020
    %v3063 = vpack.c.bf16 %v3023, %v3022
    %v3064 = vpack.c.bf16 %v3025, %v3024
    %v3065 = vpack.c.bf16 %v3027, %v3026
    %v3066 = vpack.c.bf16 %v3029, %v3028
    %v3067 = vpack.c.bf16 %v3031, %v3030
    %v3068 = vpack.c.bf16 %v3033, %v3032
    %v3069 = vpack.c.bf16 %v3035, %v3034
    %v3070 = vpack.c.bf16 %v3037, %v3036
    %v3071 = vpack.c.bf16 %v3039, %v3038
    %s3072 = scalar_lea.vmem %s1, 384
    %v3073 = vld [vmem:[%s3072] sm:$0xf]
    %v3074 = vld [vmem:[%s3072 + $0x4] sm:$0xf]
    %v3075 = vld [vmem:[%s3072 + $0x8] sm:$0xf]
    %v3076 = vld [vmem:[%s3072 + $0xc] sm:$0xf]
    %v3077 = vld [vmem:[%s3072 + $0x10] sm:$0xf]
    %v3078 = vld [vmem:[%s3072 + $0x14] sm:$0xf]
    %v3079 = vld [vmem:[%s3072 + $0x18] sm:$0xf]
    %v3080 = vld [vmem:[%s3072 + $0x1c] sm:$0xf]
    %v3081 = vld [vmem:[%s3072 + $0x20] sm:$0xf]
    %v3082 = vld [vmem:[%s3072 + $0x24] sm:$0xf]
    %v3083 = vld [vmem:[%s3072 + $0x28] sm:$0xf]
    %v3084 = vld [vmem:[%s3072 + $0x2c] sm:$0xf]
    %v3085 = vld [vmem:[%s3072 + $0x30] sm:$0xf]
    %v3086 = vld [vmem:[%s3072 + $0x34] sm:$0xf]
    %v3087 = vld [vmem:[%s3072 + $0x38] sm:$0xf]
    %v3088 = vld [vmem:[%s3072 + $0x3c] sm:$0xf]
    %v3105 = vunpack.c.l.b16 %v3073
    %v3106 = vunpack.c.l.b16 %v3074
    %v3107 = vunpack.c.l.b16 %v3075
    %v3108 = vunpack.c.l.b16 %v3076
    %v3109 = vunpack.c.l.b16 %v3077
    %v3110 = vunpack.c.l.b16 %v3078
    %v3111 = vunpack.c.l.b16 %v3079
    %v3112 = vunpack.c.l.b16 %v3080
    %v3113 = vunpack.c.l.b16 %v3081
    %v3114 = vunpack.c.l.b16 %v3082
    %v3115 = vunpack.c.l.b16 %v3083
    %v3116 = vunpack.c.l.b16 %v3084
    %v3117 = vunpack.c.l.b16 %v3085
    %v3118 = vunpack.c.l.b16 %v3086
    %v3119 = vunpack.c.l.b16 %v3087
    %v3120 = vunpack.c.l.b16 %v3088
    %v3121 = vpack.c.b16 %v3106, %v3105
    %v3122 = vpack.c.b16 %v3108, %v3107
    %v3123 = vpack.c.b16 %v3110, %v3109
    %v3124 = vpack.c.b16 %v3112, %v3111
    %v3125 = vpack.c.b16 %v3114, %v3113
    %v3126 = vpack.c.b16 %v3116, %v3115
    %v3127 = vpack.c.b16 %v3118, %v3117
    %v3128 = vpack.c.b16 %v3120, %v3119
    %3137 = vmatprep.subr.bf16.mxu0 0
    %3138 = vmatpush1.bf16.msra.mxu0 %v3128
    %3139 = vmatprep.subr.bf16.mxu0 0
    %3140 = vmatpush1.bf16.msra.mxu0 %v3127
    %3141 = vmatprep.subr.bf16.mxu0 0
    %3142 = vmatpush1.bf16.msra.mxu0 %v3126
    %3143 = vmatprep.subr.bf16.mxu0 0
    %3144 = vmatpush1.bf16.msra.mxu0 %v3125
    %3145 = vmatprep.subr.bf16.mxu0 0
    %3146 = vmatpush1.bf16.msra.mxu0 %v3124
    %3147 = vmatprep.subr.bf16.mxu0 0
    %3148 = vmatpush1.bf16.msra.mxu0 %v3123
    %3149 = vmatprep.subr.bf16.mxu0 0
    %3150 = vmatpush1.bf16.msra.mxu0 %v3122
    %3151 = vmatprep.subr.bf16.mxu0 0
    %3152 = vmatpush1.bf16.msra.mxu0 %v3121
    %3153 = vmatprep.subr.bf16.mxu0 0
    %3154 = vmatpush2.bf16.msra.mxu0 0
    %3155 = vmatprep.subr.bf16.mxu0 0
    %3156 = vmatpush2.bf16.msra.mxu0 0
    %3157 = vmatprep.subr.bf16.mxu0 0
    %3158 = vmatpush2.bf16.msra.mxu0 0
    %3159 = vmatprep.subr.bf16.mxu0 0
    %3160 = vmatpush2.bf16.msra.mxu0 0
    %3161 = vmatprep.subr.bf16.mxu0 0
    %3162 = vmatpush2.bf16.msra.mxu0 0
    %3163 = vmatprep.subr.bf16.mxu0 0
    %3164 = vmatpush2.bf16.msra.mxu0 0
    %3165 = vmatprep.subr.bf16.mxu0 0
    %3166 = vmatpush2.bf16.msra.mxu0 0
    %3167 = vmatprep.subr.bf16.mxu0 0
    %3168 = vmatpush2.bf16.msra.mxu0 0
    %3169 = vmatprep.mubr.bf16.mxu0 0
    %3170 = vmatmul.mubr.bf16.gmra.mxu0 %v3040
    %v3171 = vpop.f32.mrf.mxu0
    %v3172 = vadd.f32 0.0, %v3171
    %v3173 = vpop.f32.mrf.mxu0
    %v3174 = vpop.f32.mrf.mxu0
    %v3175 = vadd.f32 0.0, %v3174
    %v3176 = vpop.f32.mrf.mxu0
    %3177 = vmatprep.mubr.bf16.mxu0 0
    %3178 = vmatmul.mubr.bf16.gmra.mxu0 %v3041
    %v3179 = vpop.f32.mrf.mxu0
    %v3180 = vadd.f32 0.0, %v3179
    %v3181 = vpop.f32.mrf.mxu0
    %v3182 = vpop.f32.mrf.mxu0
    %v3183 = vadd.f32 0.0, %v3182
    %v3184 = vpop.f32.mrf.mxu0
    %3185 = vmatprep.mubr.bf16.mxu0 0
    %3186 = vmatmul.mubr.bf16.gmra.mxu0 %v3042
    %v3187 = vpop.f32.mrf.mxu0
    %v3188 = vadd.f32 0.0, %v3187
    %v3189 = vpop.f32.mrf.mxu0
    %v3190 = vpop.f32.mrf.mxu0
    %v3191 = vadd.f32 0.0, %v3190
    %v3192 = vpop.f32.mrf.mxu0
    %3193 = vmatprep.mubr.bf16.mxu0 0
    %3194 = vmatmul.mubr.bf16.gmra.mxu0 %v3043
    %v3195 = vpop.f32.mrf.mxu0
    %v3196 = vadd.f32 0.0, %v3195
    %v3197 = vpop.f32.mrf.mxu0
    %v3198 = vpop.f32.mrf.mxu0
    %v3199 = vadd.f32 0.0, %v3198
    %v3200 = vpop.f32.mrf.mxu0
    %3201 = vmatprep.mubr.bf16.mxu0 0
    %3202 = vmatmul.mubr.bf16.gmra.mxu0 %v3044
    %v3203 = vpop.f32.mrf.mxu0
    %v3204 = vadd.f32 0.0, %v3203
    %v3205 = vpop.f32.mrf.mxu0
    %v3206 = vpop.f32.mrf.mxu0
    %v3207 = vadd.f32 0.0, %v3206
    %v3208 = vpop.f32.mrf.mxu0
    %3209 = vmatprep.mubr.bf16.mxu0 0
    %3210 = vmatmul.mubr.bf16.gmra.mxu0 %v3045
    %v3211 = vpop.f32.mrf.mxu0
    %v3212 = vadd.f32 0.0, %v3211
    %v3213 = vpop.f32.mrf.mxu0
    %v3214 = vpop.f32.mrf.mxu0
    %v3215 = vadd.f32 0.0, %v3214
    %v3216 = vpop.f32.mrf.mxu0
    %3217 = vmatprep.mubr.bf16.mxu0 0
    %3218 = vmatmul.mubr.bf16.gmra.mxu0 %v3046
    %v3219 = vpop.f32.mrf.mxu0
    %v3220 = vadd.f32 0.0, %v3219
    %v3221 = vpop.f32.mrf.mxu0
    %v3222 = vpop.f32.mrf.mxu0
    %v3223 = vadd.f32 0.0, %v3222
    %v3224 = vpop.f32.mrf.mxu0
    %3225 = vmatprep.mubr.bf16.mxu0 0
    %3226 = vmatmul.mubr.bf16.gmra.mxu0 %v3047
    %v3227 = vpop.f32.mrf.mxu0
    %v3228 = vadd.f32 0.0, %v3227
    %v3229 = vpop.f32.mrf.mxu0
    %v3230 = vpop.f32.mrf.mxu0
    %v3231 = vadd.f32 0.0, %v3230
    %v3232 = vpop.f32.mrf.mxu0
    %3233 = vmatprep.mubr.bf16.mxu0 0
    %3234 = vmatmul.mubr.bf16.gmra.mxu0 %v3048
    %v3235 = vpop.f32.mrf.mxu0
    %v3236 = vadd.f32 0.0, %v3235
    %v3237 = vpop.f32.mrf.mxu0
    %v3238 = vpop.f32.mrf.mxu0
    %v3239 = vadd.f32 0.0, %v3238
    %v3240 = vpop.f32.mrf.mxu0
    %3241 = vmatprep.mubr.bf16.mxu0 0
    %3242 = vmatmul.mubr.bf16.gmra.mxu0 %v3049
    %v3243 = vpop.f32.mrf.mxu0
    %v3244 = vadd.f32 0.0, %v3243
    %v3245 = vpop.f32.mrf.mxu0
    %v3246 = vpop.f32.mrf.mxu0
    %v3247 = vadd.f32 0.0, %v3246
    %v3248 = vpop.f32.mrf.mxu0
    %3249 = vmatprep.mubr.bf16.mxu0 0
    %3250 = vmatmul.mubr.bf16.gmra.mxu0 %v3050
    %v3251 = vpop.f32.mrf.mxu0
    %v3252 = vadd.f32 0.0, %v3251
    %v3253 = vpop.f32.mrf.mxu0
    %v3254 = vpop.f32.mrf.mxu0
    %v3255 = vadd.f32 0.0, %v3254
    %v3256 = vpop.f32.mrf.mxu0
    %3257 = vmatprep.mubr.bf16.mxu0 0
    %3258 = vmatmul.mubr.bf16.gmra.mxu0 %v3051
    %v3259 = vpop.f32.mrf.mxu0
    %v3260 = vadd.f32 0.0, %v3259
    %v3261 = vpop.f32.mrf.mxu0
    %v3262 = vpop.f32.mrf.mxu0
    %v3263 = vadd.f32 0.0, %v3262
    %v3264 = vpop.f32.mrf.mxu0
    %3265 = vmatprep.mubr.bf16.mxu0 0
    %3266 = vmatmul.mubr.bf16.gmra.mxu0 %v3052
    %v3267 = vpop.f32.mrf.mxu0
    %v3268 = vadd.f32 0.0, %v3267
    %v3269 = vpop.f32.mrf.mxu0
    %v3270 = vpop.f32.mrf.mxu0
    %v3271 = vadd.f32 0.0, %v3270
    %v3272 = vpop.f32.mrf.mxu0
    %3273 = vmatprep.mubr.bf16.mxu0 0
    %3274 = vmatmul.mubr.bf16.gmra.mxu0 %v3053
    %v3275 = vpop.f32.mrf.mxu0
    %v3276 = vadd.f32 0.0, %v3275
    %v3277 = vpop.f32.mrf.mxu0
    %v3278 = vpop.f32.mrf.mxu0
    %v3279 = vadd.f32 0.0, %v3278
    %v3280 = vpop.f32.mrf.mxu0
    %3281 = vmatprep.mubr.bf16.mxu0 0
    %3282 = vmatmul.mubr.bf16.gmra.mxu0 %v3054
    %v3283 = vpop.f32.mrf.mxu0
    %v3284 = vadd.f32 0.0, %v3283
    %v3285 = vpop.f32.mrf.mxu0
    %v3286 = vpop.f32.mrf.mxu0
    %v3287 = vadd.f32 0.0, %v3286
    %v3288 = vpop.f32.mrf.mxu0
    %3289 = vmatprep.mubr.bf16.mxu0 0
    %3290 = vmatmul.mubr.bf16.gmra.mxu0 %v3055
    %v3291 = vpop.f32.mrf.mxu0
    %v3292 = vadd.f32 0.0, %v3291
    %v3293 = vpop.f32.mrf.mxu0
    %v3294 = vpop.f32.mrf.mxu0
    %v3295 = vadd.f32 0.0, %v3294
    %v3296 = vpop.f32.mrf.mxu0
    %3297 = vmatprep.mubr.bf16.mxu0 0
    %3298 = vmatmul.mubr.bf16.gmra.mxu0 %v3056
    %v3299 = vpop.f32.mrf.mxu0
    %v3300 = vadd.f32 0.0, %v3299
    %v3301 = vpop.f32.mrf.mxu0
    %v3302 = vpop.f32.mrf.mxu0
    %v3303 = vadd.f32 0.0, %v3302
    %v3304 = vpop.f32.mrf.mxu0
    %3305 = vmatprep.mubr.bf16.mxu0 0
    %3306 = vmatmul.mubr.bf16.gmra.mxu0 %v3057
    %v3307 = vpop.f32.mrf.mxu0
    %v3308 = vadd.f32 0.0, %v3307
    %v3309 = vpop.f32.mrf.mxu0
    %v3310 = vpop.f32.mrf.mxu0
    %v3311 = vadd.f32 0.0, %v3310
    %v3312 = vpop.f32.mrf.mxu0
    %3313 = vmatprep.mubr.bf16.mxu0 0
    %3314 = vmatmul.mubr.bf16.gmra.mxu0 %v3058
    %v3315 = vpop.f32.mrf.mxu0
    %v3316 = vadd.f32 0.0, %v3315
    %v3317 = vpop.f32.mrf.mxu0
    %v3318 = vpop.f32.mrf.mxu0
    %v3319 = vadd.f32 0.0, %v3318
    %v3320 = vpop.f32.mrf.mxu0
    %3321 = vmatprep.mubr.bf16.mxu0 0
    %3322 = vmatmul.mubr.bf16.gmra.mxu0 %v3059
    %v3323 = vpop.f32.mrf.mxu0
    %v3324 = vadd.f32 0.0, %v3323
    %v3325 = vpop.f32.mrf.mxu0
    %v3326 = vpop.f32.mrf.mxu0
    %v3327 = vadd.f32 0.0, %v3326
    %v3328 = vpop.f32.mrf.mxu0
    %3329 = vmatprep.mubr.bf16.mxu0 0
    %3330 = vmatmul.mubr.bf16.gmra.mxu0 %v3060
    %v3331 = vpop.f32.mrf.mxu0
    %v3332 = vadd.f32 0.0, %v3331
    %v3333 = vpop.f32.mrf.mxu0
    %v3334 = vpop.f32.mrf.mxu0
    %v3335 = vadd.f32 0.0, %v3334
    %v3336 = vpop.f32.mrf.mxu0
    %3337 = vmatprep.mubr.bf16.mxu0 0
    %3338 = vmatmul.mubr.bf16.gmra.mxu0 %v3061
    %v3339 = vpop.f32.mrf.mxu0
    %v3340 = vadd.f32 0.0, %v3339
    %v3341 = vpop.f32.mrf.mxu0
    %v3342 = vpop.f32.mrf.mxu0
    %v3343 = vadd.f32 0.0, %v3342
    %v3344 = vpop.f32.mrf.mxu0
    %3345 = vmatprep.mubr.bf16.mxu0 0
    %3346 = vmatmul.mubr.bf16.gmra.mxu0 %v3062
    %v3347 = vpop.f32.mrf.mxu0
    %v3348 = vadd.f32 0.0, %v3347
    %v3349 = vpop.f32.mrf.mxu0
    %v3350 = vpop.f32.mrf.mxu0
    %v3351 = vadd.f32 0.0, %v3350
    %v3352 = vpop.f32.mrf.mxu0
    %3353 = vmatprep.mubr.bf16.mxu0 0
    %3354 = vmatmul.mubr.bf16.gmra.mxu0 %v3063
    %v3355 = vpop.f32.mrf.mxu0
    %v3356 = vadd.f32 0.0, %v3355
    %v3357 = vpop.f32.mrf.mxu0
    %v3358 = vpop.f32.mrf.mxu0
    %v3359 = vadd.f32 0.0, %v3358
    %v3360 = vpop.f32.mrf.mxu0
    %3361 = vmatprep.mubr.bf16.mxu0 0
    %3362 = vmatmul.mubr.bf16.gmra.mxu0 %v3064
    %v3363 = vpop.f32.mrf.mxu0
    %v3364 = vadd.f32 0.0, %v3363
    %v3365 = vpop.f32.mrf.mxu0
    %v3366 = vpop.f32.mrf.mxu0
    %v3367 = vadd.f32 0.0, %v3366
    %v3368 = vpop.f32.mrf.mxu0
    %3369 = vmatprep.mubr.bf16.mxu0 0
    %3370 = vmatmul.mubr.bf16.gmra.mxu0 %v3065
    %v3371 = vpop.f32.mrf.mxu0
    %v3372 = vadd.f32 0.0, %v3371
    %v3373 = vpop.f32.mrf.mxu0
    %v3374 = vpop.f32.mrf.mxu0
    %v3375 = vadd.f32 0.0, %v3374
    %v3376 = vpop.f32.mrf.mxu0
    %3377 = vmatprep.mubr.bf16.mxu0 0
    %3378 = vmatmul.mubr.bf16.gmra.mxu0 %v3066
    %v3379 = vpop.f32.mrf.mxu0
    %v3380 = vadd.f32 0.0, %v3379
    %v3381 = vpop.f32.mrf.mxu0
    %v3382 = vpop.f32.mrf.mxu0
    %v3383 = vadd.f32 0.0, %v3382
    %v3384 = vpop.f32.mrf.mxu0
    %3385 = vmatprep.mubr.bf16.mxu0 0
    %3386 = vmatmul.mubr.bf16.gmra.mxu0 %v3067
    %v3387 = vpop.f32.mrf.mxu0
    %v3388 = vadd.f32 0.0, %v3387
    %v3389 = vpop.f32.mrf.mxu0
    %v3390 = vpop.f32.mrf.mxu0
    %v3391 = vadd.f32 0.0, %v3390
    %v3392 = vpop.f32.mrf.mxu0
    %3393 = vmatprep.mubr.bf16.mxu0 0
    %3394 = vmatmul.mubr.bf16.gmra.mxu0 %v3068
    %v3395 = vpop.f32.mrf.mxu0
    %v3396 = vadd.f32 0.0, %v3395
    %v3397 = vpop.f32.mrf.mxu0
    %v3398 = vpop.f32.mrf.mxu0
    %v3399 = vadd.f32 0.0, %v3398
    %v3400 = vpop.f32.mrf.mxu0
    %3401 = vmatprep.mubr.bf16.mxu0 0
    %3402 = vmatmul.mubr.bf16.gmra.mxu0 %v3069
    %v3403 = vpop.f32.mrf.mxu0
    %v3404 = vadd.f32 0.0, %v3403
    %v3405 = vpop.f32.mrf.mxu0
    %v3406 = vpop.f32.mrf.mxu0
    %v3407 = vadd.f32 0.0, %v3406
    %v3408 = vpop.f32.mrf.mxu0
    %3409 = vmatprep.mubr.bf16.mxu0 0
    %3410 = vmatmul.mubr.bf16.gmra.mxu0 %v3070
    %v3411 = vpop.f32.mrf.mxu0
    %v3412 = vadd.f32 0.0, %v3411
    %v3413 = vpop.f32.mrf.mxu0
    %v3414 = vpop.f32.mrf.mxu0
    %v3415 = vadd.f32 0.0, %v3414
    %v3416 = vpop.f32.mrf.mxu0
    %3417 = vmatprep.mubr.bf16.mxu0 0
    %3418 = vmatmul.mubr.bf16.gmra.mxu0 %v3071
    %v3419 = vpop.f32.mrf.mxu0
    %v3420 = vadd.f32 0.0, %v3419
    %v3421 = vpop.f32.mrf.mxu0
    %v3422 = vpop.f32.mrf.mxu0
    %v3423 = vadd.f32 0.0, %v3422
    %v3424 = vpop.f32.mrf.mxu0
    %3425 = vdwg.mxu0
    %v3426 = vadd.f32 %v2911, %v3172
    %v3427 = vadd.f32 %v2912, %v3175
    %v3428 = vadd.f32 %v2913, %v3180
    %v3429 = vadd.f32 %v2914, %v3183
    %v3430 = vadd.f32 %v2915, %v3188
    %v3431 = vadd.f32 %v2916, %v3191
    %v3432 = vadd.f32 %v2917, %v3196
    %v3433 = vadd.f32 %v2918, %v3199
    %v3434 = vadd.f32 %v2919, %v3204
    %v3435 = vadd.f32 %v2920, %v3207
    %v3436 = vadd.f32 %v2921, %v3212
    %v3437 = vadd.f32 %v2922, %v3215
    %v3438 = vadd.f32 %v2923, %v3220
    %v3439 = vadd.f32 %v2924, %v3223
    %v3440 = vadd.f32 %v2925, %v3228
    %v3441 = vadd.f32 %v2926, %v3231
    %v3442 = vadd.f32 %v2927, %v3236
    %v3443 = vadd.f32 %v2928, %v3239
    %v3444 = vadd.f32 %v2929, %v3244
    %v3445 = vadd.f32 %v2930, %v3247
    %v3446 = vadd.f32 %v2931, %v3252
    %v3447 = vadd.f32 %v2932, %v3255
    %v3448 = vadd.f32 %v2933, %v3260
    %v3449 = vadd.f32 %v2934, %v3263
    %v3450 = vadd.f32 %v2935, %v3268
    %v3451 = vadd.f32 %v2936, %v3271
    %v3452 = vadd.f32 %v2937, %v3276
    %v3453 = vadd.f32 %v2938, %v3279
    %v3454 = vadd.f32 %v2939, %v3284
    %v3455 = vadd.f32 %v2940, %v3287
    %v3456 = vadd.f32 %v2941, %v3292
    %v3457 = vadd.f32 %v2942, %v3295
    %v3458 = vadd.f32 %v2943, %v3300
    %v3459 = vadd.f32 %v2944, %v3303
    %v3460 = vadd.f32 %v2945, %v3308
    %v3461 = vadd.f32 %v2946, %v3311
    %v3462 = vadd.f32 %v2947, %v3316
    %v3463 = vadd.f32 %v2948, %v3319
    %v3464 = vadd.f32 %v2949, %v3324
    %v3465 = vadd.f32 %v2950, %v3327
    %v3466 = vadd.f32 %v2951, %v3332
    %v3467 = vadd.f32 %v2952, %v3335
    %v3468 = vadd.f32 %v2953, %v3340
    %v3469 = vadd.f32 %v2954, %v3343
    %v3470 = vadd.f32 %v2955, %v3348
    %v3471 = vadd.f32 %v2956, %v3351
    %v3472 = vadd.f32 %v2957, %v3356
    %v3473 = vadd.f32 %v2958, %v3359
    %v3474 = vadd.f32 %v2959, %v3364
    %v3475 = vadd.f32 %v2960, %v3367
    %v3476 = vadd.f32 %v2961, %v3372
    %v3477 = vadd.f32 %v2962, %v3375
    %v3478 = vadd.f32 %v2963, %v3380
    %v3479 = vadd.f32 %v2964, %v3383
    %v3480 = vadd.f32 %v2965, %v3388
    %v3481 = vadd.f32 %v2966, %v3391
    %v3482 = vadd.f32 %v2967, %v3396
    %v3483 = vadd.f32 %v2968, %v3399
    %v3484 = vadd.f32 %v2969, %v3404
    %v3485 = vadd.f32 %v2970, %v3407
    %v3486 = vadd.f32 %v2971, %v3412
    %v3487 = vadd.f32 %v2972, %v3415
    %v3488 = vadd.f32 %v2973, %v3420
    %v3489 = vadd.f32 %v2974, %v3423
    %v3490 = vld [vmem:[%s2975 + $0x1] sm:$0xff]
    %v3491 = vld [vmem:[%s2975 + $0x9] sm:$0xff]
    %v3492 = vld [vmem:[%s2975 + $0x19] sm:$0xff]
    %v3493 = vld [vmem:[%s2975 + $0x21] sm:$0xff]
    %v3494 = vld [vmem:[%s2975 + $0x31] sm:$0xff]
    %v3495 = vld [vmem:[%s2975 + $0x39] sm:$0xff]
    %v3496 = vld [vmem:[%s2975 + $0x49] sm:$0xff]
    %v3497 = vld [vmem:[%s2975 + $0x51] sm:$0xff]
    %v3498 = vld [vmem:[%s2975 + $0x61] sm:$0xff]
    %v3499 = vld [vmem:[%s2975 + $0x69] sm:$0xff]
    %v3500 = vld [vmem:[%s2975 + $0x79] sm:$0xff]
    %v3501 = vld [vmem:[%s2975 + $0x81] sm:$0xff]
    %v3502 = vld [vmem:[%s2975 + $0x91] sm:$0xff]
    %v3503 = vld [vmem:[%s2975 + $0x99] sm:$0xff]
    %v3504 = vld [vmem:[%s2975 + $0xa9] sm:$0xff]
    %v3505 = vld [vmem:[%s2975 + $0xb1] sm:$0xff]
    %v3506 = vld [vmem:[%s2975 + $0xc1] sm:$0xff]
    %v3507 = vld [vmem:[%s2975 + $0xc9] sm:$0xff]
    %v3508 = vld [vmem:[%s2975 + $0xd9] sm:$0xff]
    %v3509 = vld [vmem:[%s2975 + $0xe1] sm:$0xff]
    %v3510 = vld [vmem:[%s2975 + $0xf1] sm:$0xff]
    %v3511 = vld [vmem:[%s2975 + $0xf9] sm:$0xff]
    %v3512 = vld [vmem:[%s2975 + $0x109] sm:$0xff]
    %v3513 = vld [vmem:[%s2975 + $0x111] sm:$0xff]
    %v3514 = vld [vmem:[%s2975 + $0x121] sm:$0xff]
    %v3515 = vld [vmem:[%s2975 + $0x129] sm:$0xff]
    %v3516 = vld [vmem:[%s2975 + $0x139] sm:$0xff]
    %v3517 = vld [vmem:[%s2975 + $0x141] sm:$0xff]
    %v3518 = vld [vmem:[%s2975 + $0x151] sm:$0xff]
    %v3519 = vld [vmem:[%s2975 + $0x159] sm:$0xff]
    %v3520 = vld [vmem:[%s2975 + $0x169] sm:$0xff]
    %v3521 = vld [vmem:[%s2975 + $0x171] sm:$0xff]
    %v3522 = vld [vmem:[%s2975 + $0x1b1] sm:$0xff]
    %v3523 = vld [vmem:[%s2975 + $0x1b9] sm:$0xff]
    %v3524 = vld [vmem:[%s2975 + $0x1c9] sm:$0xff]
    %v3525 = vld [vmem:[%s2975 + $0x1d1] sm:$0xff]
    %v3526 = vld [vmem:[%s2975 + $0x1e1] sm:$0xff]
    %v3527 = vld [vmem:[%s2975 + $0x1e9] sm:$0xff]
    %v3528 = vld [vmem:[%s2975 + $0x1f9] sm:$0xff]
    %v3529 = vld [vmem:[%s2975 + $0x201] sm:$0xff]
    %v3530 = vld [vmem:[%s2975 + $0x211] sm:$0xff]
    %v3531 = vld [vmem:[%s2975 + $0x219] sm:$0xff]
    %v3532 = vld [vmem:[%s2975 + $0x229] sm:$0xff]
    %v3533 = vld [vmem:[%s2975 + $0x231] sm:$0xff]
    %v3534 = vld [vmem:[%s2975 + $0x241] sm:$0xff]
    %v3535 = vld [vmem:[%s2975 + $0x249] sm:$0xff]
    %v3536 = vld [vmem:[%s2975 + $0x259] sm:$0xff]
    %v3537 = vld [vmem:[%s2975 + $0x261] sm:$0xff]
    %v3538 = vld [vmem:[%s2975 + $0x271] sm:$0xff]
    %v3539 = vld [vmem:[%s2975 + $0x279] sm:$0xff]
    %v3540 = vld [vmem:[%s2975 + $0x289] sm:$0xff]
    %v3541 = vld [vmem:[%s2975 + $0x291] sm:$0xff]
    %v3542 = vld [vmem:[%s2975 + $0x2a1] sm:$0xff]
    %v3543 = vld [vmem:[%s2975 + $0x2a9] sm:$0xff]
    %v3544 = vld [vmem:[%s2975 + $0x2b9] sm:$0xff]
    %v3545 = vld [vmem:[%s2975 + $0x2c1] sm:$0xff]
    %v3546 = vld [vmem:[%s2975 + $0x2d1] sm:$0xff]
    %v3547 = vld [vmem:[%s2975 + $0x2d9] sm:$0xff]
    %v3548 = vld [vmem:[%s2975 + $0x2e9] sm:$0xff]
    %v3549 = vld [vmem:[%s2975 + $0x2f1] sm:$0xff]
    %v3550 = vld [vmem:[%s2975 + $0x301] sm:$0xff]
    %v3551 = vld [vmem:[%s2975 + $0x309] sm:$0xff]
    %v3552 = vld [vmem:[%s2975 + $0x319] sm:$0xff]
    %v3553 = vld [vmem:[%s2975 + $0x321] sm:$0xff]
    %v3554 = vpack.c.bf16 %v3491, %v3490
    %v3555 = vpack.c.bf16 %v3493, %v3492
    %v3556 = vpack.c.bf16 %v3495, %v3494
    %v3557 = vpack.c.bf16 %v3497, %v3496
    %v3558 = vpack.c.bf16 %v3499, %v3498
    %v3559 = vpack.c.bf16 %v3501, %v3500
    %v3560 = vpack.c.bf16 %v3503, %v3502
    %v3561 = vpack.c.bf16 %v3505, %v3504
    %v3562 = vpack.c.bf16 %v3507, %v3506
    %v3563 = vpack.c.bf16 %v3509, %v3508
    %v3564 = vpack.c.bf16 %v3511, %v3510
    %v3565 = vpack.c.bf16 %v3513, %v3512
    %v3566 = vpack.c.bf16 %v3515, %v3514
    %v3567 = vpack.c.bf16 %v3517, %v3516
    %v3568 = vpack.c.bf16 %v3519, %v3518
    %v3569 = vpack.c.bf16 %v3521, %v3520
    %v3570 = vpack.c.bf16 %v3523, %v3522
    %v3571 = vpack.c.bf16 %v3525, %v3524
    %v3572 = vpack.c.bf16 %v3527, %v3526
    %v3573 = vpack.c.bf16 %v3529, %v3528
    %v3574 = vpack.c.bf16 %v3531, %v3530
    %v3575 = vpack.c.bf16 %v3533, %v3532
    %v3576 = vpack.c.bf16 %v3535, %v3534
    %v3577 = vpack.c.bf16 %v3537, %v3536
    %v3578 = vpack.c.bf16 %v3539, %v3538
    %v3579 = vpack.c.bf16 %v3541, %v3540
    %v3580 = vpack.c.bf16 %v3543, %v3542
    %v3581 = vpack.c.bf16 %v3545, %v3544
    %v3582 = vpack.c.bf16 %v3547, %v3546
    %v3583 = vpack.c.bf16 %v3549, %v3548
    %v3584 = vpack.c.bf16 %v3551, %v3550
    %v3585 = vpack.c.bf16 %v3553, %v3552
    %s3586 = scalar_lea.vmem %s1, 448
    %v3587 = vld [vmem:[%s3586] sm:$0xf]
    %v3588 = vld [vmem:[%s3586 + $0x4] sm:$0xf]
    %v3589 = vld [vmem:[%s3586 + $0x8] sm:$0xf]
    %v3590 = vld [vmem:[%s3586 + $0xc] sm:$0xf]
    %v3591 = vld [vmem:[%s3586 + $0x10] sm:$0xf]
    %v3592 = vld [vmem:[%s3586 + $0x14] sm:$0xf]
    %v3593 = vld [vmem:[%s3586 + $0x18] sm:$0xf]
    %v3594 = vld [vmem:[%s3586 + $0x1c] sm:$0xf]
    %v3595 = vld [vmem:[%s3586 + $0x20] sm:$0xf]
    %v3596 = vld [vmem:[%s3586 + $0x24] sm:$0xf]
    %v3597 = vld [vmem:[%s3586 + $0x28] sm:$0xf]
    %v3598 = vld [vmem:[%s3586 + $0x2c] sm:$0xf]
    %v3599 = vld [vmem:[%s3586 + $0x30] sm:$0xf]
    %v3600 = vld [vmem:[%s3586 + $0x34] sm:$0xf]
    %v3601 = vld [vmem:[%s3586 + $0x38] sm:$0xf]
    %v3602 = vld [vmem:[%s3586 + $0x3c] sm:$0xf]
    %v3619 = vunpack.c.l.b16 %v3587
    %v3620 = vunpack.c.l.b16 %v3588
    %v3621 = vunpack.c.l.b16 %v3589
    %v3622 = vunpack.c.l.b16 %v3590
    %v3623 = vunpack.c.l.b16 %v3591
    %v3624 = vunpack.c.l.b16 %v3592
    %v3625 = vunpack.c.l.b16 %v3593
    %v3626 = vunpack.c.l.b16 %v3594
    %v3627 = vunpack.c.l.b16 %v3595
    %v3628 = vunpack.c.l.b16 %v3596
    %v3629 = vunpack.c.l.b16 %v3597
    %v3630 = vunpack.c.l.b16 %v3598
    %v3631 = vunpack.c.l.b16 %v3599
    %v3632 = vunpack.c.l.b16 %v3600
    %v3633 = vunpack.c.l.b16 %v3601
    %v3634 = vunpack.c.l.b16 %v3602
    %v3635 = vpack.c.b16 %v3620, %v3619
    %v3636 = vpack.c.b16 %v3622, %v3621
    %v3637 = vpack.c.b16 %v3624, %v3623
    %v3638 = vpack.c.b16 %v3626, %v3625
    %v3639 = vpack.c.b16 %v3628, %v3627
    %v3640 = vpack.c.b16 %v3630, %v3629
    %v3641 = vpack.c.b16 %v3632, %v3631
    %v3642 = vpack.c.b16 %v3634, %v3633
    %3651 = vmatprep.subr.bf16.mxu0 0
    %3652 = vmatpush1.bf16.msra.mxu0 %v3642
    %3653 = vmatprep.subr.bf16.mxu0 0
    %3654 = vmatpush1.bf16.msra.mxu0 %v3641
    %3655 = vmatprep.subr.bf16.mxu0 0
    %3656 = vmatpush1.bf16.msra.mxu0 %v3640
    %3657 = vmatprep.subr.bf16.mxu0 0
    %3658 = vmatpush1.bf16.msra.mxu0 %v3639
    %3659 = vmatprep.subr.bf16.mxu0 0
    %3660 = vmatpush1.bf16.msra.mxu0 %v3638
    %3661 = vmatprep.subr.bf16.mxu0 0
    %3662 = vmatpush1.bf16.msra.mxu0 %v3637
    %3663 = vmatprep.subr.bf16.mxu0 0
    %3664 = vmatpush1.bf16.msra.mxu0 %v3636
    %3665 = vmatprep.subr.bf16.mxu0 0
    %3666 = vmatpush1.bf16.msra.mxu0 %v3635
    %3667 = vmatprep.subr.bf16.mxu0 0
    %3668 = vmatpush2.bf16.msra.mxu0 0
    %3669 = vmatprep.subr.bf16.mxu0 0
    %3670 = vmatpush2.bf16.msra.mxu0 0
    %3671 = vmatprep.subr.bf16.mxu0 0
    %3672 = vmatpush2.bf16.msra.mxu0 0
    %3673 = vmatprep.subr.bf16.mxu0 0
    %3674 = vmatpush2.bf16.msra.mxu0 0
    %3675 = vmatprep.subr.bf16.mxu0 0
    %3676 = vmatpush2.bf16.msra.mxu0 0
    %3677 = vmatprep.subr.bf16.mxu0 0
    %3678 = vmatpush2.bf16.msra.mxu0 0
    %3679 = vmatprep.subr.bf16.mxu0 0
    %3680 = vmatpush2.bf16.msra.mxu0 0
    %3681 = vmatprep.subr.bf16.mxu0 0
    %3682 = vmatpush2.bf16.msra.mxu0 0
    %3683 = vmatprep.mubr.bf16.mxu0 0
    %3684 = vmatmul.mubr.bf16.gmra.mxu0 %v3554
    %v3685 = vpop.f32.mrf.mxu0
    %v3686 = vadd.f32 0.0, %v3685
    %v3687 = vpop.f32.mrf.mxu0
    %v3688 = vpop.f32.mrf.mxu0
    %v3689 = vadd.f32 0.0, %v3688
    %v3690 = vpop.f32.mrf.mxu0
    %3691 = vmatprep.mubr.bf16.mxu0 0
    %3692 = vmatmul.mubr.bf16.gmra.mxu0 %v3555
    %v3693 = vpop.f32.mrf.mxu0
    %v3694 = vadd.f32 0.0, %v3693
    %v3695 = vpop.f32.mrf.mxu0
    %v3696 = vpop.f32.mrf.mxu0
    %v3697 = vadd.f32 0.0, %v3696
    %v3698 = vpop.f32.mrf.mxu0
    %3699 = vmatprep.mubr.bf16.mxu0 0
    %3700 = vmatmul.mubr.bf16.gmra.mxu0 %v3556
    %v3701 = vpop.f32.mrf.mxu0
    %v3702 = vadd.f32 0.0, %v3701
    %v3703 = vpop.f32.mrf.mxu0
    %v3704 = vpop.f32.mrf.mxu0
    %v3705 = vadd.f32 0.0, %v3704
    %v3706 = vpop.f32.mrf.mxu0
    %3707 = vmatprep.mubr.bf16.mxu0 0
    %3708 = vmatmul.mubr.bf16.gmra.mxu0 %v3557
    %v3709 = vpop.f32.mrf.mxu0
    %v3710 = vadd.f32 0.0, %v3709
    %v3711 = vpop.f32.mrf.mxu0
    %v3712 = vpop.f32.mrf.mxu0
    %v3713 = vadd.f32 0.0, %v3712
    %v3714 = vpop.f32.mrf.mxu0
    %3715 = vmatprep.mubr.bf16.mxu0 0
    %3716 = vmatmul.mubr.bf16.gmra.mxu0 %v3558
    %v3717 = vpop.f32.mrf.mxu0
    %v3718 = vadd.f32 0.0, %v3717
    %v3719 = vpop.f32.mrf.mxu0
    %v3720 = vpop.f32.mrf.mxu0
    %v3721 = vadd.f32 0.0, %v3720
    %v3722 = vpop.f32.mrf.mxu0
    %3723 = vmatprep.mubr.bf16.mxu0 0
    %3724 = vmatmul.mubr.bf16.gmra.mxu0 %v3559
    %v3725 = vpop.f32.mrf.mxu0
    %v3726 = vadd.f32 0.0, %v3725
    %v3727 = vpop.f32.mrf.mxu0
    %v3728 = vpop.f32.mrf.mxu0
    %v3729 = vadd.f32 0.0, %v3728
    %v3730 = vpop.f32.mrf.mxu0
    %3731 = vmatprep.mubr.bf16.mxu0 0
    %3732 = vmatmul.mubr.bf16.gmra.mxu0 %v3560
    %v3733 = vpop.f32.mrf.mxu0
    %v3734 = vadd.f32 0.0, %v3733
    %v3735 = vpop.f32.mrf.mxu0
    %v3736 = vpop.f32.mrf.mxu0
    %v3737 = vadd.f32 0.0, %v3736
    %v3738 = vpop.f32.mrf.mxu0
    %3739 = vmatprep.mubr.bf16.mxu0 0
    %3740 = vmatmul.mubr.bf16.gmra.mxu0 %v3561
    %v3741 = vpop.f32.mrf.mxu0
    %v3742 = vadd.f32 0.0, %v3741
    %v3743 = vpop.f32.mrf.mxu0
    %v3744 = vpop.f32.mrf.mxu0
    %v3745 = vadd.f32 0.0, %v3744
    %v3746 = vpop.f32.mrf.mxu0
    %3747 = vmatprep.mubr.bf16.mxu0 0
    %3748 = vmatmul.mubr.bf16.gmra.mxu0 %v3562
    %v3749 = vpop.f32.mrf.mxu0
    %v3750 = vadd.f32 0.0, %v3749
    %v3751 = vpop.f32.mrf.mxu0
    %v3752 = vpop.f32.mrf.mxu0
    %v3753 = vadd.f32 0.0, %v3752
    %v3754 = vpop.f32.mrf.mxu0
    %3755 = vmatprep.mubr.bf16.mxu0 0
    %3756 = vmatmul.mubr.bf16.gmra.mxu0 %v3563
    %v3757 = vpop.f32.mrf.mxu0
    %v3758 = vadd.f32 0.0, %v3757
    %v3759 = vpop.f32.mrf.mxu0
    %v3760 = vpop.f32.mrf.mxu0
    %v3761 = vadd.f32 0.0, %v3760
    %v3762 = vpop.f32.mrf.mxu0
    %3763 = vmatprep.mubr.bf16.mxu0 0
    %3764 = vmatmul.mubr.bf16.gmra.mxu0 %v3564
    %v3765 = vpop.f32.mrf.mxu0
    %v3766 = vadd.f32 0.0, %v3765
    %v3767 = vpop.f32.mrf.mxu0
    %v3768 = vpop.f32.mrf.mxu0
    %v3769 = vadd.f32 0.0, %v3768
    %v3770 = vpop.f32.mrf.mxu0
    %3771 = vmatprep.mubr.bf16.mxu0 0
    %3772 = vmatmul.mubr.bf16.gmra.mxu0 %v3565
    %v3773 = vpop.f32.mrf.mxu0
    %v3774 = vadd.f32 0.0, %v3773
    %v3775 = vpop.f32.mrf.mxu0
    %v3776 = vpop.f32.mrf.mxu0
    %v3777 = vadd.f32 0.0, %v3776
    %v3778 = vpop.f32.mrf.mxu0
    %3779 = vmatprep.mubr.bf16.mxu0 0
    %3780 = vmatmul.mubr.bf16.gmra.mxu0 %v3566
    %v3781 = vpop.f32.mrf.mxu0
    %v3782 = vadd.f32 0.0, %v3781
    %v3783 = vpop.f32.mrf.mxu0
    %v3784 = vpop.f32.mrf.mxu0
    %v3785 = vadd.f32 0.0, %v3784
    %v3786 = vpop.f32.mrf.mxu0
    %3787 = vmatprep.mubr.bf16.mxu0 0
    %3788 = vmatmul.mubr.bf16.gmra.mxu0 %v3567
    %v3789 = vpop.f32.mrf.mxu0
    %v3790 = vadd.f32 0.0, %v3789
    %v3791 = vpop.f32.mrf.mxu0
    %v3792 = vpop.f32.mrf.mxu0
    %v3793 = vadd.f32 0.0, %v3792
    %v3794 = vpop.f32.mrf.mxu0
    %3795 = vmatprep.mubr.bf16.mxu0 0
    %3796 = vmatmul.mubr.bf16.gmra.mxu0 %v3568
    %v3797 = vpop.f32.mrf.mxu0
    %v3798 = vadd.f32 0.0, %v3797
    %v3799 = vpop.f32.mrf.mxu0
    %v3800 = vpop.f32.mrf.mxu0
    %v3801 = vadd.f32 0.0, %v3800
    %v3802 = vpop.f32.mrf.mxu0
    %3803 = vmatprep.mubr.bf16.mxu0 0
    %3804 = vmatmul.mubr.bf16.gmra.mxu0 %v3569
    %v3805 = vpop.f32.mrf.mxu0
    %v3806 = vadd.f32 0.0, %v3805
    %v3807 = vpop.f32.mrf.mxu0
    %v3808 = vpop.f32.mrf.mxu0
    %v3809 = vadd.f32 0.0, %v3808
    %v3810 = vpop.f32.mrf.mxu0
    %3811 = vmatprep.mubr.bf16.mxu0 0
    %3812 = vmatmul.mubr.bf16.gmra.mxu0 %v3570
    %v3813 = vpop.f32.mrf.mxu0
    %v3814 = vadd.f32 0.0, %v3813
    %v3815 = vpop.f32.mrf.mxu0
    %v3816 = vpop.f32.mrf.mxu0
    %v3817 = vadd.f32 0.0, %v3816
    %v3818 = vpop.f32.mrf.mxu0
    %3819 = vmatprep.mubr.bf16.mxu0 0
    %3820 = vmatmul.mubr.bf16.gmra.mxu0 %v3571
    %v3821 = vpop.f32.mrf.mxu0
    %v3822 = vadd.f32 0.0, %v3821
    %v3823 = vpop.f32.mrf.mxu0
    %v3824 = vpop.f32.mrf.mxu0
    %v3825 = vadd.f32 0.0, %v3824
    %v3826 = vpop.f32.mrf.mxu0
    %3827 = vmatprep.mubr.bf16.mxu0 0
    %3828 = vmatmul.mubr.bf16.gmra.mxu0 %v3572
    %v3829 = vpop.f32.mrf.mxu0
    %v3830 = vadd.f32 0.0, %v3829
    %v3831 = vpop.f32.mrf.mxu0
    %v3832 = vpop.f32.mrf.mxu0
    %v3833 = vadd.f32 0.0, %v3832
    %v3834 = vpop.f32.mrf.mxu0
    %3835 = vmatprep.mubr.bf16.mxu0 0
    %3836 = vmatmul.mubr.bf16.gmra.mxu0 %v3573
    %v3837 = vpop.f32.mrf.mxu0
    %v3838 = vadd.f32 0.0, %v3837
    %v3839 = vpop.f32.mrf.mxu0
    %v3840 = vpop.f32.mrf.mxu0
    %v3841 = vadd.f32 0.0, %v3840
    %v3842 = vpop.f32.mrf.mxu0
    %3843 = vmatprep.mubr.bf16.mxu0 0
    %3844 = vmatmul.mubr.bf16.gmra.mxu0 %v3574
    %v3845 = vpop.f32.mrf.mxu0
    %v3846 = vadd.f32 0.0, %v3845
    %v3847 = vpop.f32.mrf.mxu0
    %v3848 = vpop.f32.mrf.mxu0
    %v3849 = vadd.f32 0.0, %v3848
    %v3850 = vpop.f32.mrf.mxu0
    %3851 = vmatprep.mubr.bf16.mxu0 0
    %3852 = vmatmul.mubr.bf16.gmra.mxu0 %v3575
    %v3853 = vpop.f32.mrf.mxu0
    %v3854 = vadd.f32 0.0, %v3853
    %v3855 = vpop.f32.mrf.mxu0
    %v3856 = vpop.f32.mrf.mxu0
    %v3857 = vadd.f32 0.0, %v3856
    %v3858 = vpop.f32.mrf.mxu0
    %3859 = vmatprep.mubr.bf16.mxu0 0
    %3860 = vmatmul.mubr.bf16.gmra.mxu0 %v3576
    %v3861 = vpop.f32.mrf.mxu0
    %v3862 = vadd.f32 0.0, %v3861
    %v3863 = vpop.f32.mrf.mxu0
    %v3864 = vpop.f32.mrf.mxu0
    %v3865 = vadd.f32 0.0, %v3864
    %v3866 = vpop.f32.mrf.mxu0
    %3867 = vmatprep.mubr.bf16.mxu0 0
    %3868 = vmatmul.mubr.bf16.gmra.mxu0 %v3577
    %v3869 = vpop.f32.mrf.mxu0
    %v3870 = vadd.f32 0.0, %v3869
    %v3871 = vpop.f32.mrf.mxu0
    %v3872 = vpop.f32.mrf.mxu0
    %v3873 = vadd.f32 0.0, %v3872
    %v3874 = vpop.f32.mrf.mxu0
    %3875 = vmatprep.mubr.bf16.mxu0 0
    %3876 = vmatmul.mubr.bf16.gmra.mxu0 %v3578
    %v3877 = vpop.f32.mrf.mxu0
    %v3878 = vadd.f32 0.0, %v3877
    %v3879 = vpop.f32.mrf.mxu0
    %v3880 = vpop.f32.mrf.mxu0
    %v3881 = vadd.f32 0.0, %v3880
    %v3882 = vpop.f32.mrf.mxu0
    %3883 = vmatprep.mubr.bf16.mxu0 0
    %3884 = vmatmul.mubr.bf16.gmra.mxu0 %v3579
    %v3885 = vpop.f32.mrf.mxu0
    %v3886 = vadd.f32 0.0, %v3885
    %v3887 = vpop.f32.mrf.mxu0
    %v3888 = vpop.f32.mrf.mxu0
    %v3889 = vadd.f32 0.0, %v3888
    %v3890 = vpop.f32.mrf.mxu0
    %3891 = vmatprep.mubr.bf16.mxu0 0
    %3892 = vmatmul.mubr.bf16.gmra.mxu0 %v3580
    %v3893 = vpop.f32.mrf.mxu0
    %v3894 = vadd.f32 0.0, %v3893
    %v3895 = vpop.f32.mrf.mxu0
    %v3896 = vpop.f32.mrf.mxu0
    %v3897 = vadd.f32 0.0, %v3896
    %v3898 = vpop.f32.mrf.mxu0
    %3899 = vmatprep.mubr.bf16.mxu0 0
    %3900 = vmatmul.mubr.bf16.gmra.mxu0 %v3581
    %v3901 = vpop.f32.mrf.mxu0
    %v3902 = vadd.f32 0.0, %v3901
    %v3903 = vpop.f32.mrf.mxu0
    %v3904 = vpop.f32.mrf.mxu0
    %v3905 = vadd.f32 0.0, %v3904
    %v3906 = vpop.f32.mrf.mxu0
    %3907 = vmatprep.mubr.bf16.mxu0 0
    %3908 = vmatmul.mubr.bf16.gmra.mxu0 %v3582
    %v3909 = vpop.f32.mrf.mxu0
    %v3910 = vadd.f32 0.0, %v3909
    %v3911 = vpop.f32.mrf.mxu0
    %v3912 = vpop.f32.mrf.mxu0
    %v3913 = vadd.f32 0.0, %v3912
    %v3914 = vpop.f32.mrf.mxu0
    %3915 = vmatprep.mubr.bf16.mxu0 0
    %3916 = vmatmul.mubr.bf16.gmra.mxu0 %v3583
    %v3917 = vpop.f32.mrf.mxu0
    %v3918 = vadd.f32 0.0, %v3917
    %v3919 = vpop.f32.mrf.mxu0
    %v3920 = vpop.f32.mrf.mxu0
    %v3921 = vadd.f32 0.0, %v3920
    %v3922 = vpop.f32.mrf.mxu0
    %3923 = vmatprep.mubr.bf16.mxu0 0
    %3924 = vmatmul.mubr.bf16.gmra.mxu0 %v3584
    %v3925 = vpop.f32.mrf.mxu0
    %v3926 = vadd.f32 0.0, %v3925
    %v3927 = vpop.f32.mrf.mxu0
    %v3928 = vpop.f32.mrf.mxu0
    %v3929 = vadd.f32 0.0, %v3928
    %v3930 = vpop.f32.mrf.mxu0
    %3931 = vmatprep.mubr.bf16.mxu0 0
    %3932 = vmatmul.mubr.bf16.gmra.mxu0 %v3585
    %v3933 = vpop.f32.mrf.mxu0
    %v3934 = vadd.f32 0.0, %v3933
    %v3935 = vpop.f32.mrf.mxu0
    %v3936 = vpop.f32.mrf.mxu0
    %v3937 = vadd.f32 0.0, %v3936
    %v3938 = vpop.f32.mrf.mxu0
    %3939 = vdwg.mxu0
    %v3940 = vadd.f32 %v3426, %v3686
    %v3941 = vadd.f32 %v3427, %v3689
    %v3942 = vadd.f32 %v3428, %v3694
    %v3943 = vadd.f32 %v3429, %v3697
    %v3944 = vadd.f32 %v3430, %v3702
    %v3945 = vadd.f32 %v3431, %v3705
    %v3946 = vadd.f32 %v3432, %v3710
    %v3947 = vadd.f32 %v3433, %v3713
    %v3948 = vadd.f32 %v3434, %v3718
    %v3949 = vadd.f32 %v3435, %v3721
    %v3950 = vadd.f32 %v3436, %v3726
    %v3951 = vadd.f32 %v3437, %v3729
    %v3952 = vadd.f32 %v3438, %v3734
    %v3953 = vadd.f32 %v3439, %v3737
    %v3954 = vadd.f32 %v3440, %v3742
    %v3955 = vadd.f32 %v3441, %v3745
    %v3956 = vadd.f32 %v3442, %v3750
    %v3957 = vadd.f32 %v3443, %v3753
    %v3958 = vadd.f32 %v3444, %v3758
    %v3959 = vadd.f32 %v3445, %v3761
    %v3960 = vadd.f32 %v3446, %v3766
    %v3961 = vadd.f32 %v3447, %v3769
    %v3962 = vadd.f32 %v3448, %v3774
    %v3963 = vadd.f32 %v3449, %v3777
    %v3964 = vadd.f32 %v3450, %v3782
    %v3965 = vadd.f32 %v3451, %v3785
    %v3966 = vadd.f32 %v3452, %v3790
    %v3967 = vadd.f32 %v3453, %v3793
    %v3968 = vadd.f32 %v3454, %v3798
    %v3969 = vadd.f32 %v3455, %v3801
    %v3970 = vadd.f32 %v3456, %v3806
    %v3971 = vadd.f32 %v3457, %v3809
    %v3972 = vadd.f32 %v3458, %v3814
    %v3973 = vadd.f32 %v3459, %v3817
    %v3974 = vadd.f32 %v3460, %v3822
    %v3975 = vadd.f32 %v3461, %v3825
    %v3976 = vadd.f32 %v3462, %v3830
    %v3977 = vadd.f32 %v3463, %v3833
    %v3978 = vadd.f32 %v3464, %v3838
    %v3979 = vadd.f32 %v3465, %v3841
    %v3980 = vadd.f32 %v3466, %v3846
    %v3981 = vadd.f32 %v3467, %v3849
    %v3982 = vadd.f32 %v3468, %v3854
    %v3983 = vadd.f32 %v3469, %v3857
    %v3984 = vadd.f32 %v3470, %v3862
    %v3985 = vadd.f32 %v3471, %v3865
    %v3986 = vadd.f32 %v3472, %v3870
    %v3987 = vadd.f32 %v3473, %v3873
    %v3988 = vadd.f32 %v3474, %v3878
    %v3989 = vadd.f32 %v3475, %v3881
    %v3990 = vadd.f32 %v3476, %v3886
    %v3991 = vadd.f32 %v3477, %v3889
    %v3992 = vadd.f32 %v3478, %v3894
    %v3993 = vadd.f32 %v3479, %v3897
    %v3994 = vadd.f32 %v3480, %v3902
    %v3995 = vadd.f32 %v3481, %v3905
    %v3996 = vadd.f32 %v3482, %v3910
    %v3997 = vadd.f32 %v3483, %v3913
    %v3998 = vadd.f32 %v3484, %v3918
    %v3999 = vadd.f32 %v3485, %v3921
    %v4000 = vadd.f32 %v3486, %v3926
    %v4001 = vadd.f32 %v3487, %v3929
    %v4002 = vadd.f32 %v3488, %v3934
    %v4003 = vadd.f32 %v3489, %v3937
    %v4004 = vld [vmem:[%s2975 + $0x2] sm:$0xff]
    %v4005 = vld [vmem:[%s2975 + $0xa] sm:$0xff]
    %v4006 = vld [vmem:[%s2975 + $0x1a] sm:$0xff]
    %v4007 = vld [vmem:[%s2975 + $0x22] sm:$0xff]
    %v4008 = vld [vmem:[%s2975 + $0x32] sm:$0xff]
    %v4009 = vld [vmem:[%s2975 + $0x3a] sm:$0xff]
    %v4010 = vld [vmem:[%s2975 + $0x4a] sm:$0xff]
    %v4011 = vld [vmem:[%s2975 + $0x52] sm:$0xff]
    %v4012 = vld [vmem:[%s2975 + $0x62] sm:$0xff]
    %v4013 = vld [vmem:[%s2975 + $0x6a] sm:$0xff]
    %v4014 = vld [vmem:[%s2975 + $0x7a] sm:$0xff]
    %v4015 = vld [vmem:[%s2975 + $0x82] sm:$0xff]
    %v4016 = vld [vmem:[%s2975 + $0x92] sm:$0xff]
    %v4017 = vld [vmem:[%s2975 + $0x9a] sm:$0xff]
    %v4018 = vld [vmem:[%s2975 + $0xaa] sm:$0xff]
    %v4019 = vld [vmem:[%s2975 + $0xb2] sm:$0xff]
    %v4020 = vld [vmem:[%s2975 + $0xc2] sm:$0xff]
    %v4021 = vld [vmem:[%s2975 + $0xca] sm:$0xff]
    %v4022 = vld [vmem:[%s2975 + $0xda] sm:$0xff]
    %v4023 = vld [vmem:[%s2975 + $0xe2] sm:$0xff]
    %v4024 = vld [vmem:[%s2975 + $0xf2] sm:$0xff]
    %v4025 = vld [vmem:[%s2975 + $0xfa] sm:$0xff]
    %v4026 = vld [vmem:[%s2975 + $0x10a] sm:$0xff]
    %v4027 = vld [vmem:[%s2975 + $0x112] sm:$0xff]
    %v4028 = vld [vmem:[%s2975 + $0x122] sm:$0xff]
    %v4029 = vld [vmem:[%s2975 + $0x12a] sm:$0xff]
    %v4030 = vld [vmem:[%s2975 + $0x13a] sm:$0xff]
    %v4031 = vld [vmem:[%s2975 + $0x142] sm:$0xff]
    %v4032 = vld [vmem:[%s2975 + $0x152] sm:$0xff]
    %v4033 = vld [vmem:[%s2975 + $0x15a] sm:$0xff]
    %v4034 = vld [vmem:[%s2975 + $0x16a] sm:$0xff]
    %v4035 = vld [vmem:[%s2975 + $0x172] sm:$0xff]
    %v4036 = vld [vmem:[%s2975 + $0x1b2] sm:$0xff]
    %v4037 = vld [vmem:[%s2975 + $0x1ba] sm:$0xff]
    %v4038 = vld [vmem:[%s2975 + $0x1ca] sm:$0xff]
    %v4039 = vld [vmem:[%s2975 + $0x1d2] sm:$0xff]
    %v4040 = vld [vmem:[%s2975 + $0x1e2] sm:$0xff]
    %v4041 = vld [vmem:[%s2975 + $0x1ea] sm:$0xff]
    %v4042 = vld [vmem:[%s2975 + $0x1fa] sm:$0xff]
    %v4043 = vld [vmem:[%s2975 + $0x202] sm:$0xff]
    %v4044 = vld [vmem:[%s2975 + $0x212] sm:$0xff]
    %v4045 = vld [vmem:[%s2975 + $0x21a] sm:$0xff]
    %v4046 = vld [vmem:[%s2975 + $0x22a] sm:$0xff]
    %v4047 = vld [vmem:[%s2975 + $0x232] sm:$0xff]
    %v4048 = vld [vmem:[%s2975 + $0x242] sm:$0xff]
    %v4049 = vld [vmem:[%s2975 + $0x24a] sm:$0xff]
    %v4050 = vld [vmem:[%s2975 + $0x25a] sm:$0xff]
    %v4051 = vld [vmem:[%s2975 + $0x262] sm:$0xff]
    %v4052 = vld [vmem:[%s2975 + $0x272] sm:$0xff]
    %v4053 = vld [vmem:[%s2975 + $0x27a] sm:$0xff]
    %v4054 = vld [vmem:[%s2975 + $0x28a] sm:$0xff]
    %v4055 = vld [vmem:[%s2975 + $0x292] sm:$0xff]
    %v4056 = vld [vmem:[%s2975 + $0x2a2] sm:$0xff]
    %v4057 = vld [vmem:[%s2975 + $0x2aa] sm:$0xff]
    %v4058 = vld [vmem:[%s2975 + $0x2ba] sm:$0xff]
    %v4059 = vld [vmem:[%s2975 + $0x2c2] sm:$0xff]
    %v4060 = vld [vmem:[%s2975 + $0x2d2] sm:$0xff]
    %v4061 = vld [vmem:[%s2975 + $0x2da] sm:$0xff]
    %v4062 = vld [vmem:[%s2975 + $0x2ea] sm:$0xff]
    %v4063 = vld [vmem:[%s2975 + $0x2f2] sm:$0xff]
    %v4064 = vld [vmem:[%s2975 + $0x302] sm:$0xff]
    %v4065 = vld [vmem:[%s2975 + $0x30a] sm:$0xff]
    %v4066 = vld [vmem:[%s2975 + $0x31a] sm:$0xff]
    %v4067 = vld [vmem:[%s2975 + $0x322] sm:$0xff]
    %v4068 = vpack.c.bf16 %v4005, %v4004
    %v4069 = vpack.c.bf16 %v4007, %v4006
    %v4070 = vpack.c.bf16 %v4009, %v4008
    %v4071 = vpack.c.bf16 %v4011, %v4010
    %v4072 = vpack.c.bf16 %v4013, %v4012
    %v4073 = vpack.c.bf16 %v4015, %v4014
    %v4074 = vpack.c.bf16 %v4017, %v4016
    %v4075 = vpack.c.bf16 %v4019, %v4018
    %v4076 = vpack.c.bf16 %v4021, %v4020
    %v4077 = vpack.c.bf16 %v4023, %v4022
    %v4078 = vpack.c.bf16 %v4025, %v4024
    %v4079 = vpack.c.bf16 %v4027, %v4026
    %v4080 = vpack.c.bf16 %v4029, %v4028
    %v4081 = vpack.c.bf16 %v4031, %v4030
    %v4082 = vpack.c.bf16 %v4033, %v4032
    %v4083 = vpack.c.bf16 %v4035, %v4034
    %v4084 = vpack.c.bf16 %v4037, %v4036
    %v4085 = vpack.c.bf16 %v4039, %v4038
    %v4086 = vpack.c.bf16 %v4041, %v4040
    %v4087 = vpack.c.bf16 %v4043, %v4042
    %v4088 = vpack.c.bf16 %v4045, %v4044
    %v4089 = vpack.c.bf16 %v4047, %v4046
    %v4090 = vpack.c.bf16 %v4049, %v4048
    %v4091 = vpack.c.bf16 %v4051, %v4050
    %v4092 = vpack.c.bf16 %v4053, %v4052
    %v4093 = vpack.c.bf16 %v4055, %v4054
    %v4094 = vpack.c.bf16 %v4057, %v4056
    %v4095 = vpack.c.bf16 %v4059, %v4058
    %v4096 = vpack.c.bf16 %v4061, %v4060
    %v4097 = vpack.c.bf16 %v4063, %v4062
    %v4098 = vpack.c.bf16 %v4065, %v4064
    %v4099 = vpack.c.bf16 %v4067, %v4066
    %s4100 = scalar_lea.vmem %s1, 512
    %v4101 = vld [vmem:[%s4100] sm:$0xf]
    %v4102 = vld [vmem:[%s4100 + $0x4] sm:$0xf]
    %v4103 = vld [vmem:[%s4100 + $0x8] sm:$0xf]
    %v4104 = vld [vmem:[%s4100 + $0xc] sm:$0xf]
    %v4105 = vld [vmem:[%s4100 + $0x10] sm:$0xf]
    %v4106 = vld [vmem:[%s4100 + $0x14] sm:$0xf]
    %v4107 = vld [vmem:[%s4100 + $0x18] sm:$0xf]
    %v4108 = vld [vmem:[%s4100 + $0x1c] sm:$0xf]
    %v4109 = vld [vmem:[%s4100 + $0x20] sm:$0xf]
    %v4110 = vld [vmem:[%s4100 + $0x24] sm:$0xf]
    %v4111 = vld [vmem:[%s4100 + $0x28] sm:$0xf]
    %v4112 = vld [vmem:[%s4100 + $0x2c] sm:$0xf]
    %v4113 = vld [vmem:[%s4100 + $0x30] sm:$0xf]
    %v4114 = vld [vmem:[%s4100 + $0x34] sm:$0xf]
    %v4115 = vld [vmem:[%s4100 + $0x38] sm:$0xf]
    %v4116 = vld [vmem:[%s4100 + $0x3c] sm:$0xf]
    %v4133 = vunpack.c.l.b16 %v4101
    %v4134 = vunpack.c.l.b16 %v4102
    %v4135 = vunpack.c.l.b16 %v4103
    %v4136 = vunpack.c.l.b16 %v4104
    %v4137 = vunpack.c.l.b16 %v4105
    %v4138 = vunpack.c.l.b16 %v4106
    %v4139 = vunpack.c.l.b16 %v4107
    %v4140 = vunpack.c.l.b16 %v4108
    %v4141 = vunpack.c.l.b16 %v4109
    %v4142 = vunpack.c.l.b16 %v4110
    %v4143 = vunpack.c.l.b16 %v4111
    %v4144 = vunpack.c.l.b16 %v4112
    %v4145 = vunpack.c.l.b16 %v4113
    %v4146 = vunpack.c.l.b16 %v4114
    %v4147 = vunpack.c.l.b16 %v4115
    %v4148 = vunpack.c.l.b16 %v4116
    %v4149 = vpack.c.b16 %v4134, %v4133
    %v4150 = vpack.c.b16 %v4136, %v4135
    %v4151 = vpack.c.b16 %v4138, %v4137
    %v4152 = vpack.c.b16 %v4140, %v4139
    %v4153 = vpack.c.b16 %v4142, %v4141
    %v4154 = vpack.c.b16 %v4144, %v4143
    %v4155 = vpack.c.b16 %v4146, %v4145
    %v4156 = vpack.c.b16 %v4148, %v4147
    %4165 = vmatprep.subr.bf16.mxu0 0
    %4166 = vmatpush1.bf16.msra.mxu0 %v4156
    %4167 = vmatprep.subr.bf16.mxu0 0
    %4168 = vmatpush1.bf16.msra.mxu0 %v4155
    %4169 = vmatprep.subr.bf16.mxu0 0
    %4170 = vmatpush1.bf16.msra.mxu0 %v4154
    %4171 = vmatprep.subr.bf16.mxu0 0
    %4172 = vmatpush1.bf16.msra.mxu0 %v4153
    %4173 = vmatprep.subr.bf16.mxu0 0
    %4174 = vmatpush1.bf16.msra.mxu0 %v4152
    %4175 = vmatprep.subr.bf16.mxu0 0
    %4176 = vmatpush1.bf16.msra.mxu0 %v4151
    %4177 = vmatprep.subr.bf16.mxu0 0
    %4178 = vmatpush1.bf16.msra.mxu0 %v4150
    %4179 = vmatprep.subr.bf16.mxu0 0
    %4180 = vmatpush1.bf16.msra.mxu0 %v4149
    %4181 = vmatprep.subr.bf16.mxu0 0
    %4182 = vmatpush2.bf16.msra.mxu0 0
    %4183 = vmatprep.subr.bf16.mxu0 0
    %4184 = vmatpush2.bf16.msra.mxu0 0
    %4185 = vmatprep.subr.bf16.mxu0 0
    %4186 = vmatpush2.bf16.msra.mxu0 0
    %4187 = vmatprep.subr.bf16.mxu0 0
    %4188 = vmatpush2.bf16.msra.mxu0 0
    %4189 = vmatprep.subr.bf16.mxu0 0
    %4190 = vmatpush2.bf16.msra.mxu0 0
    %4191 = vmatprep.subr.bf16.mxu0 0
    %4192 = vmatpush2.bf16.msra.mxu0 0
    %4193 = vmatprep.subr.bf16.mxu0 0
    %4194 = vmatpush2.bf16.msra.mxu0 0
    %4195 = vmatprep.subr.bf16.mxu0 0
    %4196 = vmatpush2.bf16.msra.mxu0 0
    %4197 = vmatprep.mubr.bf16.mxu0 0
    %4198 = vmatmul.mubr.bf16.gmra.mxu0 %v4068
    %v4199 = vpop.f32.mrf.mxu0
    %v4200 = vadd.f32 0.0, %v4199
    %v4201 = vpop.f32.mrf.mxu0
    %v4202 = vpop.f32.mrf.mxu0
    %v4203 = vadd.f32 0.0, %v4202
    %v4204 = vpop.f32.mrf.mxu0
    %4205 = vmatprep.mubr.bf16.mxu0 0
    %4206 = vmatmul.mubr.bf16.gmra.mxu0 %v4069
    %v4207 = vpop.f32.mrf.mxu0
    %v4208 = vadd.f32 0.0, %v4207
    %v4209 = vpop.f32.mrf.mxu0
    %v4210 = vpop.f32.mrf.mxu0
    %v4211 = vadd.f32 0.0, %v4210
    %v4212 = vpop.f32.mrf.mxu0
    %4213 = vmatprep.mubr.bf16.mxu0 0
    %4214 = vmatmul.mubr.bf16.gmra.mxu0 %v4070
    %v4215 = vpop.f32.mrf.mxu0
    %v4216 = vadd.f32 0.0, %v4215
    %v4217 = vpop.f32.mrf.mxu0
    %v4218 = vpop.f32.mrf.mxu0
    %v4219 = vadd.f32 0.0, %v4218
    %v4220 = vpop.f32.mrf.mxu0
    %4221 = vmatprep.mubr.bf16.mxu0 0
    %4222 = vmatmul.mubr.bf16.gmra.mxu0 %v4071
    %v4223 = vpop.f32.mrf.mxu0
    %v4224 = vadd.f32 0.0, %v4223
    %v4225 = vpop.f32.mrf.mxu0
    %v4226 = vpop.f32.mrf.mxu0
    %v4227 = vadd.f32 0.0, %v4226
    %v4228 = vpop.f32.mrf.mxu0
    %4229 = vmatprep.mubr.bf16.mxu0 0
    %4230 = vmatmul.mubr.bf16.gmra.mxu0 %v4072
    %v4231 = vpop.f32.mrf.mxu0
    %v4232 = vadd.f32 0.0, %v4231
    %v4233 = vpop.f32.mrf.mxu0
    %v4234 = vpop.f32.mrf.mxu0
    %v4235 = vadd.f32 0.0, %v4234
    %v4236 = vpop.f32.mrf.mxu0
    %4237 = vmatprep.mubr.bf16.mxu0 0
    %4238 = vmatmul.mubr.bf16.gmra.mxu0 %v4073
    %v4239 = vpop.f32.mrf.mxu0
    %v4240 = vadd.f32 0.0, %v4239
    %v4241 = vpop.f32.mrf.mxu0
    %v4242 = vpop.f32.mrf.mxu0
    %v4243 = vadd.f32 0.0, %v4242
    %v4244 = vpop.f32.mrf.mxu0
    %4245 = vmatprep.mubr.bf16.mxu0 0
    %4246 = vmatmul.mubr.bf16.gmra.mxu0 %v4074
    %v4247 = vpop.f32.mrf.mxu0
    %v4248 = vadd.f32 0.0, %v4247
    %v4249 = vpop.f32.mrf.mxu0
    %v4250 = vpop.f32.mrf.mxu0
    %v4251 = vadd.f32 0.0, %v4250
    %v4252 = vpop.f32.mrf.mxu0
    %4253 = vmatprep.mubr.bf16.mxu0 0
    %4254 = vmatmul.mubr.bf16.gmra.mxu0 %v4075
    %v4255 = vpop.f32.mrf.mxu0
    %v4256 = vadd.f32 0.0, %v4255
    %v4257 = vpop.f32.mrf.mxu0
    %v4258 = vpop.f32.mrf.mxu0
    %v4259 = vadd.f32 0.0, %v4258
    %v4260 = vpop.f32.mrf.mxu0
    %4261 = vmatprep.mubr.bf16.mxu0 0
    %4262 = vmatmul.mubr.bf16.gmra.mxu0 %v4076
    %v4263 = vpop.f32.mrf.mxu0
    %v4264 = vadd.f32 0.0, %v4263
    %v4265 = vpop.f32.mrf.mxu0
    %v4266 = vpop.f32.mrf.mxu0
    %v4267 = vadd.f32 0.0, %v4266
    %v4268 = vpop.f32.mrf.mxu0
    %4269 = vmatprep.mubr.bf16.mxu0 0
    %4270 = vmatmul.mubr.bf16.gmra.mxu0 %v4077
    %v4271 = vpop.f32.mrf.mxu0
    %v4272 = vadd.f32 0.0, %v4271
    %v4273 = vpop.f32.mrf.mxu0
    %v4274 = vpop.f32.mrf.mxu0
    %v4275 = vadd.f32 0.0, %v4274
    %v4276 = vpop.f32.mrf.mxu0
    %4277 = vmatprep.mubr.bf16.mxu0 0
    %4278 = vmatmul.mubr.bf16.gmra.mxu0 %v4078
    %v4279 = vpop.f32.mrf.mxu0
    %v4280 = vadd.f32 0.0, %v4279
    %v4281 = vpop.f32.mrf.mxu0
    %v4282 = vpop.f32.mrf.mxu0
    %v4283 = vadd.f32 0.0, %v4282
    %v4284 = vpop.f32.mrf.mxu0
    %4285 = vmatprep.mubr.bf16.mxu0 0
    %4286 = vmatmul.mubr.bf16.gmra.mxu0 %v4079
    %v4287 = vpop.f32.mrf.mxu0
    %v4288 = vadd.f32 0.0, %v4287
    %v4289 = vpop.f32.mrf.mxu0
    %v4290 = vpop.f32.mrf.mxu0
    %v4291 = vadd.f32 0.0, %v4290
    %v4292 = vpop.f32.mrf.mxu0
    %4293 = vmatprep.mubr.bf16.mxu0 0
    %4294 = vmatmul.mubr.bf16.gmra.mxu0 %v4080
    %v4295 = vpop.f32.mrf.mxu0
    %v4296 = vadd.f32 0.0, %v4295
    %v4297 = vpop.f32.mrf.mxu0
    %v4298 = vpop.f32.mrf.mxu0
    %v4299 = vadd.f32 0.0, %v4298
    %v4300 = vpop.f32.mrf.mxu0
    %4301 = vmatprep.mubr.bf16.mxu0 0
    %4302 = vmatmul.mubr.bf16.gmra.mxu0 %v4081
    %v4303 = vpop.f32.mrf.mxu0
    %v4304 = vadd.f32 0.0, %v4303
    %v4305 = vpop.f32.mrf.mxu0
    %v4306 = vpop.f32.mrf.mxu0
    %v4307 = vadd.f32 0.0, %v4306
    %v4308 = vpop.f32.mrf.mxu0
    %4309 = vmatprep.mubr.bf16.mxu0 0
    %4310 = vmatmul.mubr.bf16.gmra.mxu0 %v4082
    %v4311 = vpop.f32.mrf.mxu0
    %v4312 = vadd.f32 0.0, %v4311
    %v4313 = vpop.f32.mrf.mxu0
    %v4314 = vpop.f32.mrf.mxu0
    %v4315 = vadd.f32 0.0, %v4314
    %v4316 = vpop.f32.mrf.mxu0
    %4317 = vmatprep.mubr.bf16.mxu0 0
    %4318 = vmatmul.mubr.bf16.gmra.mxu0 %v4083
    %v4319 = vpop.f32.mrf.mxu0
    %v4320 = vadd.f32 0.0, %v4319
    %v4321 = vpop.f32.mrf.mxu0
    %v4322 = vpop.f32.mrf.mxu0
    %v4323 = vadd.f32 0.0, %v4322
    %v4324 = vpop.f32.mrf.mxu0
    %4325 = vmatprep.mubr.bf16.mxu0 0
    %4326 = vmatmul.mubr.bf16.gmra.mxu0 %v4084
    %v4327 = vpop.f32.mrf.mxu0
    %v4328 = vadd.f32 0.0, %v4327
    %v4329 = vpop.f32.mrf.mxu0
    %v4330 = vpop.f32.mrf.mxu0
    %v4331 = vadd.f32 0.0, %v4330
    %v4332 = vpop.f32.mrf.mxu0
    %4333 = vmatprep.mubr.bf16.mxu0 0
    %4334 = vmatmul.mubr.bf16.gmra.mxu0 %v4085
    %v4335 = vpop.f32.mrf.mxu0
    %v4336 = vadd.f32 0.0, %v4335
    %v4337 = vpop.f32.mrf.mxu0
    %v4338 = vpop.f32.mrf.mxu0
    %v4339 = vadd.f32 0.0, %v4338
    %v4340 = vpop.f32.mrf.mxu0
    %4341 = vmatprep.mubr.bf16.mxu0 0
    %4342 = vmatmul.mubr.bf16.gmra.mxu0 %v4086
    %v4343 = vpop.f32.mrf.mxu0
    %v4344 = vadd.f32 0.0, %v4343
    %v4345 = vpop.f32.mrf.mxu0
    %v4346 = vpop.f32.mrf.mxu0
    %v4347 = vadd.f32 0.0, %v4346
    %v4348 = vpop.f32.mrf.mxu0
    %4349 = vmatprep.mubr.bf16.mxu0 0
    %4350 = vmatmul.mubr.bf16.gmra.mxu0 %v4087
    %v4351 = vpop.f32.mrf.mxu0
    %v4352 = vadd.f32 0.0, %v4351
    %v4353 = vpop.f32.mrf.mxu0
    %v4354 = vpop.f32.mrf.mxu0
    %v4355 = vadd.f32 0.0, %v4354
    %v4356 = vpop.f32.mrf.mxu0
    %4357 = vmatprep.mubr.bf16.mxu0 0
    %4358 = vmatmul.mubr.bf16.gmra.mxu0 %v4088
    %v4359 = vpop.f32.mrf.mxu0
    %v4360 = vadd.f32 0.0, %v4359
    %v4361 = vpop.f32.mrf.mxu0
    %v4362 = vpop.f32.mrf.mxu0
    %v4363 = vadd.f32 0.0, %v4362
    %v4364 = vpop.f32.mrf.mxu0
    %4365 = vmatprep.mubr.bf16.mxu0 0
    %4366 = vmatmul.mubr.bf16.gmra.mxu0 %v4089
    %v4367 = vpop.f32.mrf.mxu0
    %v4368 = vadd.f32 0.0, %v4367
    %v4369 = vpop.f32.mrf.mxu0
    %v4370 = vpop.f32.mrf.mxu0
    %v4371 = vadd.f32 0.0, %v4370
    %v4372 = vpop.f32.mrf.mxu0
    %4373 = vmatprep.mubr.bf16.mxu0 0
    %4374 = vmatmul.mubr.bf16.gmra.mxu0 %v4090
    %v4375 = vpop.f32.mrf.mxu0
    %v4376 = vadd.f32 0.0, %v4375
    %v4377 = vpop.f32.mrf.mxu0
    %v4378 = vpop.f32.mrf.mxu0
    %v4379 = vadd.f32 0.0, %v4378
    %v4380 = vpop.f32.mrf.mxu0
    %4381 = vmatprep.mubr.bf16.mxu0 0
    %4382 = vmatmul.mubr.bf16.gmra.mxu0 %v4091
    %v4383 = vpop.f32.mrf.mxu0
    %v4384 = vadd.f32 0.0, %v4383
    %v4385 = vpop.f32.mrf.mxu0
    %v4386 = vpop.f32.mrf.mxu0
    %v4387 = vadd.f32 0.0, %v4386
    %v4388 = vpop.f32.mrf.mxu0
    %4389 = vmatprep.mubr.bf16.mxu0 0
    %4390 = vmatmul.mubr.bf16.gmra.mxu0 %v4092
    %v4391 = vpop.f32.mrf.mxu0
    %v4392 = vadd.f32 0.0, %v4391
    %v4393 = vpop.f32.mrf.mxu0
    %v4394 = vpop.f32.mrf.mxu0
    %v4395 = vadd.f32 0.0, %v4394
    %v4396 = vpop.f32.mrf.mxu0
    %4397 = vmatprep.mubr.bf16.mxu0 0
    %4398 = vmatmul.mubr.bf16.gmra.mxu0 %v4093
    %v4399 = vpop.f32.mrf.mxu0
    %v4400 = vadd.f32 0.0, %v4399
    %v4401 = vpop.f32.mrf.mxu0
    %v4402 = vpop.f32.mrf.mxu0
    %v4403 = vadd.f32 0.0, %v4402
    %v4404 = vpop.f32.mrf.mxu0
    %4405 = vmatprep.mubr.bf16.mxu0 0
    %4406 = vmatmul.mubr.bf16.gmra.mxu0 %v4094
    %v4407 = vpop.f32.mrf.mxu0
    %v4408 = vadd.f32 0.0, %v4407
    %v4409 = vpop.f32.mrf.mxu0
    %v4410 = vpop.f32.mrf.mxu0
    %v4411 = vadd.f32 0.0, %v4410
    %v4412 = vpop.f32.mrf.mxu0
    %4413 = vmatprep.mubr.bf16.mxu0 0
    %4414 = vmatmul.mubr.bf16.gmra.mxu0 %v4095
    %v4415 = vpop.f32.mrf.mxu0
    %v4416 = vadd.f32 0.0, %v4415
    %v4417 = vpop.f32.mrf.mxu0
    %v4418 = vpop.f32.mrf.mxu0
    %v4419 = vadd.f32 0.0, %v4418
    %v4420 = vpop.f32.mrf.mxu0
    %4421 = vmatprep.mubr.bf16.mxu0 0
    %4422 = vmatmul.mubr.bf16.gmra.mxu0 %v4096
    %v4423 = vpop.f32.mrf.mxu0
    %v4424 = vadd.f32 0.0, %v4423
    %v4425 = vpop.f32.mrf.mxu0
    %v4426 = vpop.f32.mrf.mxu0
    %v4427 = vadd.f32 0.0, %v4426
    %v4428 = vpop.f32.mrf.mxu0
    %4429 = vmatprep.mubr.bf16.mxu0 0
    %4430 = vmatmul.mubr.bf16.gmra.mxu0 %v4097
    %v4431 = vpop.f32.mrf.mxu0
    %v4432 = vadd.f32 0.0, %v4431
    %v4433 = vpop.f32.mrf.mxu0
    %v4434 = vpop.f32.mrf.mxu0
    %v4435 = vadd.f32 0.0, %v4434
    %v4436 = vpop.f32.mrf.mxu0
    %4437 = vmatprep.mubr.bf16.mxu0 0
    %4438 = vmatmul.mubr.bf16.gmra.mxu0 %v4098
    %v4439 = vpop.f32.mrf.mxu0
    %v4440 = vadd.f32 0.0, %v4439
    %v4441 = vpop.f32.mrf.mxu0
    %v4442 = vpop.f32.mrf.mxu0
    %v4443 = vadd.f32 0.0, %v4442
    %v4444 = vpop.f32.mrf.mxu0
    %4445 = vmatprep.mubr.bf16.mxu0 0
    %4446 = vmatmul.mubr.bf16.gmra.mxu0 %v4099
    %v4447 = vpop.f32.mrf.mxu0
    %v4448 = vadd.f32 0.0, %v4447
    %v4449 = vpop.f32.mrf.mxu0
    %v4450 = vpop.f32.mrf.mxu0
    %v4451 = vadd.f32 0.0, %v4450
    %v4452 = vpop.f32.mrf.mxu0
    %4453 = vdwg.mxu0
    %v4454 = vadd.f32 %v3940, %v4200
    %v4455 = vadd.f32 %v3941, %v4203
    %v4456 = vadd.f32 %v3942, %v4208
    %v4457 = vadd.f32 %v3943, %v4211
    %v4458 = vadd.f32 %v3944, %v4216
    %v4459 = vadd.f32 %v3945, %v4219
    %v4460 = vadd.f32 %v3946, %v4224
    %v4461 = vadd.f32 %v3947, %v4227
    %v4462 = vadd.f32 %v3948, %v4232
    %v4463 = vadd.f32 %v3949, %v4235
    %v4464 = vadd.f32 %v3950, %v4240
    %v4465 = vadd.f32 %v3951, %v4243
    %v4466 = vadd.f32 %v3952, %v4248
    %v4467 = vadd.f32 %v3953, %v4251
    %v4468 = vadd.f32 %v3954, %v4256
    %v4469 = vadd.f32 %v3955, %v4259
    %v4470 = vadd.f32 %v3956, %v4264
    %v4471 = vadd.f32 %v3957, %v4267
    %v4472 = vadd.f32 %v3958, %v4272
    %v4473 = vadd.f32 %v3959, %v4275
    %v4474 = vadd.f32 %v3960, %v4280
    %v4475 = vadd.f32 %v3961, %v4283
    %v4476 = vadd.f32 %v3962, %v4288
    %v4477 = vadd.f32 %v3963, %v4291
    %v4478 = vadd.f32 %v3964, %v4296
    %v4479 = vadd.f32 %v3965, %v4299
    %v4480 = vadd.f32 %v3966, %v4304
    %v4481 = vadd.f32 %v3967, %v4307
    %v4482 = vadd.f32 %v3968, %v4312
    %v4483 = vadd.f32 %v3969, %v4315
    %v4484 = vadd.f32 %v3970, %v4320
    %v4485 = vadd.f32 %v3971, %v4323
    %v4486 = vadd.f32 %v3972, %v4328
    %v4487 = vadd.f32 %v3973, %v4331
    %v4488 = vadd.f32 %v3974, %v4336
    %v4489 = vadd.f32 %v3975, %v4339
    %v4490 = vadd.f32 %v3976, %v4344
    %v4491 = vadd.f32 %v3977, %v4347
    %v4492 = vadd.f32 %v3978, %v4352
    %v4493 = vadd.f32 %v3979, %v4355
    %v4494 = vadd.f32 %v3980, %v4360
    %v4495 = vadd.f32 %v3981, %v4363
    %v4496 = vadd.f32 %v3982, %v4368
    %v4497 = vadd.f32 %v3983, %v4371
    %v4498 = vadd.f32 %v3984, %v4376
    %v4499 = vadd.f32 %v3985, %v4379
    %v4500 = vadd.f32 %v3986, %v4384
    %v4501 = vadd.f32 %v3987, %v4387
    %v4502 = vadd.f32 %v3988, %v4392
    %v4503 = vadd.f32 %v3989, %v4395
    %v4504 = vadd.f32 %v3990, %v4400
    %v4505 = vadd.f32 %v3991, %v4403
    %v4506 = vadd.f32 %v3992, %v4408
    %v4507 = vadd.f32 %v3993, %v4411
    %v4508 = vadd.f32 %v3994, %v4416
    %v4509 = vadd.f32 %v3995, %v4419
    %v4510 = vadd.f32 %v3996, %v4424
    %v4511 = vadd.f32 %v3997, %v4427
    %v4512 = vadd.f32 %v3998, %v4432
    %v4513 = vadd.f32 %v3999, %v4435
    %v4514 = vadd.f32 %v4000, %v4440
    %v4515 = vadd.f32 %v4001, %v4443
    %v4516 = vadd.f32 %v4002, %v4448
    %v4517 = vadd.f32 %v4003, %v4451
    %v4518 = vadd.f32 %v4454, %v4455
    %v4519 = vadd.f32 %v4518, %v4456
    %v4520 = vadd.f32 %v4519, %v4457
    %v4521 = vadd.f32 %v4520, %v4458
    %v4522 = vadd.f32 %v4521, %v4459
    %v4523 = vadd.f32 %v4522, %v4460
    %v4524 = vadd.f32 %v4523, %v4461
    %v4525 = vadd.f32 %v4524, %v4462
    %v4526 = vadd.f32 %v4525, %v4463
    %v4527 = vadd.f32 %v4526, %v4464
    %v4528 = vadd.f32 %v4527, %v4465
    %v4529 = vadd.f32 %v4528, %v4466
    %v4530 = vadd.f32 %v4529, %v4467
    %v4531 = vadd.f32 %v4530, %v4468
    %v4532 = vadd.f32 %v4531, %v4469
    %v4533 = vadd.f32 %v4532, %v4470
    %v4534 = vadd.f32 %v4533, %v4471
    %v4535 = vadd.f32 %v4534, %v4472
    %v4536 = vadd.f32 %v4535, %v4473
    %v4537 = vadd.f32 %v4536, %v4474
    %v4538 = vadd.f32 %v4537, %v4475
    %v4539 = vadd.f32 %v4538, %v4476
    %v4540 = vadd.f32 %v4539, %v4477
    %v4541 = vadd.f32 %v4540, %v4478
    %v4542 = vadd.f32 %v4541, %v4479
    %v4543 = vadd.f32 %v4542, %v4480
    %v4544 = vadd.f32 %v4543, %v4481
    %v4545 = vadd.f32 %v4544, %v4482
    %v4546 = vadd.f32 %v4545, %v4483
    %v4547 = vadd.f32 %v4546, %v4484
    %v4548 = vadd.f32 %v4547, %v4485
    %v4549 = vadd.f32 %v4548, %v4486
    %v4550 = vadd.f32 %v4549, %v4487
    %v4551 = vadd.f32 %v4550, %v4488
    %v4552 = vadd.f32 %v4551, %v4489
    %v4553 = vadd.f32 %v4552, %v4490
    %v4554 = vadd.f32 %v4553, %v4491
    %v4555 = vadd.f32 %v4554, %v4492
    %v4556 = vadd.f32 %v4555, %v4493
    %v4557 = vadd.f32 %v4556, %v4494
    %v4558 = vadd.f32 %v4557, %v4495
    %v4559 = vadd.f32 %v4558, %v4496
    %v4560 = vadd.f32 %v4559, %v4497
    %v4561 = vadd.f32 %v4560, %v4498
    %v4562 = vadd.f32 %v4561, %v4499
    %v4563 = vadd.f32 %v4562, %v4500
    %v4564 = vadd.f32 %v4563, %v4501
    %v4565 = vadd.f32 %v4564, %v4502
    %v4566 = vadd.f32 %v4565, %v4503
    %v4567 = vadd.f32 %v4566, %v4504
    %v4568 = vadd.f32 %v4567, %v4505
    %v4569 = vadd.f32 %v4568, %v4506
    %v4570 = vadd.f32 %v4569, %v4507
    %v4571 = vadd.f32 %v4570, %v4508
    %v4572 = vadd.f32 %v4571, %v4509
    %v4573 = vadd.f32 %v4572, %v4510
    %v4574 = vadd.f32 %v4573, %v4511
    %v4575 = vadd.f32 %v4574, %v4512
    %v4576 = vadd.f32 %v4575, %v4513
    %v4577 = vadd.f32 %v4576, %v4514
    %v4578 = vadd.f32 %v4577, %v4515
    %v4579 = vadd.f32 %v4578, %v4516
    %v4580 = vadd.f32 %v4579, %v4517
    %v4581 = vrot.slane %v4580, 4
    %v4582 = vadd.f32 %v4580, %v4581
    %v4583 = vrot.slane %v4582, 2
    %v4584 = vadd.f32 %v4582, %v4583
    %v4585 = vrot.slane %v4584, 1
    %v4586 = vadd.f32 %v4584, %v4585
    %v4587 = vmul.f32 %v4586, 0.001953125
    %v4588 = vmul.f32 %v4454, %v4454
    %v4589 = vmul.f32 %v4455, %v4455
    %v4590 = vmul.f32 %v4456, %v4456
    %v4591 = vmul.f32 %v4457, %v4457
    %v4592 = vmul.f32 %v4458, %v4458
    %v4593 = vmul.f32 %v4459, %v4459
    %v4594 = vmul.f32 %v4460, %v4460
    %v4595 = vmul.f32 %v4461, %v4461
    %v4596 = vmul.f32 %v4462, %v4462
    %v4597 = vmul.f32 %v4463, %v4463
    %v4598 = vmul.f32 %v4464, %v4464
    %v4599 = vmul.f32 %v4465, %v4465
    %v4600 = vmul.f32 %v4466, %v4466
    %v4601 = vmul.f32 %v4467, %v4467
    %v4602 = vmul.f32 %v4468, %v4468
    %v4603 = vmul.f32 %v4469, %v4469
    %v4604 = vmul.f32 %v4470, %v4470
    %v4605 = vmul.f32 %v4471, %v4471
    %v4606 = vmul.f32 %v4472, %v4472
    %v4607 = vmul.f32 %v4473, %v4473
    %v4608 = vmul.f32 %v4474, %v4474
    %v4609 = vmul.f32 %v4475, %v4475
    %v4610 = vmul.f32 %v4476, %v4476
    %v4611 = vmul.f32 %v4477, %v4477
    %v4612 = vmul.f32 %v4478, %v4478
    %v4613 = vmul.f32 %v4479, %v4479
    %v4614 = vmul.f32 %v4480, %v4480
    %v4615 = vmul.f32 %v4481, %v4481
    %v4616 = vmul.f32 %v4482, %v4482
    %v4617 = vmul.f32 %v4483, %v4483
    %v4618 = vmul.f32 %v4484, %v4484
    %v4619 = vmul.f32 %v4485, %v4485
    %v4620 = vmul.f32 %v4486, %v4486
    %v4621 = vmul.f32 %v4487, %v4487
    %v4622 = vmul.f32 %v4488, %v4488
    %v4623 = vmul.f32 %v4489, %v4489
    %v4624 = vmul.f32 %v4490, %v4490
    %v4625 = vmul.f32 %v4491, %v4491
    %v4626 = vmul.f32 %v4492, %v4492
    %v4627 = vmul.f32 %v4493, %v4493
    %v4628 = vmul.f32 %v4494, %v4494
    %v4629 = vmul.f32 %v4495, %v4495
    %v4630 = vmul.f32 %v4496, %v4496
    %v4631 = vmul.f32 %v4497, %v4497
    %v4632 = vmul.f32 %v4498, %v4498
    %v4633 = vmul.f32 %v4499, %v4499
    %v4634 = vmul.f32 %v4500, %v4500
    %v4635 = vmul.f32 %v4501, %v4501
    %v4636 = vmul.f32 %v4502, %v4502
    %v4637 = vmul.f32 %v4503, %v4503
    %v4638 = vmul.f32 %v4504, %v4504
    %v4639 = vmul.f32 %v4505, %v4505
    %v4640 = vmul.f32 %v4506, %v4506
    %v4641 = vmul.f32 %v4507, %v4507
    %v4642 = vmul.f32 %v4508, %v4508
    %v4643 = vmul.f32 %v4509, %v4509
    %v4644 = vmul.f32 %v4510, %v4510
    %v4645 = vmul.f32 %v4511, %v4511
    %v4646 = vmul.f32 %v4512, %v4512
    %v4647 = vmul.f32 %v4513, %v4513
    %v4648 = vmul.f32 %v4514, %v4514
    %v4649 = vmul.f32 %v4515, %v4515
    %v4650 = vmul.f32 %v4516, %v4516
    %v4651 = vmul.f32 %v4517, %v4517
    %v4652 = vadd.f32 %v4588, %v4589
    %v4653 = vadd.f32 %v4652, %v4590
    %v4654 = vadd.f32 %v4653, %v4591
    %v4655 = vadd.f32 %v4654, %v4592
    %v4656 = vadd.f32 %v4655, %v4593
    %v4657 = vadd.f32 %v4656, %v4594
    %v4658 = vadd.f32 %v4657, %v4595
    %v4659 = vadd.f32 %v4658, %v4596
    %v4660 = vadd.f32 %v4659, %v4597
    %v4661 = vadd.f32 %v4660, %v4598
    %v4662 = vadd.f32 %v4661, %v4599
    %v4663 = vadd.f32 %v4662, %v4600
    %v4664 = vadd.f32 %v4663, %v4601
    %v4665 = vadd.f32 %v4664, %v4602
    %v4666 = vadd.f32 %v4665, %v4603
    %v4667 = vadd.f32 %v4666, %v4604
    %v4668 = vadd.f32 %v4667, %v4605
    %v4669 = vadd.f32 %v4668, %v4606
    %v4670 = vadd.f32 %v4669, %v4607
    %v4671 = vadd.f32 %v4670, %v4608
    %v4672 = vadd.f32 %v4671, %v4609
    %v4673 = vadd.f32 %v4672, %v4610
    %v4674 = vadd.f32 %v4673, %v4611
    %v4675 = vadd.f32 %v4674, %v4612
    %v4676 = vadd.f32 %v4675, %v4613
    %v4677 = vadd.f32 %v4676, %v4614
    %v4678 = vadd.f32 %v4677, %v4615
    %v4679 = vadd.f32 %v4678, %v4616
    %v4680 = vadd.f32 %v4679, %v4617
    %v4681 = vadd.f32 %v4680, %v4618
    %v4682 = vadd.f32 %v4681, %v4619
    %v4683 = vadd.f32 %v4682, %v4620
    %v4684 = vadd.f32 %v4683, %v4621
    %v4685 = vadd.f32 %v4684, %v4622
    %v4686 = vadd.f32 %v4685, %v4623
    %v4687 = vadd.f32 %v4686, %v4624
    %v4688 = vadd.f32 %v4687, %v4625
    %v4689 = vadd.f32 %v4688, %v4626
    %v4690 = vadd.f32 %v4689, %v4627
    %v4691 = vadd.f32 %v4690, %v4628
    %v4692 = vadd.f32 %v4691, %v4629
    %v4693 = vadd.f32 %v4692, %v4630
    %v4694 = vadd.f32 %v4693, %v4631
    %v4695 = vadd.f32 %v4694, %v4632
    %v4696 = vadd.f32 %v4695, %v4633
    %v4697 = vadd.f32 %v4696, %v4634
    %v4698 = vadd.f32 %v4697, %v4635
    %v4699 = vadd.f32 %v4698, %v4636
    %v4700 = vadd.f32 %v4699, %v4637
    %v4701 = vadd.f32 %v4700, %v4638
    %v4702 = vadd.f32 %v4701, %v4639
    %v4703 = vadd.f32 %v4702, %v4640
    %v4704 = vadd.f32 %v4703, %v4641
    %v4705 = vadd.f32 %v4704, %v4642
    %v4706 = vadd.f32 %v4705, %v4643
    %v4707 = vadd.f32 %v4706, %v4644
    %v4708 = vadd.f32 %v4707, %v4645
    %v4709 = vadd.f32 %v4708, %v4646
    %v4710 = vadd.f32 %v4709, %v4647
    %v4711 = vadd.f32 %v4710, %v4648
    %v4712 = vadd.f32 %v4711, %v4649
    %v4713 = vadd.f32 %v4712, %v4650
    %v4714 = vadd.f32 %v4713, %v4651
    %v4715 = vrot.slane %v4714, 4
    %v4716 = vadd.f32 %v4714, %v4715
    %v4717 = vrot.slane %v4716, 2
    %v4718 = vadd.f32 %v4716, %v4717
    %v4719 = vrot.slane %v4718, 1
    %v4720 = vadd.f32 %v4718, %v4719
    %v4721 = vmul.f32 %v4720, 0.001953125
    %v4722 = vmul.f32 %v4587, %v4587
    %v4723 = vsub.f32 %v4721, %v4722
    %v4724 = vmax.f32 %v4723, 0.0
    %v4725 = vadd.f32 %v4724, 1e-05
    %v4726 = vrsqrt.pop %v4725
    %v4727 = vld [vmem:[%s2] sm:$0x1]
    %v4728 = vmul.f32 %v4726, %v4727
    %v4729 = vsub.f32 %v4454, %v4587
    %v4730 = vsub.f32 %v4455, %v4587
    %v4731 = vsub.f32 %v4456, %v4587
    %v4732 = vsub.f32 %v4457, %v4587
    %v4733 = vsub.f32 %v4458, %v4587
    %v4734 = vsub.f32 %v4459, %v4587
    %v4735 = vsub.f32 %v4460, %v4587
    %v4736 = vsub.f32 %v4461, %v4587
    %v4737 = vsub.f32 %v4462, %v4587
    %v4738 = vsub.f32 %v4463, %v4587
    %v4739 = vsub.f32 %v4464, %v4587
    %v4740 = vsub.f32 %v4465, %v4587
    %v4741 = vsub.f32 %v4466, %v4587
    %v4742 = vsub.f32 %v4467, %v4587
    %v4743 = vsub.f32 %v4468, %v4587
    %v4744 = vsub.f32 %v4469, %v4587
    %v4745 = vsub.f32 %v4470, %v4587
    %v4746 = vsub.f32 %v4471, %v4587
    %v4747 = vsub.f32 %v4472, %v4587
    %v4748 = vsub.f32 %v4473, %v4587
    %v4749 = vsub.f32 %v4474, %v4587
    %v4750 = vsub.f32 %v4475, %v4587
    %v4751 = vsub.f32 %v4476, %v4587
    %v4752 = vsub.f32 %v4477, %v4587
    %v4753 = vsub.f32 %v4478, %v4587
    %v4754 = vsub.f32 %v4479, %v4587
    %v4755 = vsub.f32 %v4480, %v4587
    %v4756 = vsub.f32 %v4481, %v4587
    %v4757 = vsub.f32 %v4482, %v4587
    %v4758 = vsub.f32 %v4483, %v4587
    %v4759 = vsub.f32 %v4484, %v4587
    %v4760 = vsub.f32 %v4485, %v4587
    %v4761 = vsub.f32 %v4486, %v4587
    %v4762 = vsub.f32 %v4487, %v4587
    %v4763 = vsub.f32 %v4488, %v4587
    %v4764 = vsub.f32 %v4489, %v4587
    %v4765 = vsub.f32 %v4490, %v4587
    %v4766 = vsub.f32 %v4491, %v4587
    %v4767 = vsub.f32 %v4492, %v4587
    %v4768 = vsub.f32 %v4493, %v4587
    %v4769 = vsub.f32 %v4494, %v4587
    %v4770 = vsub.f32 %v4495, %v4587
    %v4771 = vsub.f32 %v4496, %v4587
    %v4772 = vsub.f32 %v4497, %v4587
    %v4773 = vsub.f32 %v4498, %v4587
    %v4774 = vsub.f32 %v4499, %v4587
    %v4775 = vsub.f32 %v4500, %v4587
    %v4776 = vsub.f32 %v4501, %v4587
    %v4777 = vsub.f32 %v4502, %v4587
    %v4778 = vsub.f32 %v4503, %v4587
    %v4779 = vsub.f32 %v4504, %v4587
    %v4780 = vsub.f32 %v4505, %v4587
    %v4781 = vsub.f32 %v4506, %v4587
    %v4782 = vsub.f32 %v4507, %v4587
    %v4783 = vsub.f32 %v4508, %v4587
    %v4784 = vsub.f32 %v4509, %v4587
    %v4785 = vsub.f32 %v4510, %v4587
    %v4786 = vsub.f32 %v4511, %v4587
    %v4787 = vsub.f32 %v4512, %v4587
    %v4788 = vsub.f32 %v4513, %v4587
    %v4789 = vsub.f32 %v4514, %v4587
    %v4790 = vsub.f32 %v4515, %v4587
    %v4791 = vsub.f32 %v4516, %v4587
    %v4792 = vsub.f32 %v4517, %v4587
    %v4793 = vlaneseq
    %v4794 = vshrl.u32 %v4793, 7
    %v4795 = vsub.s32 0, %v4794
    %v4796 = vrot.slane %v4728, %v4795
    %v4797 = vmul.f32 %v4729, %v4796
    %v4798 = vmul.f32 %v4730, %v4796
    %v4799 = vmul.f32 %v4731, %v4796
    %v4800 = vmul.f32 %v4732, %v4796
    %v4801 = vmul.f32 %v4733, %v4796
    %v4802 = vmul.f32 %v4734, %v4796
    %v4803 = vmul.f32 %v4735, %v4796
    %v4804 = vmul.f32 %v4736, %v4796
    %v4805 = vmul.f32 %v4737, %v4796
    %v4806 = vmul.f32 %v4738, %v4796
    %v4807 = vmul.f32 %v4739, %v4796
    %v4808 = vmul.f32 %v4740, %v4796
    %v4809 = vmul.f32 %v4741, %v4796
    %v4810 = vmul.f32 %v4742, %v4796
    %v4811 = vmul.f32 %v4743, %v4796
    %v4812 = vmul.f32 %v4744, %v4796
    %v4813 = vmul.f32 %v4745, %v4796
    %v4814 = vmul.f32 %v4746, %v4796
    %v4815 = vmul.f32 %v4747, %v4796
    %v4816 = vmul.f32 %v4748, %v4796
    %v4817 = vmul.f32 %v4749, %v4796
    %v4818 = vmul.f32 %v4750, %v4796
    %v4819 = vmul.f32 %v4751, %v4796
    %v4820 = vmul.f32 %v4752, %v4796
    %v4821 = vmul.f32 %v4753, %v4796
    %v4822 = vmul.f32 %v4754, %v4796
    %v4823 = vmul.f32 %v4755, %v4796
    %v4824 = vmul.f32 %v4756, %v4796
    %v4825 = vmul.f32 %v4757, %v4796
    %v4826 = vmul.f32 %v4758, %v4796
    %v4827 = vmul.f32 %v4759, %v4796
    %v4828 = vmul.f32 %v4760, %v4796
    %v4829 = vmul.f32 %v4761, %v4796
    %v4830 = vmul.f32 %v4762, %v4796
    %v4831 = vmul.f32 %v4763, %v4796
    %v4832 = vmul.f32 %v4764, %v4796
    %v4833 = vmul.f32 %v4765, %v4796
    %v4834 = vmul.f32 %v4766, %v4796
    %v4835 = vmul.f32 %v4767, %v4796
    %v4836 = vmul.f32 %v4768, %v4796
    %v4837 = vmul.f32 %v4769, %v4796
    %v4838 = vmul.f32 %v4770, %v4796
    %v4839 = vmul.f32 %v4771, %v4796
    %v4840 = vmul.f32 %v4772, %v4796
    %v4841 = vmul.f32 %v4773, %v4796
    %v4842 = vmul.f32 %v4774, %v4796
    %v4843 = vmul.f32 %v4775, %v4796
    %v4844 = vmul.f32 %v4776, %v4796
    %v4845 = vmul.f32 %v4777, %v4796
    %v4846 = vmul.f32 %v4778, %v4796
    %v4847 = vmul.f32 %v4779, %v4796
    %v4848 = vmul.f32 %v4780, %v4796
    %v4849 = vmul.f32 %v4781, %v4796
    %v4850 = vmul.f32 %v4782, %v4796
    %v4851 = vmul.f32 %v4783, %v4796
    %v4852 = vmul.f32 %v4784, %v4796
    %v4853 = vmul.f32 %v4785, %v4796
    %v4854 = vmul.f32 %v4786, %v4796
    %v4855 = vmul.f32 %v4787, %v4796
    %v4856 = vmul.f32 %v4788, %v4796
    %v4857 = vmul.f32 %v4789, %v4796
    %v4858 = vmul.f32 %v4790, %v4796
    %v4859 = vmul.f32 %v4791, %v4796
    %v4860 = vmul.f32 %v4792, %v4796
    %v4861 = vld [vmem:[%s3] sm:$0x1]
    %v4863 = vlaneseq
    %v4864 = vshrl.u32 %v4863, 7
    %v4865 = vsub.s32 0, %v4864
    %v4866 = vrot.slane %v4861, %v4865
    %v4868 = vadd.f32 %v4797, %v4866
    %v4869 = vadd.f32 %v4798, %v4866
    %v4870 = vadd.f32 %v4799, %v4866
    %v4871 = vadd.f32 %v4800, %v4866
    %v4872 = vadd.f32 %v4801, %v4866
    %v4873 = vadd.f32 %v4802, %v4866
    %v4874 = vadd.f32 %v4803, %v4866
    %v4875 = vadd.f32 %v4804, %v4866
    %v4876 = vadd.f32 %v4805, %v4866
    %v4877 = vadd.f32 %v4806, %v4866
    %v4878 = vadd.f32 %v4807, %v4866
    %v4879 = vadd.f32 %v4808, %v4866
    %v4880 = vadd.f32 %v4809, %v4866
    %v4881 = vadd.f32 %v4810, %v4866
    %v4882 = vadd.f32 %v4811, %v4866
    %v4883 = vadd.f32 %v4812, %v4866
    %v4884 = vadd.f32 %v4813, %v4866
    %v4885 = vadd.f32 %v4814, %v4866
    %v4886 = vadd.f32 %v4815, %v4866
    %v4887 = vadd.f32 %v4816, %v4866
    %v4888 = vadd.f32 %v4817, %v4866
    %v4889 = vadd.f32 %v4818, %v4866
    %v4890 = vadd.f32 %v4819, %v4866
    %v4891 = vadd.f32 %v4820, %v4866
    %v4892 = vadd.f32 %v4821, %v4866
    %v4893 = vadd.f32 %v4822, %v4866
    %v4894 = vadd.f32 %v4823, %v4866
    %v4895 = vadd.f32 %v4824, %v4866
    %v4896 = vadd.f32 %v4825, %v4866
    %v4897 = vadd.f32 %v4826, %v4866
    %v4898 = vadd.f32 %v4827, %v4866
    %v4899 = vadd.f32 %v4828, %v4866
    %v4900 = vadd.f32 %v4829, %v4866
    %v4901 = vadd.f32 %v4830, %v4866
    %v4902 = vadd.f32 %v4831, %v4866
    %v4903 = vadd.f32 %v4832, %v4866
    %v4904 = vadd.f32 %v4833, %v4866
    %v4905 = vadd.f32 %v4834, %v4866
    %v4906 = vadd.f32 %v4835, %v4866
    %v4907 = vadd.f32 %v4836, %v4866
    %v4908 = vadd.f32 %v4837, %v4866
    %v4909 = vadd.f32 %v4838, %v4866
    %v4910 = vadd.f32 %v4839, %v4866
    %v4911 = vadd.f32 %v4840, %v4866
    %v4912 = vadd.f32 %v4841, %v4866
    %v4913 = vadd.f32 %v4842, %v4866
    %v4914 = vadd.f32 %v4843, %v4866
    %v4915 = vadd.f32 %v4844, %v4866
    %v4916 = vadd.f32 %v4845, %v4866
    %v4917 = vadd.f32 %v4846, %v4866
    %v4918 = vadd.f32 %v4847, %v4866
    %v4919 = vadd.f32 %v4848, %v4866
    %v4920 = vadd.f32 %v4849, %v4866
    %v4921 = vadd.f32 %v4850, %v4866
    %v4922 = vadd.f32 %v4851, %v4866
    %v4923 = vadd.f32 %v4852, %v4866
    %v4924 = vadd.f32 %v4853, %v4866
    %v4925 = vadd.f32 %v4854, %v4866
    %v4926 = vadd.f32 %v4855, %v4866
    %v4927 = vadd.f32 %v4856, %v4866
    %v4928 = vadd.f32 %v4857, %v4866
    %v4929 = vadd.f32 %v4858, %v4866
    %v4930 = vadd.f32 %v4859, %v4866
    %v4931 = vadd.f32 %v4860, %v4866
    %v4932 = vmax.f32 %v4868, 0.0
    %v4933 = vmax.f32 %v4869, 0.0
    %v4934 = vmax.f32 %v4870, 0.0
    %v4935 = vmax.f32 %v4871, 0.0
    %v4936 = vmax.f32 %v4872, 0.0
    %v4937 = vmax.f32 %v4873, 0.0
    %v4938 = vmax.f32 %v4874, 0.0
    %v4939 = vmax.f32 %v4875, 0.0
    %v4940 = vmax.f32 %v4876, 0.0
    %v4941 = vmax.f32 %v4877, 0.0
    %v4942 = vmax.f32 %v4878, 0.0
    %v4943 = vmax.f32 %v4879, 0.0
    %v4944 = vmax.f32 %v4880, 0.0
    %v4945 = vmax.f32 %v4881, 0.0
    %v4946 = vmax.f32 %v4882, 0.0
    %v4947 = vmax.f32 %v4883, 0.0
    %v4948 = vmax.f32 %v4884, 0.0
    %v4949 = vmax.f32 %v4885, 0.0
    %v4950 = vmax.f32 %v4886, 0.0
    %v4951 = vmax.f32 %v4887, 0.0
    %v4952 = vmax.f32 %v4888, 0.0
    %v4953 = vmax.f32 %v4889, 0.0
    %v4954 = vmax.f32 %v4890, 0.0
    %v4955 = vmax.f32 %v4891, 0.0
    %v4956 = vmax.f32 %v4892, 0.0
    %v4957 = vmax.f32 %v4893, 0.0
    %v4958 = vmax.f32 %v4894, 0.0
    %v4959 = vmax.f32 %v4895, 0.0
    %v4960 = vmax.f32 %v4896, 0.0
    %v4961 = vmax.f32 %v4897, 0.0
    %v4962 = vmax.f32 %v4898, 0.0
    %v4963 = vmax.f32 %v4899, 0.0
    %v4964 = vmax.f32 %v4900, 0.0
    %v4965 = vmax.f32 %v4901, 0.0
    %v4966 = vmax.f32 %v4902, 0.0
    %v4967 = vmax.f32 %v4903, 0.0
    %v4968 = vmax.f32 %v4904, 0.0
    %v4969 = vmax.f32 %v4905, 0.0
    %v4970 = vmax.f32 %v4906, 0.0
    %v4971 = vmax.f32 %v4907, 0.0
    %v4972 = vmax.f32 %v4908, 0.0
    %v4973 = vmax.f32 %v4909, 0.0
    %v4974 = vmax.f32 %v4910, 0.0
    %v4975 = vmax.f32 %v4911, 0.0
    %v4976 = vmax.f32 %v4912, 0.0
    %v4977 = vmax.f32 %v4913, 0.0
    %v4978 = vmax.f32 %v4914, 0.0
    %v4979 = vmax.f32 %v4915, 0.0
    %v4980 = vmax.f32 %v4916, 0.0
    %v4981 = vmax.f32 %v4917, 0.0
    %v4982 = vmax.f32 %v4918, 0.0
    %v4983 = vmax.f32 %v4919, 0.0
    %v4984 = vmax.f32 %v4920, 0.0
    %v4985 = vmax.f32 %v4921, 0.0
    %v4986 = vmax.f32 %v4922, 0.0
    %v4987 = vmax.f32 %v4923, 0.0
    %v4988 = vmax.f32 %v4924, 0.0
    %v4989 = vmax.f32 %v4925, 0.0
    %v4990 = vmax.f32 %v4926, 0.0
    %v4991 = vmax.f32 %v4927, 0.0
    %v4992 = vmax.f32 %v4928, 0.0
    %v4993 = vmax.f32 %v4929, 0.0
    %v4994 = vmax.f32 %v4930, 0.0
    %v4995 = vmax.f32 %v4931, 0.0
    %4996 = vst [vmem:[#allocation2] sm:$0xff] %v4932
    %4997 = vst [vmem:[#allocation2 + $0x8] sm:$0xff] %v4933
    %4998 = vst [vmem:[#allocation2 + $0x10] sm:$0xff] %v4934
    %4999 = vst [vmem:[#allocation2 + $0x18] sm:$0xff] %v4935
    %5000 = vst [vmem:[#allocation2 + $0x20] sm:$0xff] %v4936
    %5001 = vst [vmem:[#allocation2 + $0x28] sm:$0xff] %v4937
    %5002 = vst [vmem:[#allocation2 + $0x30] sm:$0xff] %v4938
    %5003 = vst [vmem:[#allocation2 + $0x38] sm:$0xff] %v4939
    %5004 = vst [vmem:[#allocation2 + $0x40] sm:$0xff] %v4940
    %5005 = vst [vmem:[#allocation2 + $0x48] sm:$0xff] %v4941
    %5006 = vst [vmem:[#allocation2 + $0x50] sm:$0xff] %v4942
    %5007 = vst [vmem:[#allocation2 + $0x58] sm:$0xff] %v4943
    %5008 = vst [vmem:[#allocation2 + $0x60] sm:$0xff] %v4944
    %5009 = vst [vmem:[#allocation2 + $0x68] sm:$0xff] %v4945
    %5010 = vst [vmem:[#allocation2 + $0x70] sm:$0xff] %v4946
    %5011 = vst [vmem:[#allocation2 + $0x78] sm:$0xff] %v4947
    %5012 = vst [vmem:[#allocation2 + $0x80] sm:$0xff] %v4948
    %5013 = vst [vmem:[#allocation2 + $0x88] sm:$0xff] %v4949
    %5014 = vst [vmem:[#allocation2 + $0x90] sm:$0xff] %v4950
    %5015 = vst [vmem:[#allocation2 + $0x98] sm:$0xff] %v4951
    %5016 = vst [vmem:[#allocation2 + $0xa0] sm:$0xff] %v4952
    %5017 = vst [vmem:[#allocation2 + $0xa8] sm:$0xff] %v4953
    %5018 = vst [vmem:[#allocation2 + $0xb0] sm:$0xff] %v4954
    %5019 = vst [vmem:[#allocation2 + $0xb8] sm:$0xff] %v4955
    %5020 = vst [vmem:[#allocation2 + $0xc0] sm:$0xff] %v4956
    %5021 = vst [vmem:[#allocation2 + $0xc8] sm:$0xff] %v4957
    %5022 = vst [vmem:[#allocation2 + $0xd0] sm:$0xff] %v4958
    %5023 = vst [vmem:[#allocation2 + $0xd8] sm:$0xff] %v4959
    %5024 = vst [vmem:[#allocation2 + $0xe0] sm:$0xff] %v4960
    %5025 = vst [vmem:[#allocation2 + $0xe8] sm:$0xff] %v4961
    %5026 = vst [vmem:[#allocation2 + $0xf0] sm:$0xff] %v4962
    %5027 = vst [vmem:[#allocation2 + $0xf8] sm:$0xff] %v4963
    %5028 = vst [vmem:[#allocation2 + $0x100] sm:$0xff] %v4964
    %5029 = vst [vmem:[#allocation2 + $0x108] sm:$0xff] %v4965
    %5030 = vst [vmem:[#allocation2 + $0x110] sm:$0xff] %v4966
    %5031 = vst [vmem:[#allocation2 + $0x118] sm:$0xff] %v4967
    %5032 = vst [vmem:[#allocation2 + $0x120] sm:$0xff] %v4968
    %5033 = vst [vmem:[#allocation2 + $0x128] sm:$0xff] %v4969
    %5034 = vst [vmem:[#allocation2 + $0x130] sm:$0xff] %v4970
    %5035 = vst [vmem:[#allocation2 + $0x138] sm:$0xff] %v4971
    %5036 = vst [vmem:[#allocation2 + $0x140] sm:$0xff] %v4972
    %5037 = vst [vmem:[#allocation2 + $0x148] sm:$0xff] %v4973
    %5038 = vst [vmem:[#allocation2 + $0x150] sm:$0xff] %v4974
    %5039 = vst [vmem:[#allocation2 + $0x158] sm:$0xff] %v4975
    %5040 = vst [vmem:[#allocation2 + $0x160] sm:$0xff] %v4976
    %5041 = vst [vmem:[#allocation2 + $0x168] sm:$0xff] %v4977
    %5042 = vst [vmem:[#allocation2 + $0x170] sm:$0xff] %v4978
    %5043 = vst [vmem:[#allocation2 + $0x178] sm:$0xff] %v4979
    %5044 = vst [vmem:[#allocation2 + $0x180] sm:$0xff] %v4980
    %5045 = vst [vmem:[#allocation2 + $0x188] sm:$0xff] %v4981
    %5046 = vst [vmem:[#allocation2 + $0x190] sm:$0xff] %v4982
    %5047 = vst [vmem:[#allocation2 + $0x198] sm:$0xff] %v4983
    %5048 = vst [vmem:[#allocation2 + $0x1a0] sm:$0xff] %v4984
    %5049 = vst [vmem:[#allocation2 + $0x1a8] sm:$0xff] %v4985
    %5050 = vst [vmem:[#allocation2 + $0x1b0] sm:$0xff] %v4986
    %5051 = vst [vmem:[#allocation2 + $0x1b8] sm:$0xff] %v4987
    %5052 = vst [vmem:[#allocation2 + $0x1c0] sm:$0xff] %v4988
    %5053 = vst [vmem:[#allocation2 + $0x1c8] sm:$0xff] %v4989
    %5054 = vst [vmem:[#allocation2 + $0x1d0] sm:$0xff] %v4990
    %5055 = vst [vmem:[#allocation2 + $0x1d8] sm:$0xff] %v4991
    %5056 = vst [vmem:[#allocation2 + $0x1e0] sm:$0xff] %v4992
    %5057 = vst [vmem:[#allocation2 + $0x1e8] sm:$0xff] %v4993
    %5058 = vst [vmem:[#allocation2 + $0x1f0] sm:$0xff] %v4994
    %5059 = vst [vmem:[#allocation2 + $0x1f8] sm:$0xff] %v4995
    // Predicated region
    $region18: #{tpu_custom_call.1} parent=1 // pred_check
      _
    $region19: #{tpu_custom_call.1} parent=1 // pred_check_branch
      %5061 = sbr.rel (0) target = $region21
    $region20: #{tpu_custom_call.1} parent=1 // pred_region
      %s5063 = ssub.s32 8192, 8192
      %5064 = vsyncadd [#allocation3], %s5063
      %s5065 = sshll.u32 [#allocation2], 4
      %s5066 = int_to_ptr.vmem [resolvable:$true] %s5065
      %5071 = dma.vmem_to_hbm [thread:$0]  %s5066, 8192, %s4, [#allocation3], 128, 128, 8
    $region21: #{tpu_custom_call.1} parent=1 // pred_fallthru
      _
    // Predicated region
    $region22: #{tpu_custom_call.1} parent=1 // pred_check
      _
    $region23: #{tpu_custom_call.1} parent=1 // pred_check_branch
      %5073 = sbr.rel (0) target = $region25
    $region24: #{tpu_custom_call.1} parent=1 // pred_region
      %5074 = dma.done [#allocation3], 8192
    $region25: #{tpu_custom_call.1} parent=1 // pred_fallthru
      _
    %5075 = vsyncpa [#allocation3], 1

</llo_original>
